<compile_context>
chip_gen: v7x
topology: tpu7x:2x2x1
jax: 0.10.0
libtpu: 0.0.40
codegen_flags: <defaults>
</compile_context>

<pallas_src>
import functools

import jax
import jax.numpy as jnp
import numpy as np
from jax.experimental import pallas as pl
from jax.experimental.pallas import tpu as pltpu

EPS_LN = 1e-5
EPS_BN = 1e-5


# ----------------------------- math helpers ---------------------------------

def _erf(x):
    # Abramowitz & Stegun 7.1.26 rational approximation (|err| < 1.5e-7).
    a1, a2, a3, a4, a5 = (0.254829592, -0.284496736, 1.421413741,
                          -1.453152027, 1.061405429)
    p = 0.3275911
    s = jnp.where(x >= 0.0, 1.0, -1.0)
    ax = jnp.abs(x)
    t = 1.0 / (1.0 + p * ax)
    poly = ((((a5 * t + a4) * t + a3) * t + a2) * t + a1) * t
    return s * (1.0 - poly * jnp.exp(-ax * ax))


def _gelu(x):
    # exact (erf-based) GELU, matching PyTorch nn.GELU default
    return 0.5 * x * (1.0 + _erf(x * 0.7071067811865476))


def _layernorm(x, g, b):
    mu = jnp.mean(x, axis=-1, keepdims=True)
    var = jnp.mean((x - mu) ** 2, axis=-1, keepdims=True)
    return (x - mu) * jax.lax.rsqrt(var + EPS_LN) * g + b


# ----------------------------- conv (im2col matmul) kernel -------------------

def _conv_mm_kernel(x_ref, w_ref, b_ref, o_ref, *, apply_gelu):
    # BN is pre-folded into w/b, so the body is a pure MXU matmul + add (+GELU).
    acc = jnp.dot(x_ref[...], w_ref[...], preferred_element_type=jnp.float32)
    y = acc + b_ref[...]
    if apply_gelu:
        y = _gelu(y)
    o_ref[...] = y.astype(o_ref.dtype)


def conv_bn_act(patches, w_fold, b_fold, apply_gelu, out_dtype=jnp.float32,
                tm=1024):
    M, K = patches.shape
    Cout = w_fold.shape[1]
    # Biggest row tile that is still tiny in VMEM (K, Cout are small here);
    # fewer grid steps -> less per-step overhead, better DMA occupancy.
    tm = min(tm, M)
    kernel = functools.partial(_conv_mm_kernel, apply_gelu=apply_gelu)
    return pl.pallas_call(
        kernel,
        out_shape=jax.ShapeDtypeStruct((M, Cout), out_dtype),
        grid=(pl.cdiv(M, tm),),
        in_specs=[
            pl.BlockSpec((tm, K), lambda i: (i, 0)),
            pl.BlockSpec((K, Cout), lambda i: (0, 0)),
            pl.BlockSpec((1, Cout), lambda i: (0, 0)),
        ],
        out_specs=pl.BlockSpec((tm, Cout), lambda i: (i, 0)),
        compiler_params=pltpu.CompilerParams(
            dimension_semantics=("parallel",)),
    )(patches, w_fold, b_fold)


# ------------- fused conv2 + pos-embed + transformer + head kernel ----------

def _fused_sab_kernel(p2_ref, s_ref, w2_ref, b2_ref, dww_ref, dwb_ref,
                      n1g_ref, n1b_ref, qb_ref, hm_ref,
                      wk_ref, wv_ref, wp_ref, bp_ref,
                      n2g_ref, n2b_ref, f1w_ref, f1b_ref, f2w_ref, f2b_ref,
                      hw_ref, hb_ref, o_ref, *, num_heads, num_q):
    # ---- conv2 (+folded BN): (N, Cm*9) x (Cm*9, C), bf16 -> f32 -------------
    x = jnp.dot(p2_ref[0], w2_ref[...],
                preferred_element_type=jnp.float32) + b2_ref[...]
    N, C = x.shape

    # ---- depthwise 3x3 pos-embed: shift-matrix matmul + 9 per-channel FMAs --
    shifted = jnp.dot(s_ref[...], x, preferred_element_type=jnp.float32)  # (9N,C)
    pos = shifted[0:N, :] * dww_ref[0:1, :]
    for k in range(1, 9):
        pos = pos + shifted[k * N:(k + 1) * N, :] * dww_ref[k:k + 1, :]
    xt = x + pos + dwb_ref[...]

    # ---- norm1 + k/v projections (bf16 into MXU, f32 accumulate) ------------
    t = _layernorm(xt, n1g_ref[...], n1b_ref[...]).astype(jnp.bfloat16)
    kmat = jnp.dot(t, wk_ref[...], preferred_element_type=jnp.float32)   # (N, C)
    vmat = jnp.dot(t, wv_ref[...], preferred_element_type=jnp.float32)   # (N, C)

    # ---- query attention: all heads in one masked-query matmul --------------
    # qb already carries the head_dim**-0.5 scale (folded in the wrapper).
    logits = jax.lax.dot_general(
        qb_ref[...], kmat, (((1,), (1,)), ((), ())),
        preferred_element_type=jnp.float32)                              # (nh*10, N)
    logits = logits - jnp.max(logits, axis=-1, keepdims=True)
    e = jnp.exp(logits)
    prob = e * pl.reciprocal(jnp.sum(e, axis=-1, keepdims=True), approx=True)
    ctx = jnp.dot(prob, vmat, preferred_element_type=jnp.float32)        # (nh*10, C)
    attn = ctx[0:num_q, :] * hm_ref[0:1, :]
    for h in range(1, num_heads):
        attn = attn + ctx[h * num_q:(h + 1) * num_q, :] * hm_ref[h:h + 1, :]
    attn = jnp.dot(attn.astype(jnp.bfloat16), wp_ref[...],
                   preferred_element_type=jnp.float32) + bp_ref[...]     # (10, C)

    # ---- norm2 + MLP, residual with attn (matches the PyTorch block) --------
    t2 = _layernorm(attn, n2g_ref[...], n2b_ref[...]).astype(jnp.bfloat16)
    h1 = _gelu(jnp.dot(t2, f1w_ref[...], preferred_element_type=jnp.float32)
               + f1b_ref[...])
    m = jnp.dot(h1.astype(jnp.bfloat16), f2w_ref[...],
                preferred_element_type=jnp.float32) + f2b_ref[...]
    yy = attn + m                                                        # (10, C)

    # ---- fused gamma/color head: row 0 -> gamma linear, rows 1..9 -> color --
    r = jax.lax.dot_general(hw_ref[...], yy, (((1,), (1,)), ((), ())),
                            preferred_element_type=jnp.float32)          # (2, 10)
    tok = jax.lax.broadcasted_iota(jnp.int32, (1, num_q), 1)
    o_ref[0] = jnp.where(tok == 0, r[0:1, :], r[1:2, :]) + hb_ref[...]


def fused_generator_head(p2, shift_mat, params_list, num_heads, num_q=10):
    B, N, K2 = p2.shape
    kernel = functools.partial(_fused_sab_kernel, num_heads=num_heads,
                               num_q=num_q)

    def const(shape):
        return pl.BlockSpec(shape, lambda b: (0, 0))

    in_specs = [pl.BlockSpec((1, N, K2), lambda b: (b, 0, 0)),
                const(shift_mat.shape)]
    in_specs += [const(a.shape) for a in params_list]

    return pl.pallas_call(
        kernel,
        out_shape=jax.ShapeDtypeStruct((B, 1, num_q), jnp.float32),
        grid=(B,),
        in_specs=in_specs,
        out_specs=pl.BlockSpec((1, 1, num_q), lambda b: (b, 0, 0)),
        compiler_params=pltpu.CompilerParams(
            dimension_semantics=("parallel",)),
    )(p2, shift_mat, *params_list)


# ----------------------------- glue ------------------------------------------

def im2col_nhwc(x, ksize=3, stride=1, pad=1):
    B, H, W, C = x.shape
    xp = jnp.pad(x, ((0, 0), (pad, pad), (pad, pad), (0, 0)))
    Ho = (H + 2 * pad - ksize) // stride + 1
    Wo = (W + 2 * pad - ksize) // stride + 1
    cols = []
    for ky in range(ksize):
        for kx in range(ksize):
            cols.append(xp[:, ky:ky + stride * Ho:stride,
                           kx:kx + stride * Wo:stride, :])
    patches = jnp.stack(cols, axis=-1)   # (B, Ho, Wo, C, 9); patch k = ky*3+kx
    return patches, Ho, Wo


def _bn_fold(w, b, m, v):
    scale = w / jnp.sqrt(v + EPS_BN)
    shift = b - m * scale
    return scale.reshape(1, -1), shift.reshape(1, -1)


def _pos_shift_matrix(h2, w2):
    # S[k*N + t, u] = 1  iff token u is the (dy,dx)-shifted neighbour of token t
    # (zero row for out-of-bounds -> encodes the zero padding of the 3x3 dwconv).
    n = h2 * w2
    s = np.zeros((9 * n, n), np.float32)
    for kk in range(9):
        dy, dx = kk // 3 - 1, kk % 3 - 1
        for i in range(h2):
            for j in range(w2):
                si, sj = i + dy, j + dx
                if 0 <= si < h2 and 0 <= sj < w2:
                    s[kk * n + i * w2 + j, si * w2 + sj] = 1.0
    return jnp.asarray(s)


def global_pred_forward(x_nchw, p, num_heads=4):
    x = jnp.transpose(x_nchw, (0, 2, 3, 1)).astype(jnp.float32)   # NCHW -> NHWC
    B = x.shape[0]
    Cin = x.shape[-1]

    # ---- conv1 + BN1 (folded) + GELU: tiled bf16 im2col matmul --------------
    patches1, Ho, Wo = im2col_nhwc(x, stride=2)
    s1, sh1 = _bn_fold(p['bn1_w'], p['bn1_b'], p['bn1_m'], p['bn1_v'])
    w1t = p['conv1_w'].reshape(p['conv1_w'].shape[0], -1).T
    w1f = (w1t * s1).astype(jnp.bfloat16)
    b1f = p['conv1_b'].reshape(1, -1) * s1 + sh1
    # bf16 output: sole consumer is the bf16 conv2 matmul (same effective
    # precision as storing f32 and casting, half the HBM writeback).
    y1 = conv_bn_act(
        patches1.reshape(B * Ho * Wo, Cin * 9).astype(jnp.bfloat16),
        w1f, b1f, apply_gelu=True, out_dtype=jnp.bfloat16)
    x1 = y1.reshape(B, Ho, Wo, -1)

    # ---- everything downstream fused into one per-batch kernel --------------
    Cm = x1.shape[-1]
    C = p['conv2_w'].shape[0]
    patches2, Ho2, Wo2 = im2col_nhwc(x1, stride=2)
    N = Ho2 * Wo2
    p2 = patches2.reshape(B, N, Cm * 9)                           # already bf16

    s2, sh2 = _bn_fold(p['bn2_w'], p['bn2_b'], p['bn2_m'], p['bn2_v'])
    w2t = p['conv2_w'].reshape(C, -1).T
    w2f = (w2t * s2).astype(jnp.bfloat16)
    b2f = p['conv2_b'].reshape(1, -1) * s2 + sh2

    shift_mat = _pos_shift_matrix(Ho2, Wo2)
    dw_w = jnp.transpose(p['dw_w'].reshape(C, 9), (1, 0))         # (9, C)

    hd = C // num_heads
    scale = float(hd) ** -0.5
    head_of = jnp.arange(C) // hd
    # masked per-head queries with the attention scale pre-folded in
    qb = jnp.concatenate(
        [jnp.where(head_of[None, :] == h, p['q'] * scale, 0.0)
         for h in range(num_heads)], axis=0)                      # (nh*10, C)
    hmask = jnp.stack([(head_of == h) for h in range(num_heads)],
                      axis=0).astype(jnp.float32)                 # (nh, C)

    hw = jnp.concatenate([p['gamma_w'], p['color_w']], axis=0)    # (2, C)
    hb = jnp.concatenate([p['gamma_b'],
                          jnp.broadcast_to(p['color_b'], (9,))]).reshape(1, 10)

    bf16 = lambda a: a.astype(jnp.bfloat16)
    params_list = [
        w2f, b2f,
        dw_w, p['dw_b'].reshape(1, C),
        p['n1_g'].reshape(1, C), p['n1_b'].reshape(1, C),
        qb, hmask,
        bf16(p['k_w'].T), bf16(p['v_w'].T),
        bf16(p['proj_w'].T), p['proj_b'].reshape(1, C),
        p['n2_g'].reshape(1, C), p['n2_b'].reshape(1, C),
        bf16(p['fc1_w'].T), p['fc1_b'].reshape(1, -1),
        bf16(p['fc2_w'].T), p['fc2_b'].reshape(1, C),
        hw, hb,
    ]
    head = fused_generator_head(p2, shift_mat, params_list, num_heads)[:, 0, :]
    gamma = head[:, :1] + 1.0                                      # + gamma_base
    color = head[:, 1:].reshape(B, 3, 3) + jnp.eye(3, dtype=jnp.float32)
    return gamma, color


# ----------------------------- deterministic params -------------------------

def init_params(key, in_channels=3, out_channels=64):
    C = out_channels
    Cm = C // 2
    keys = iter(jax.random.split(key, 32))

    def nrm(shape, std=0.02):
        return (std * jax.random.normal(next(keys), shape)).astype(jnp.float32)

    p = {}
    p['conv1_w'] = nrm((Cm, in_channels, 3, 3), 0.1)
    p['conv1_b'] = nrm((Cm,), 0.02)
    p['bn1_w'] = 1.0 + nrm((Cm,), 0.05)
    p['bn1_b'] = nrm((Cm,), 0.05)
    p['bn1_m'] = nrm((Cm,), 0.05)
    p['bn1_v'] = 1.0 + jnp.abs(nrm((Cm,), 0.1))
    p['conv2_w'] = nrm((C, Cm, 3, 3), 0.05)
    p['conv2_b'] = nrm((C,), 0.02)
    p['bn2_w'] = 1.0 + nrm((C,), 0.05)
    p['bn2_b'] = nrm((C,), 0.05)
    p['bn2_m'] = nrm((C,), 0.05)
    p['bn2_v'] = 1.0 + jnp.abs(nrm((C,), 0.1))
    p['dw_w'] = nrm((C, 1, 3, 3), 0.1)
    p['dw_b'] = nrm((C,), 0.02)
    p['n1_g'] = jnp.ones((C,), jnp.float32)
    p['n1_b'] = jnp.zeros((C,), jnp.float32)
    p['q'] = jnp.ones((10, C), jnp.float32)          # nn.Parameter(torch.ones(1,10,dim))
    p['k_w'] = nrm((C, C))
    # NOTE: the original __init__ zero-inits generator.attn.v.weight; a random
    # deterministic init is used here so the attention path is exercised.
    p['v_w'] = nrm((C, C))
    p['proj_w'] = nrm((C, C))
    p['proj_b'] = jnp.zeros((C,), jnp.float32)
    p['n2_g'] = jnp.ones((C,), jnp.float32)
    p['n2_b'] = jnp.zeros((C,), jnp.float32)
    p['fc1_w'] = nrm((4 * C, C))
    p['fc1_b'] = jnp.zeros((4 * C,), jnp.float32)
    p['fc2_w'] = nrm((C, 4 * C))
    p['fc2_b'] = jnp.zeros((C,), jnp.float32)
    p['gamma_w'] = nrm((1, C))
    p['gamma_b'] = jnp.zeros((1,), jnp.float32)
    p['color_w'] = nrm((1, C))
    p['color_b'] = jnp.zeros((1,), jnp.float32)
    return p


# ----------------------------- pure-JAX reference ----------------------------

def ref_forward(x_nchw, p, num_heads=4):
    x = jnp.transpose(x_nchw, (0, 2, 3, 1)).astype(jnp.float32)

    def conv(x, w_oihw, b, stride, groups=1):
        w = jnp.transpose(w_oihw, (2, 3, 1, 0))  # HWIO
        y = jax.lax.conv_general_dilated(
            x, w, window_strides=(stride, stride), padding=((1, 1), (1, 1)),
            dimension_numbers=('NHWC', 'HWIO', 'NHWC'),
            feature_group_count=groups)
        return y + b

    def bn(y, w, b, m, v):
        return (y - m) / jnp.sqrt(v + EPS_BN) * w + b

    y = _gelu(bn(conv(x, p['conv1_w'], p['conv1_b'], 2),
                 p['bn1_w'], p['bn1_b'], p['bn1_m'], p['bn1_v']))
    y = bn(conv(y, p['conv2_w'], p['conv2_b'], 2),
           p['bn2_w'], p['bn2_b'], p['bn2_m'], p['bn2_v'])
    B, H, W, C = y.shape
    pos = conv(y, p['dw_w'], p['dw_b'], 1, groups=C)
    t = (y + pos).reshape(B, H * W, C)

    nh, hd, N = num_heads, C // num_heads, H * W
    t1 = _layernorm(t, p['n1_g'], p['n1_b'])
    k = (t1 @ p['k_w'].T).reshape(B, N, nh, hd).transpose(0, 2, 1, 3)
    v = (t1 @ p['v_w'].T).reshape(B, N, nh, hd).transpose(0, 2, 1, 3)
    q = jnp.broadcast_to(p['q'][None], (B, 10, C)).reshape(B, 10, nh, hd).transpose(0, 2, 1, 3)
    attn = jax.nn.softmax(jnp.einsum('bhqd,bhkd->bhqk', q, k) * (hd ** -0.5), axis=-1)
    o = jnp.einsum('bhqk,bhkd->bhqd', attn, v).transpose(0, 2, 1, 3).reshape(B, 10, C)
    o = o @ p['proj_w'].T + p['proj_b']
    t2 = _layernorm(o, p['n2_g'], p['n2_b'])
    m = _gelu(t2 @ p['fc1_w'].T + p['fc1_b']) @ p['fc2_w'].T + p['fc2_b']
    yy = o + m
    gamma = (yy[:, :1] @ p['gamma_w'].T + p['gamma_b'])[..., 0] + 1.0
    color = (yy[:, 1:] @ p['color_w'].T + p['color_b'])[..., 0].reshape(-1, 3, 3) \
        + jnp.eye(3, dtype=jnp.float32)
    return gamma, color


# ----------------------------- main ------------------------------------------

if __name__ == "__main__":
    key = jax.random.PRNGKey(0)
    pkey, xkey = jax.random.split(key)
    params = init_params(pkey, in_channels=3, out_channels=64)
    x = jax.random.normal(xkey, (2, 3, 16, 16), dtype=jnp.float32)

    fwd = jax.jit(functools.partial(global_pred_forward, num_heads=4))
    gamma, color = fwd(x, params)
    gamma, color = jax.block_until_ready((gamma, color))
    assert gamma.shape == (2, 1) and color.shape == (2, 3, 3)

    g_ref, c_ref = ref_forward(x, params, num_heads=4)
    # bf16 MXU operands (f32 accumulation) vs. an all-f32 reference -> 2e-2 tol.
    np.testing.assert_allclose(np.asarray(gamma), np.asarray(g_ref),
                               atol=2e-2, rtol=2e-2)
    np.testing.assert_allclose(np.asarray(color), np.asarray(c_ref),
                               atol=2e-2, rtol=2e-2)

    print("KERNEL_OK")
</pallas_src>

<mosaic_0001>
module attributes {stable_mosaic.version = 11 : i64} {
  func.func @_conv_mm_kernel(%arg0: i32, %arg1: memref<128x27xbf16, #tpu.memory_space<vmem>>, %arg2: memref<27x32xbf16, #tpu.memory_space<vmem>>, %arg3: memref<1x32xf32, #tpu.memory_space<vmem>>, %arg4: memref<128x32xbf16, #tpu.memory_space<vmem>>) attributes {dimension_semantics = [#tpu.dimension_semantics<parallel>], iteration_bounds = array<i64: 1>, scalar_prefetch = 0 : i64, scratch_operands = 0 : i64, tpu.core_type = #tpu.core_type<tc>, window_params = [{transform_indices = @transform_0, window_bounds = array<i64: 128, 27>}, {pipeline_mode = #tpu.pipeline_mode<synchronous>, transform_indices = @transform_1, window_bounds = array<i64: 27, 32>}, {pipeline_mode = #tpu.pipeline_mode<synchronous>, transform_indices = @transform_2, window_bounds = array<i64: 1, 32>}, {transform_indices = @transform_3, window_bounds = array<i64: 128, 32>}]} {
    %c0 = arith.constant 0 : index
    %c0_0 = arith.constant 0 : index
    %0 = vector.load %arg1[%c0, %c0_0] : memref<128x27xbf16, #tpu.memory_space<vmem>>, vector<128x27xbf16>
    %c0_1 = arith.constant 0 : index
    %c0_2 = arith.constant 0 : index
    %1 = vector.load %arg2[%c0_1, %c0_2] : memref<27x32xbf16, #tpu.memory_space<vmem>>, vector<27x32xbf16>
    %cst = arith.constant dense<0.000000e+00> : vector<128x32xf32>
    %2 = tpu.matmul %0, %1, %cst {dimension_numbers = #tpu.dot_dimension_numbers<[1], [0], [0], [1], [0, 0, 1, 1], [], []>} : vector<128x27xbf16>, vector<27x32xbf16>, vector<128x32xf32> -> vector<128x32xf32>
    %c0_3 = arith.constant 0 : index
    %c0_4 = arith.constant 0 : index
    %3 = vector.load %arg3[%c0_3, %c0_4] : memref<1x32xf32, #tpu.memory_space<vmem>>, vector<1x32xf32>
    %4 = vector.broadcast %3 : vector<1x32xf32> to vector<128x32xf32>
    %5 = arith.addf %2, %4 : vector<128x32xf32>
    %cst_5 = arith.constant 5.000000e-01 : f32
    %6 = vector.broadcast %cst_5 : f32 to vector<128x32xf32>
    %7 = arith.mulf %6, %5 : vector<128x32xf32>
    %cst_6 = arith.constant 0.707106769 : f32
    %8 = vector.broadcast %cst_6 : f32 to vector<128x32xf32>
    %9 = arith.mulf %5, %8 : vector<128x32xf32>
    %cst_7 = arith.constant 0.000000e+00 : f32
    %10 = vector.broadcast %cst_7 : f32 to vector<128x32xf32>
    %11 = arith.cmpf oge, %9, %10 : vector<128x32xf32>
    %cst_8 = arith.constant 1.000000e+00 : f32
    %cst_9 = arith.constant -1.000000e+00 : f32
    %12 = vector.broadcast %cst_8 : f32 to vector<128x32xf32>
    %13 = vector.broadcast %cst_9 : f32 to vector<128x32xf32>
    %14 = arith.select %11, %12, %13 : vector<128x32xi1>, vector<128x32xf32>
    %15 = math.absf %9 : vector<128x32xf32>
    %cst_10 = arith.constant 0.327591091 : f32
    %16 = vector.broadcast %cst_10 : f32 to vector<128x32xf32>
    %17 = arith.mulf %16, %15 : vector<128x32xf32>
    %cst_11 = arith.constant 1.000000e+00 : f32
    %18 = vector.broadcast %cst_11 : f32 to vector<128x32xf32>
    %19 = arith.addf %18, %17 : vector<128x32xf32>
    %cst_12 = arith.constant 1.000000e+00 : f32
    %20 = vector.broadcast %cst_12 : f32 to vector<128x32xf32>
    %21 = arith.divf %20, %19 : vector<128x32xf32>
    %cst_13 = arith.constant 1.06140542 : f32
    %22 = vector.broadcast %cst_13 : f32 to vector<128x32xf32>
    %23 = arith.mulf %22, %21 : vector<128x32xf32>
    %cst_14 = arith.constant -1.45315206 : f32
    %24 = vector.broadcast %cst_14 : f32 to vector<128x32xf32>
    %25 = arith.addf %23, %24 : vector<128x32xf32>
    %26 = arith.mulf %25, %21 : vector<128x32xf32>
    %cst_15 = arith.constant 1.42141378 : f32
    %27 = vector.broadcast %cst_15 : f32 to vector<128x32xf32>
    %28 = arith.addf %26, %27 : vector<128x32xf32>
    %29 = arith.mulf %28, %21 : vector<128x32xf32>
    %cst_16 = arith.constant -0.284496725 : f32
    %30 = vector.broadcast %cst_16 : f32 to vector<128x32xf32>
    %31 = arith.addf %29, %30 : vector<128x32xf32>
    %32 = arith.mulf %31, %21 : vector<128x32xf32>
    %cst_17 = arith.constant 0.254829586 : f32
    %33 = vector.broadcast %cst_17 : f32 to vector<128x32xf32>
    %34 = arith.addf %32, %33 : vector<128x32xf32>
    %35 = arith.mulf %34, %21 : vector<128x32xf32>
    %cst_18 = arith.constant 0.000000e+00 : f32
    %36 = vector.broadcast %cst_18 : f32 to vector<128x32xf32>
    %37 = arith.subf %36, %15 : vector<128x32xf32>
    %38 = arith.mulf %37, %15 : vector<128x32xf32>
    %39 = math.exp %38 : vector<128x32xf32>
    %40 = arith.mulf %35, %39 : vector<128x32xf32>
    %cst_19 = arith.constant 1.000000e+00 : f32
    %41 = vector.broadcast %cst_19 : f32 to vector<128x32xf32>
    %42 = arith.subf %41, %40 : vector<128x32xf32>
    %43 = arith.mulf %14, %42 : vector<128x32xf32>
    %cst_20 = arith.constant 1.000000e+00 : f32
    %44 = vector.broadcast %cst_20 : f32 to vector<128x32xf32>
    %45 = arith.addf %44, %43 : vector<128x32xf32>
    %46 = arith.mulf %7, %45 : vector<128x32xf32>
    %47 = arith.truncf %46 : vector<128x32xf32> to vector<128x32xbf16>
    %c0_21 = arith.constant 0 : index
    %c0_22 = arith.constant 0 : index
    %48 = vector.load %arg4[%c0_21, %c0_22] : memref<128x32xbf16, #tpu.memory_space<vmem>>, vector<128x32xbf16>
    tpu.vector_store %arg4[%c0_21, %c0_22], %47 {strides = array<i32>} : memref<128x32xbf16, #tpu.memory_space<vmem>>, vector<128x32xbf16>,
    return
  }
  func.func @transform_0(%arg0: i32) -> (i32, i32) {
    %c0_i32 = arith.constant 0 : i32
    %c0_i32_0 = arith.constant 0 : i32
    return %arg0, %c0_i32 : i32, i32
  }
  func.func @transform_1(%arg0: i32) -> (i32, i32) {
    %c0_i32 = arith.constant 0 : i32
    %c0_i32_0 = arith.constant 0 : i32
    %c0_i32_1 = arith.constant 0 : i32
    return %c0_i32, %c0_i32_0 : i32, i32
  }
  func.func @transform_2(%arg0: i32) -> (i32, i32) {
    %c0_i32 = arith.constant 0 : i32
    %c0_i32_0 = arith.constant 0 : i32
    %c0_i32_1 = arith.constant 0 : i32
    return %c0_i32, %c0_i32_0 : i32, i32
  }
  func.func @transform_3(%arg0: i32) -> (i32, i32) {
    %c0_i32 = arith.constant 0 : i32
    %c0_i32_0 = arith.constant 0 : i32
    return %arg0, %c0_i32 : i32, i32
  }
}

module attributes {stable_mosaic.version = 11 : i64} {
  func.func @_fused_sab_kernel(%arg0: i32, %arg1: memref<1x16x288xbf16, #tpu.memory_space<vmem>>, %arg2: memref<144x16xf32, #tpu.memory_space<vmem>>, %arg3: memref<288x64xbf16, #tpu.memory_space<vmem>>, %arg4: memref<1x64xf32, #tpu.memory_space<vmem>>, %arg5: memref<9x64xf32, #tpu.memory_space<vmem>>, %arg6: memref<1x64xf32, #tpu.memory_space<vmem>>, %arg7: memref<1x64xf32, #tpu.memory_space<vmem>>, %arg8: memref<1x64xf32, #tpu.memory_space<vmem>>, %arg9: memref<40x64xf32, #tpu.memory_space<vmem>>, %arg10: memref<4x64xf32, #tpu.memory_space<vmem>>, %arg11: memref<64x64xbf16, #tpu.memory_space<vmem>>, %arg12: memref<64x64xbf16, #tpu.memory_space<vmem>>, %arg13: memref<64x64xbf16, #tpu.memory_space<vmem>>, %arg14: memref<1x64xf32, #tpu.memory_space<vmem>>, %arg15: memref<1x64xf32, #tpu.memory_space<vmem>>, %arg16: memref<1x64xf32, #tpu.memory_space<vmem>>, %arg17: memref<64x256xbf16, #tpu.memory_space<vmem>>, %arg18: memref<1x256xf32, #tpu.memory_space<vmem>>, %arg19: memref<256x64xbf16, #tpu.memory_space<vmem>>, %arg20: memref<1x64xf32, #tpu.memory_space<vmem>>, %arg21: memref<2x64xf32, #tpu.memory_space<vmem>>, %arg22: memref<1x10xf32, #tpu.memory_space<vmem>>, %arg23: memref<1x1x10xf32, #tpu.memory_space<vmem>>) attributes {dimension_semantics = [#tpu.dimension_semantics<parallel>], iteration_bounds = array<i64: 2>, scalar_prefetch = 0 : i64, scratch_operands = 0 : i64, tpu.core_type = #tpu.core_type<tc>, window_params = [{transform_indices = @transform_0, window_bounds = array<i64: 1, 16, 288>}, {pipeline_mode = #tpu.pipeline_mode<synchronous>, transform_indices = @transform_1, window_bounds = array<i64: 144, 16>}, {pipeline_mode = #tpu.pipeline_mode<synchronous>, transform_indices = @transform_2, window_bounds = array<i64: 288, 64>}, {pipeline_mode = #tpu.pipeline_mode<synchronous>, transform_indices = @transform_3, window_bounds = array<i64: 1, 64>}, {pipeline_mode = #tpu.pipeline_mode<synchronous>, transform_indices = @transform_4, window_bounds = array<i64: 9, 64>}, {pipeline_mode = #tpu.pipeline_mode<synchronous>, transform_indices = @transform_5, window_bounds = array<i64: 1, 64>}, {pipeline_mode = #tpu.pipeline_mode<synchronous>, transform_indices = @transform_6, window_bounds = array<i64: 1, 64>}, {pipeline_mode = #tpu.pipeline_mode<synchronous>, transform_indices = @transform_7, window_bounds = array<i64: 1, 64>}, {pipeline_mode = #tpu.pipeline_mode<synchronous>, transform_indices = @transform_8, window_bounds = array<i64: 40, 64>}, {pipeline_mode = #tpu.pipeline_mode<synchronous>, transform_indices = @transform_9, window_bounds = array<i64: 4, 64>}, {pipeline_mode = #tpu.pipeline_mode<synchronous>, transform_indices = @transform_10, window_bounds = array<i64: 64, 64>}, {pipeline_mode = #tpu.pipeline_mode<synchronous>, transform_indices = @transform_11, window_bounds = array<i64: 64, 64>}, {pipeline_mode = #tpu.pipeline_mode<synchronous>, transform_indices = @transform_12, window_bounds = array<i64: 64, 64>}, {pipeline_mode = #tpu.pipeline_mode<synchronous>, transform_indices = @transform_13, window_bounds = array<i64: 1, 64>}, {pipeline_mode = #tpu.pipeline_mode<synchronous>, transform_indices = @transform_14, window_bounds = array<i64: 1, 64>}, {pipeline_mode = #tpu.pipeline_mode<synchronous>, transform_indices = @transform_15, window_bounds = array<i64: 1, 64>}, {pipeline_mode = #tpu.pipeline_mode<synchronous>, transform_indices = @transform_16, window_bounds = array<i64: 64, 256>}, {pipeline_mode = #tpu.pipeline_mode<synchronous>, transform_indices = @transform_17, window_bounds = array<i64: 1, 256>}, {pipeline_mode = #tpu.pipeline_mode<synchronous>, transform_indices = @transform_18, window_bounds = array<i64: 256, 64>}, {pipeline_mode = #tpu.pipeline_mode<synchronous>, transform_indices = @transform_19, window_bounds = array<i64: 1, 64>}, {pipeline_mode = #tpu.pipeline_mode<synchronous>, transform_indices = @transform_20, window_bounds = array<i64: 2, 64>}, {pipeline_mode = #tpu.pipeline_mode<synchronous>, transform_indices = @transform_21, window_bounds = array<i64: 1, 10>}, {transform_indices = @transform_22, window_bounds = array<i64: 1, 1, 10>}]} {
    %c0 = arith.constant 0 : index
    %c0_0 = arith.constant 0 : index
    %c0_1 = arith.constant 0 : index
    %0 = vector.load %arg1[%c0, %c0_0, %c0_1] : memref<1x16x288xbf16, #tpu.memory_space<vmem>>, vector<1x16x288xbf16>
    %1 = vector.shape_cast %0 : vector<1x16x288xbf16> to vector<16x288xbf16>
    %c0_2 = arith.constant 0 : index
    %c0_3 = arith.constant 0 : index
    %2 = vector.load %arg3[%c0_2, %c0_3] : memref<288x64xbf16, #tpu.memory_space<vmem>>, vector<288x64xbf16>
    %cst = arith.constant dense<0.000000e+00> : vector<16x64xf32>
    %3 = tpu.matmul %1, %2, %cst {dimension_numbers = #tpu.dot_dimension_numbers<[1], [0], [0], [1], [0, 0, 1, 1], [], []>} : vector<16x288xbf16>, vector<288x64xbf16>, vector<16x64xf32> -> vector<16x64xf32>
    %c0_4 = arith.constant 0 : index
    %c0_5 = arith.constant 0 : index
    %4 = vector.load %arg4[%c0_4, %c0_5] : memref<1x64xf32, #tpu.memory_space<vmem>>, vector<1x64xf32>
    %5 = vector.broadcast %4 : vector<1x64xf32> to vector<16x64xf32>
    %6 = arith.addf %3, %5 : vector<16x64xf32>
    %c0_6 = arith.constant 0 : index
    %c0_7 = arith.constant 0 : index
    %7 = vector.load %arg2[%c0_6, %c0_7] : memref<144x16xf32, #tpu.memory_space<vmem>>, vector<144x16xf32>
    %cst_8 = arith.constant dense<0.000000e+00> : vector<144x64xf32>
    %8 = tpu.matmul %7, %6, %cst_8 {dimension_numbers = #tpu.dot_dimension_numbers<[1], [0], [0], [1], [0, 0, 1, 1], [], []>} : vector<144x16xf32>, vector<16x64xf32>, vector<144x64xf32> -> vector<144x64xf32>
    %9 = vector.extract_strided_slice %8 {offsets = [0, 0], sizes = [16, 64], strides = [1, 1]} : vector<144x64xf32> to vector<16x64xf32>
    %c0_9 = arith.constant 0 : index
    %c0_10 = arith.constant 0 : index
    %10 = vector.load %arg5[%c0_9, %c0_10] : memref<9x64xf32, #tpu.memory_space<vmem>>, vector<1x64xf32>
    %11 = vector.broadcast %10 : vector<1x64xf32> to vector<16x64xf32>
    %12 = arith.mulf %9, %11 : vector<16x64xf32>
    %13 = vector.extract_strided_slice %8 {offsets = [16, 0], sizes = [16, 64], strides = [1, 1]} : vector<144x64xf32> to vector<16x64xf32>
    %c1 = arith.constant 1 : index
    %c0_11 = arith.constant 0 : index
    %14 = vector.load %arg5[%c1, %c0_11] : memref<9x64xf32, #tpu.memory_space<vmem>>, vector<1x64xf32>
    %15 = vector.broadcast %14 : vector<1x64xf32> to vector<16x64xf32>
    %16 = arith.mulf %13, %15 : vector<16x64xf32>
    %17 = arith.addf %12, %16 : vector<16x64xf32>
    %18 = vector.extract_strided_slice %8 {offsets = [32, 0], sizes = [16, 64], strides = [1, 1]} : vector<144x64xf32> to vector<16x64xf32>
    %c2 = arith.constant 2 : index
    %c0_12 = arith.constant 0 : index
    %19 = vector.load %arg5[%c2, %c0_12] : memref<9x64xf32, #tpu.memory_space<vmem>>, vector<1x64xf32>
    %20 = vector.broadcast %19 : vector<1x64xf32> to vector<16x64xf32>
    %21 = arith.mulf %18, %20 : vector<16x64xf32>
    %22 = arith.addf %17, %21 : vector<16x64xf32>
    %23 = vector.extract_strided_slice %8 {offsets = [48, 0], sizes = [16, 64], strides = [1, 1]} : vector<144x64xf32> to vector<16x64xf32>
    %c3 = arith.constant 3 : index
    %c0_13 = arith.constant 0 : index
    %24 = vector.load %arg5[%c3, %c0_13] : memref<9x64xf32, #tpu.memory_space<vmem>>, vector<1x64xf32>
    %25 = vector.broadcast %24 : vector<1x64xf32> to vector<16x64xf32>
    %26 = arith.mulf %23, %25 : vector<16x64xf32>
    %27 = arith.addf %22, %26 : vector<16x64xf32>
    %28 = vector.extract_strided_slice %8 {offsets = [64, 0], sizes = [16, 64], strides = [1, 1]} : vector<144x64xf32> to vector<16x64xf32>
    %c4 = arith.constant 4 : index
    %c0_14 = arith.constant 0 : index
    %29 = vector.load %arg5[%c4, %c0_14] : memref<9x64xf32, #tpu.memory_space<vmem>>, vector<1x64xf32>
    %30 = vector.broadcast %29 : vector<1x64xf32> to vector<16x64xf32>
    %31 = arith.mulf %28, %30 : vector<16x64xf32>
    %32 = arith.addf %27, %31 : vector<16x64xf32>
    %33 = vector.extract_strided_slice %8 {offsets = [80, 0], sizes = [16, 64], strides = [1, 1]} : vector<144x64xf32> to vector<16x64xf32>
    %c5 = arith.constant 5 : index
    %c0_15 = arith.constant 0 : index
    %34 = vector.load %arg5[%c5, %c0_15] : memref<9x64xf32, #tpu.memory_space<vmem>>, vector<1x64xf32>
    %35 = vector.broadcast %34 : vector<1x64xf32> to vector<16x64xf32>
    %36 = arith.mulf %33, %35 : vector<16x64xf32>
    %37 = arith.addf %32, %36 : vector<16x64xf32>
    %38 = vector.extract_strided_slice %8 {offsets = [96, 0], sizes = [16, 64], strides = [1, 1]} : vector<144x64xf32> to vector<16x64xf32>
    %c6 = arith.constant 6 : index
    %c0_16 = arith.constant 0 : index
    %39 = vector.load %arg5[%c6, %c0_16] : memref<9x64xf32, #tpu.memory_space<vmem>>, vector<1x64xf32>
    %40 = vector.broadcast %39 : vector<1x64xf32> to vector<16x64xf32>
    %41 = arith.mulf %38, %40 : vector<16x64xf32>
    %42 = arith.addf %37, %41 : vector<16x64xf32>
    %43 = vector.extract_strided_slice %8 {offsets = [112, 0], sizes = [16, 64], strides = [1, 1]} : vector<144x64xf32> to vector<16x64xf32>
    %c7 = arith.constant 7 : index
    %c0_17 = arith.constant 0 : index
    %44 = vector.load %arg5[%c7, %c0_17] : memref<9x64xf32, #tpu.memory_space<vmem>>, vector<1x64xf32>
    %45 = vector.broadcast %44 : vector<1x64xf32> to vector<16x64xf32>
    %46 = arith.mulf %43, %45 : vector<16x64xf32>
    %47 = arith.addf %42, %46 : vector<16x64xf32>
    %48 = vector.extract_strided_slice %8 {offsets = [128, 0], sizes = [16, 64], strides = [1, 1]} : vector<144x64xf32> to vector<16x64xf32>
    %c8 = arith.constant 8 : index
    %c0_18 = arith.constant 0 : index
    %49 = vector.load %arg5[%c8, %c0_18] : memref<9x64xf32, #tpu.memory_space<vmem>>, vector<1x64xf32>
    %50 = vector.broadcast %49 : vector<1x64xf32> to vector<16x64xf32>
    %51 = arith.mulf %48, %50 : vector<16x64xf32>
    %52 = arith.addf %47, %51 : vector<16x64xf32>
    %53 = arith.addf %6, %52 : vector<16x64xf32>
    %c0_19 = arith.constant 0 : index
    %c0_20 = arith.constant 0 : index
    %54 = vector.load %arg6[%c0_19, %c0_20] : memref<1x64xf32, #tpu.memory_space<vmem>>, vector<1x64xf32>
    %55 = vector.broadcast %54 : vector<1x64xf32> to vector<16x64xf32>
    %56 = arith.addf %53, %55 : vector<16x64xf32>
    %c0_21 = arith.constant 0 : index
    %c0_22 = arith.constant 0 : index
    %57 = vector.load %arg7[%c0_21, %c0_22] : memref<1x64xf32, #tpu.memory_space<vmem>>, vector<1x64xf32>
    %c0_23 = arith.constant 0 : index
    %c0_24 = arith.constant 0 : index
    %58 = vector.load %arg8[%c0_23, %c0_24] : memref<1x64xf32, #tpu.memory_space<vmem>>, vector<1x64xf32>
    %cst_25 = arith.constant dense<0.000000e+00> : vector<16xf32>
    %59 = vector.multi_reduction <add>, %56, %cst_25 [1] : vector<16x64xf32> to vector<16xf32>
    %60 = vector.shape_cast %59 : vector<16xf32> to vector<16x1xf32>
    %cst_26 = arith.constant 6.400000e+01 : f32
    %61 = vector.broadcast %cst_26 : f32 to vector<16x1xf32>
    %62 = arith.divf %60, %61 : vector<16x1xf32>
    %63 = vector.broadcast %62 : vector<16x1xf32> to vector<16x64xf32>
    %64 = arith.subf %56, %63 : vector<16x64xf32>
    %65 = arith.mulf %64, %64 : vector<16x64xf32>
    %cst_27 = arith.constant dense<0.000000e+00> : vector<16xf32>
    %66 = vector.multi_reduction <add>, %65, %cst_27 [1] : vector<16x64xf32> to vector<16xf32>
    %67 = vector.shape_cast %66 : vector<16xf32> to vector<16x1xf32>
    %cst_28 = arith.constant 6.400000e+01 : f32
    %68 = vector.broadcast %cst_28 : f32 to vector<16x1xf32>
    %69 = arith.divf %67, %68 : vector<16x1xf32>
    %70 = vector.broadcast %62 : vector<16x1xf32> to vector<16x64xf32>
    %71 = arith.subf %56, %70 : vector<16x64xf32>
    %cst_29 = arith.constant 9.99999974E-6 : f32
    %72 = vector.broadcast %cst_29 : f32 to vector<16x1xf32>
    %73 = arith.addf %69, %72 : vector<16x1xf32>
    %74 = math.rsqrt %73 : vector<16x1xf32>
    %75 = vector.broadcast %74 : vector<16x1xf32> to vector<16x64xf32>
    %76 = arith.mulf %71, %75 : vector<16x64xf32>
    %77 = vector.broadcast %57 : vector<1x64xf32> to vector<16x64xf32>
    %78 = arith.mulf %76, %77 : vector<16x64xf32>
    %79 = vector.broadcast %58 : vector<1x64xf32> to vector<16x64xf32>
    %80 = arith.addf %78, %79 : vector<16x64xf32>
    %81 = arith.truncf %80 : vector<16x64xf32> to vector<16x64xbf16>
    %c0_30 = arith.constant 0 : index
    %c0_31 = arith.constant 0 : index
    %82 = vector.load %arg11[%c0_30, %c0_31] : memref<64x64xbf16, #tpu.memory_space<vmem>>, vector<64x64xbf16>
    %cst_32 = arith.constant dense<0.000000e+00> : vector<16x64xf32>
    %83 = tpu.matmul %81, %82, %cst_32 {dimension_numbers = #tpu.dot_dimension_numbers<[1], [0], [0], [1], [0, 0, 1, 1], [], []>} : vector<16x64xbf16>, vector<64x64xbf16>, vector<16x64xf32> -> vector<16x64xf32>
    %c0_33 = arith.constant 0 : index
    %c0_34 = arith.constant 0 : index
    %84 = vector.load %arg12[%c0_33, %c0_34] : memref<64x64xbf16, #tpu.memory_space<vmem>>, vector<64x64xbf16>
    %cst_35 = arith.constant dense<0.000000e+00> : vector<16x64xf32>
    %85 = tpu.matmul %81, %84, %cst_35 {dimension_numbers = #tpu.dot_dimension_numbers<[1], [0], [0], [1], [0, 0, 1, 1], [], []>} : vector<16x64xbf16>, vector<64x64xbf16>, vector<16x64xf32> -> vector<16x64xf32>
    %c0_36 = arith.constant 0 : index
    %c0_37 = arith.constant 0 : index
    %86 = vector.load %arg9[%c0_36, %c0_37] : memref<40x64xf32, #tpu.memory_space<vmem>>, vector<40x64xf32>
    %cst_38 = arith.constant dense<0.000000e+00> : vector<40x16xf32>
    %87 = tpu.matmul %86, %83, %cst_38 {dimension_numbers = #tpu.dot_dimension_numbers<[1], [1], [0], [0], [0, 0, 1, 0], [], []>} : vector<40x64xf32>, vector<16x64xf32>, vector<40x16xf32> -> vector<40x16xf32>
    %cst_39 = arith.constant dense<0xFF800000> : vector<40xf32>
    %88 = vector.multi_reduction <maximumf>, %87, %cst_39 [1] : vector<40x16xf32> to vector<40xf32>
    %89 = vector.shape_cast %88 : vector<40xf32> to vector<40x1xf32>
    %90 = vector.broadcast %89 : vector<40x1xf32> to vector<40x16xf32>
    %91 = arith.subf %87, %90 : vector<40x16xf32>
    %92 = math.exp %91 : vector<40x16xf32>
    %cst_40 = arith.constant dense<0.000000e+00> : vector<40xf32>
    %93 = vector.multi_reduction <add>, %92, %cst_40 [1] : vector<40x16xf32> to vector<40xf32>
    %94 = vector.shape_cast %93 : vector<40xf32> to vector<40x1xf32>
    %95 = tpu.reciprocal %94 {approx = true} : vector<40x1xf32> -> vector<40x1xf32>
    %96 = vector.broadcast %95 : vector<40x1xf32> to vector<40x16xf32>
    %97 = arith.mulf %92, %96 : vector<40x16xf32>
    %cst_41 = arith.constant dense<0.000000e+00> : vector<40x64xf32>
    %98 = tpu.matmul %97, %85, %cst_41 {dimension_numbers = #tpu.dot_dimension_numbers<[1], [0], [0], [1], [0, 0, 1, 1], [], []>} : vector<40x16xf32>, vector<16x64xf32>, vector<40x64xf32> -> vector<40x64xf32>
    %99 = vector.extract_strided_slice %98 {offsets = [0, 0], sizes = [10, 64], strides = [1, 1]} : vector<40x64xf32> to vector<10x64xf32>
    %c0_42 = arith.constant 0 : index
    %c0_43 = arith.constant 0 : index
    %100 = vector.load %arg10[%c0_42, %c0_43] : memref<4x64xf32, #tpu.memory_space<vmem>>, vector<1x64xf32>
    %101 = vector.broadcast %100 : vector<1x64xf32> to vector<10x64xf32>
    %102 = arith.mulf %99, %101 : vector<10x64xf32>
    %103 = vector.extract_strided_slice %98 {offsets = [10, 0], sizes = [10, 64], strides = [1, 1]} : vector<40x64xf32> to vector<10x64xf32>
    %c1_44 = arith.constant 1 : index
    %c0_45 = arith.constant 0 : index
    %104 = vector.load %arg10[%c1_44, %c0_45] : memref<4x64xf32, #tpu.memory_space<vmem>>, vector<1x64xf32>
    %105 = vector.broadcast %104 : vector<1x64xf32> to vector<10x64xf32>
    %106 = arith.mulf %103, %105 : vector<10x64xf32>
    %107 = arith.addf %102, %106 : vector<10x64xf32>
    %108 = vector.extract_strided_slice %98 {offsets = [20, 0], sizes = [10, 64], strides = [1, 1]} : vector<40x64xf32> to vector<10x64xf32>
    %c2_46 = arith.constant 2 : index
    %c0_47 = arith.constant 0 : index
    %109 = vector.load %arg10[%c2_46, %c0_47] : memref<4x64xf32, #tpu.memory_space<vmem>>, vector<1x64xf32>
    %110 = vector.broadcast %109 : vector<1x64xf32> to vector<10x64xf32>
    %111 = arith.mulf %108, %110 : vector<10x64xf32>
    %112 = arith.addf %107, %111 : vector<10x64xf32>
    %113 = vector.extract_strided_slice %98 {offsets = [30, 0], sizes = [10, 64], strides = [1, 1]} : vector<40x64xf32> to vector<10x64xf32>
    %c3_48 = arith.constant 3 : index
    %c0_49 = arith.constant 0 : index
    %114 = vector.load %arg10[%c3_48, %c0_49] : memref<4x64xf32, #tpu.memory_space<vmem>>, vector<1x64xf32>
    %115 = vector.broadcast %114 : vector<1x64xf32> to vector<10x64xf32>
    %116 = arith.mulf %113, %115 : vector<10x64xf32>
    %117 = arith.addf %112, %116 : vector<10x64xf32>
    %118 = arith.truncf %117 : vector<10x64xf32> to vector<10x64xbf16>
    %c0_50 = arith.constant 0 : index
    %c0_51 = arith.constant 0 : index
    %119 = vector.load %arg13[%c0_50, %c0_51] : memref<64x64xbf16, #tpu.memory_space<vmem>>, vector<64x64xbf16>
    %cst_52 = arith.constant dense<0.000000e+00> : vector<10x64xf32>
    %120 = tpu.matmul %118, %119, %cst_52 {dimension_numbers = #tpu.dot_dimension_numbers<[1], [0], [0], [1], [0, 0, 1, 1], [], []>} : vector<10x64xbf16>, vector<64x64xbf16>, vector<10x64xf32> -> vector<10x64xf32>
    %c0_53 = arith.constant 0 : index
    %c0_54 = arith.constant 0 : index
    %121 = vector.load %arg14[%c0_53, %c0_54] : memref<1x64xf32, #tpu.memory_space<vmem>>, vector<1x64xf32>
    %122 = vector.broadcast %121 : vector<1x64xf32> to vector<10x64xf32>
    %123 = arith.addf %120, %122 : vector<10x64xf32>
    %c0_55 = arith.constant 0 : index
    %c0_56 = arith.constant 0 : index
    %124 = vector.load %arg15[%c0_55, %c0_56] : memref<1x64xf32, #tpu.memory_space<vmem>>, vector<1x64xf32>
    %c0_57 = arith.constant 0 : index
    %c0_58 = arith.constant 0 : index
    %125 = vector.load %arg16[%c0_57, %c0_58] : memref<1x64xf32, #tpu.memory_space<vmem>>, vector<1x64xf32>
    %cst_59 = arith.constant dense<0.000000e+00> : vector<10xf32>
    %126 = vector.multi_reduction <add>, %123, %cst_59 [1] : vector<10x64xf32> to vector<10xf32>
    %127 = vector.shape_cast %126 : vector<10xf32> to vector<10x1xf32>
    %cst_60 = arith.constant 6.400000e+01 : f32
    %128 = vector.broadcast %cst_60 : f32 to vector<10x1xf32>
    %129 = arith.divf %127, %128 : vector<10x1xf32>
    %130 = vector.broadcast %129 : vector<10x1xf32> to vector<10x64xf32>
    %131 = arith.subf %123, %130 : vector<10x64xf32>
    %132 = arith.mulf %131, %131 : vector<10x64xf32>
    %cst_61 = arith.constant dense<0.000000e+00> : vector<10xf32>
    %133 = vector.multi_reduction <add>, %132, %cst_61 [1] : vector<10x64xf32> to vector<10xf32>
    %134 = vector.shape_cast %133 : vector<10xf32> to vector<10x1xf32>
    %cst_62 = arith.constant 6.400000e+01 : f32
    %135 = vector.broadcast %cst_62 : f32 to vector<10x1xf32>
    %136 = arith.divf %134, %135 : vector<10x1xf32>
    %137 = vector.broadcast %129 : vector<10x1xf32> to vector<10x64xf32>
    %138 = arith.subf %123, %137 : vector<10x64xf32>
    %cst_63 = arith.constant 9.99999974E-6 : f32
    %139 = vector.broadcast %cst_63 : f32 to vector<10x1xf32>
    %140 = arith.addf %136, %139 : vector<10x1xf32>
    %141 = math.rsqrt %140 : vector<10x1xf32>
    %142 = vector.broadcast %141 : vector<10x1xf32> to vector<10x64xf32>
    %143 = arith.mulf %138, %142 : vector<10x64xf32>
    %144 = vector.broadcast %124 : vector<1x64xf32> to vector<10x64xf32>
    %145 = arith.mulf %143, %144 : vector<10x64xf32>
    %146 = vector.broadcast %125 : vector<1x64xf32> to vector<10x64xf32>
    %147 = arith.addf %145, %146 : vector<10x64xf32>
    %148 = arith.truncf %147 : vector<10x64xf32> to vector<10x64xbf16>
    %c0_64 = arith.constant 0 : index
    %c0_65 = arith.constant 0 : index
    %149 = vector.load %arg17[%c0_64, %c0_65] : memref<64x256xbf16, #tpu.memory_space<vmem>>, vector<64x256xbf16>
    %cst_66 = arith.constant dense<0.000000e+00> : vector<10x256xf32>
    %150 = tpu.matmul %148, %149, %cst_66 {dimension_numbers = #tpu.dot_dimension_numbers<[1], [0], [0], [1], [0, 0, 1, 1], [], []>} : vector<10x64xbf16>, vector<64x256xbf16>, vector<10x256xf32> -> vector<10x256xf32>
    %c0_67 = arith.constant 0 : index
    %c0_68 = arith.constant 0 : index
    %151 = vector.load %arg18[%c0_67, %c0_68] : memref<1x256xf32, #tpu.memory_space<vmem>>, vector<1x256xf32>
    %152 = vector.broadcast %151 : vector<1x256xf32> to vector<10x256xf32>
    %153 = arith.addf %150, %152 : vector<10x256xf32>
    %cst_69 = arith.constant 5.000000e-01 : f32
    %154 = vector.broadcast %cst_69 : f32 to vector<10x256xf32>
    %155 = arith.mulf %154, %153 : vector<10x256xf32>
    %cst_70 = arith.constant 0.707106769 : f32
    %156 = vector.broadcast %cst_70 : f32 to vector<10x256xf32>
    %157 = arith.mulf %153, %156 : vector<10x256xf32>
    %cst_71 = arith.constant 0.000000e+00 : f32
    %158 = vector.broadcast %cst_71 : f32 to vector<10x256xf32>
    %159 = arith.cmpf oge, %157, %158 : vector<10x256xf32>
    %cst_72 = arith.constant 1.000000e+00 : f32
    %cst_73 = arith.constant -1.000000e+00 : f32
    %160 = vector.broadcast %cst_72 : f32 to vector<10x256xf32>
    %161 = vector.broadcast %cst_73 : f32 to vector<10x256xf32>
    %162 = arith.select %159, %160, %161 : vector<10x256xi1>, vector<10x256xf32>
    %163 = math.absf %157 : vector<10x256xf32>
    %cst_74 = arith.constant 0.327591091 : f32
    %164 = vector.broadcast %cst_74 : f32 to vector<10x256xf32>
    %165 = arith.mulf %164, %163 : vector<10x256xf32>
    %cst_75 = arith.constant 1.000000e+00 : f32
    %166 = vector.broadcast %cst_75 : f32 to vector<10x256xf32>
    %167 = arith.addf %166, %165 : vector<10x256xf32>
    %cst_76 = arith.constant 1.000000e+00 : f32
    %168 = vector.broadcast %cst_76 : f32 to vector<10x256xf32>
    %169 = arith.divf %168, %167 : vector<10x256xf32>
    %cst_77 = arith.constant 1.06140542 : f32
    %170 = vector.broadcast %cst_77 : f32 to vector<10x256xf32>
    %171 = arith.mulf %170, %169 : vector<10x256xf32>
    %cst_78 = arith.constant -1.45315206 : f32
    %172 = vector.broadcast %cst_78 : f32 to vector<10x256xf32>
    %173 = arith.addf %171, %172 : vector<10x256xf32>
    %174 = arith.mulf %173, %169 : vector<10x256xf32>
    %cst_79 = arith.constant 1.42141378 : f32
    %175 = vector.broadcast %cst_79 : f32 to vector<10x256xf32>
    %176 = arith.addf %174, %175 : vector<10x256xf32>
    %177 = arith.mulf %176, %169 : vector<10x256xf32>
    %cst_80 = arith.constant -0.284496725 : f32
    %178 = vector.broadcast %cst_80 : f32 to vector<10x256xf32>
    %179 = arith.addf %177, %178 : vector<10x256xf32>
    %180 = arith.mulf %179, %169 : vector<10x256xf32>
    %cst_81 = arith.constant 0.254829586 : f32
    %181 = vector.broadcast %cst_81 : f32 to vector<10x256xf32>
    %182 = arith.addf %180, %181 : vector<10x256xf32>
    %183 = arith.mulf %182, %169 : vector<10x256xf32>
    %cst_82 = arith.constant 0.000000e+00 : f32
    %184 = vector.broadcast %cst_82 : f32 to vector<10x256xf32>
    %185 = arith.subf %184, %163 : vector<10x256xf32>
    %186 = arith.mulf %185, %163 : vector<10x256xf32>
    %187 = math.exp %186 : vector<10x256xf32>
    %188 = arith.mulf %183, %187 : vector<10x256xf32>
    %cst_83 = arith.constant 1.000000e+00 : f32
    %189 = vector.broadcast %cst_83 : f32 to vector<10x256xf32>
    %190 = arith.subf %189, %188 : vector<10x256xf32>
    %191 = arith.mulf %162, %190 : vector<10x256xf32>
    %cst_84 = arith.constant 1.000000e+00 : f32
    %192 = vector.broadcast %cst_84 : f32 to vector<10x256xf32>
    %193 = arith.addf %192, %191 : vector<10x256xf32>
    %194 = arith.mulf %155, %193 : vector<10x256xf32>
    %195 = arith.truncf %194 : vector<10x256xf32> to vector<10x256xbf16>
    %c0_85 = arith.constant 0 : index
    %c0_86 = arith.constant 0 : index
    %196 = vector.load %arg19[%c0_85, %c0_86] : memref<256x64xbf16, #tpu.memory_space<vmem>>, vector<256x64xbf16>
    %cst_87 = arith.constant dense<0.000000e+00> : vector<10x64xf32>
    %197 = tpu.matmul %195, %196, %cst_87 {dimension_numbers = #tpu.dot_dimension_numbers<[1], [0], [0], [1], [0, 0, 1, 1], [], []>} : vector<10x256xbf16>, vector<256x64xbf16>, vector<10x64xf32> -> vector<10x64xf32>
    %c0_88 = arith.constant 0 : index
    %c0_89 = arith.constant 0 : index
    %198 = vector.load %arg20[%c0_88, %c0_89] : memref<1x64xf32, #tpu.memory_space<vmem>>, vector<1x64xf32>
    %199 = vector.broadcast %198 : vector<1x64xf32> to vector<10x64xf32>
    %200 = arith.addf %197, %199 : vector<10x64xf32>
    %201 = arith.addf %123, %200 : vector<10x64xf32>
    %c0_90 = arith.constant 0 : index
    %c0_91 = arith.constant 0 : index
    %202 = vector.load %arg21[%c0_90, %c0_91] : memref<2x64xf32, #tpu.memory_space<vmem>>, vector<2x64xf32>
    %cst_92 = arith.constant dense<0.000000e+00> : vector<2x10xf32>
    %203 = tpu.matmul %202, %201, %cst_92 {dimension_numbers = #tpu.dot_dimension_numbers<[1], [1], [0], [0], [0, 0, 1, 0], [], []>} : vector<2x64xf32>, vector<10x64xf32>, vector<2x10xf32> -> vector<2x10xf32>
    %204 = tpu.iota {dimensions = array<i32: 1>} : vector<1x10xi32>
    %c0_i32 = arith.constant 0 : i32
    %205 = vector.broadcast %c0_i32 : i32 to vector<1x10xi32>
    %206 = arith.cmpi eq, %204, %205 : vector<1x10xi32>
    %207 = vector.extract_strided_slice %203 {offsets = [0, 0], sizes = [1, 10], strides = [1, 1]} : vector<2x10xf32> to vector<1x10xf32>
    %208 = vector.extract_strided_slice %203 {offsets = [1, 0], sizes = [1, 10], strides = [1, 1]} : vector<2x10xf32> to vector<1x10xf32>
    %209 = arith.select %206, %207, %208 : vector<1x10xi1>, vector<1x10xf32>
    %c0_93 = arith.constant 0 : index
    %c0_94 = arith.constant 0 : index
    %210 = vector.load %arg22[%c0_93, %c0_94] : memref<1x10xf32, #tpu.memory_space<vmem>>, vector<1x10xf32>
    %211 = arith.addf %209, %210 : vector<1x10xf32>
    %c0_95 = arith.constant 0 : index
    %c0_96 = arith.constant 0 : index
    %c0_97 = arith.constant 0 : index
    %212 = vector.load %arg23[%c0_95, %c0_96, %c0_97] : memref<1x1x10xf32, #tpu.memory_space<vmem>>, vector<1x1x10xf32>
    %213 = vector.shape_cast %212 : vector<1x1x10xf32> to vector<1x10xf32>
    %214 = vector.shape_cast %211 : vector<1x10xf32> to vector<1x1x10xf32>
    tpu.vector_store %arg23[%c0_95, %c0_96, %c0_97], %214 {strides = array<i32>} : memref<1x1x10xf32, #tpu.memory_space<vmem>>, vector<1x1x10xf32>,
    return
  }
  func.func @transform_0(%arg0: i32) -> (i32, i32, i32) {
    %c0_i32 = arith.constant 0 : i32
    %c0_i32_0 = arith.constant 0 : i32
    %c0_i32_1 = arith.constant 0 : i32
    return %arg0, %c0_i32, %c0_i32_0 : i32, i32, i32
  }
  func.func @transform_1(%arg0: i32) -> (i32, i32) {
    %c0_i32 = arith.constant 0 : i32
    %c0_i32_0 = arith.constant 0 : i32
    %c0_i32_1 = arith.constant 0 : i32
    return %c0_i32, %c0_i32_0 : i32, i32
  }
  func.func @transform_2(%arg0: i32) -> (i32, i32) {
    %c0_i32 = arith.constant 0 : i32
    %c0_i32_0 = arith.constant 0 : i32
    %c0_i32_1 = arith.constant 0 : i32
    return %c0_i32, %c0_i32_0 : i32, i32
  }
  func.func @transform_3(%arg0: i32) -> (i32, i32) {
    %c0_i32 = arith.constant 0 : i32
    %c0_i32_0 = arith.constant 0 : i32
    %c0_i32_1 = arith.constant 0 : i32
    return %c0_i32, %c0_i32_0 : i32, i32
  }
  func.func @transform_4(%arg0: i32) -> (i32, i32) {
    %c0_i32 = arith.constant 0 : i32
    %c0_i32_0 = arith.constant 0 : i32
    %c0_i32_1 = arith.constant 0 : i32
    return %c0_i32, %c0_i32_0 : i32, i32
  }
  func.func @transform_5(%arg0: i32) -> (i32, i32) {
    %c0_i32 = arith.constant 0 : i32
    %c0_i32_0 = arith.constant 0 : i32
    %c0_i32_1 = arith.constant 0 : i32
    return %c0_i32, %c0_i32_0 : i32, i32
  }
  func.func @transform_6(%arg0: i32) -> (i32, i32) {
    %c0_i32 = arith.constant 0 : i32
    %c0_i32_0 = arith.constant 0 : i32
    %c0_i32_1 = arith.constant 0 : i32
    return %c0_i32, %c0_i32_0 : i32, i32
  }
  func.func @transform_7(%arg0: i32) -> (i32, i32) {
    %c0_i32 = arith.constant 0 : i32
    %c0_i32_0 = arith.constant 0 : i32
    %c0_i32_1 = arith.constant 0 : i32
    return %c0_i32, %c0_i32_0 : i32, i32
  }
  func.func @transform_8(%arg0: i32) -> (i32, i32) {
    %c0_i32 = arith.constant 0 : i32
    %c0_i32_0 = arith.constant 0 : i32
    %c0_i32_1 = arith.constant 0 : i32
    return %c0_i32, %c0_i32_0 : i32, i32
  }
  func.func @transform_9(%arg0: i32) -> (i32, i32) {
    %c0_i32 = arith.constant 0 : i32
    %c0_i32_0 = arith.constant 0 : i32
    %c0_i32_1 = arith.constant 0 : i32
    return %c0_i32, %c0_i32_0 : i32, i32
  }
  func.func @transform_10(%arg0: i32) -> (i32, i32) {
    %c0_i32 = arith.constant 0 : i32
    %c0_i32_0 = arith.constant 0 : i32
    %c0_i32_1 = arith.constant 0 : i32
    return %c0_i32, %c0_i32_0 : i32, i32
  }
  func.func @transform_11(%arg0: i32) -> (i32, i32) {
    %c0_i32 = arith.constant 0 : i32
    %c0_i32_0 = arith.constant 0 : i32
    %c0_i32_1 = arith.constant 0 : i32
    return %c0_i32, %c0_i32_0 : i32, i32
  }
  func.func @transform_12(%arg0: i32) -> (i32, i32) {
    %c0_i32 = arith.constant 0 : i32
    %c0_i32_0 = arith.constant 0 : i32
    %c0_i32_1 = arith.constant 0 : i32
    return %c0_i32, %c0_i32_0 : i32, i32
  }
  func.func @transform_13(%arg0: i32) -> (i32, i32) {
    %c0_i32 = arith.constant 0 : i32
    %c0_i32_0 = arith.constant 0 : i32
    %c0_i32_1 = arith.constant 0 : i32
    return %c0_i32, %c0_i32_0 : i32, i32
  }
  func.func @transform_14(%arg0: i32) -> (i32, i32) {
    %c0_i32 = arith.constant 0 : i32
    %c0_i32_0 = arith.constant 0 : i32
    %c0_i32_1 = arith.constant 0 : i32
    return %c0_i32, %c0_i32_0 : i32, i32
  }
  func.func @transform_15(%arg0: i32) -> (i32, i32) {
    %c0_i32 = arith.constant 0 : i32
    %c0_i32_0 = arith.constant 0 : i32
    %c0_i32_1 = arith.constant 0 : i32
    return %c0_i32, %c0_i32_0 : i32, i32
  }
  func.func @transform_16(%arg0: i32) -> (i32, i32) {
    %c0_i32 = arith.constant 0 : i32
    %c0_i32_0 = arith.constant 0 : i32
    %c0_i32_1 = arith.constant 0 : i32
    return %c0_i32, %c0_i32_0 : i32, i32
  }
  func.func @transform_17(%arg0: i32) -> (i32, i32) {
    %c0_i32 = arith.constant 0 : i32
    %c0_i32_0 = arith.constant 0 : i32
    %c0_i32_1 = arith.constant 0 : i32
    return %c0_i32, %c0_i32_0 : i32, i32
  }
  func.func @transform_18(%arg0: i32) -> (i32, i32) {
    %c0_i32 = arith.constant 0 : i32
    %c0_i32_0 = arith.constant 0 : i32
    %c0_i32_1 = arith.constant 0 : i32
    return %c0_i32, %c0_i32_0 : i32, i32
  }
  func.func @transform_19(%arg0: i32) -> (i32, i32) {
    %c0_i32 = arith.constant 0 : i32
    %c0_i32_0 = arith.constant 0 : i32
    %c0_i32_1 = arith.constant 0 : i32
    return %c0_i32, %c0_i32_0 : i32, i32
  }
  func.func @transform_20(%arg0: i32) -> (i32, i32) {
    %c0_i32 = arith.constant 0 : i32
    %c0_i32_0 = arith.constant 0 : i32
    %c0_i32_1 = arith.constant 0 : i32
    return %c0_i32, %c0_i32_0 : i32, i32
  }
  func.func @transform_21(%arg0: i32) -> (i32, i32) {
    %c0_i32 = arith.constant 0 : i32
    %c0_i32_0 = arith.constant 0 : i32
    %c0_i32_1 = arith.constant 0 : i32
    return %c0_i32, %c0_i32_0 : i32, i32
  }
  func.func @transform_22(%arg0: i32) -> (i32, i32, i32) {
    %c0_i32 = arith.constant 0 : i32
    %c0_i32_0 = arith.constant 0 : i32
    %c0_i32_1 = arith.constant 0 : i32
    return %arg0, %c0_i32, %c0_i32_0 : i32, i32, i32
  }
}

</mosaic_0001>

<llo_original>
// kernel: global_pred_forward.2
$region0: #{global_pred_forward.2}
  #allocation0 [shape = 'u32[]', space=smem, size = 0x4, offset = 0x4, fixed_abs, tag = 'smem constant byte address 0x4 - core index']
  #allocation1 [shape = 'u32[144,128]{1,0:T(1,128)}', space=vmem, size = 0x12000, scoped, tag = 'internal scratch']
  %s0 = inlined_call_operand.vmem [shape: bf16[128,27], index: 0, kind: input, shape index: {}]
  %s1 = inlined_call_operand.vmem [shape: bf16[27,32], index: 1, kind: input, shape index: {}]
  %s2 = inlined_call_operand.vmem [shape: f32[1,32], index: 2, kind: input, shape index: {}]
  %s3 = inlined_call_operand.vmem [shape: bf16[128,32], index: 3, kind: output, shape index: {}]
  %s4 = sld [smem:[#allocation0]]
  $region22: #{global_pred_forward.2} parent=0
    _
  %s6 = ssub.s32 1, %s4
  %s7 = scalar_select 0, %s6, %s4
  // Predicated region
  $region2: #{global_pred_forward.2} parent=0 // pred_check
    _
  $region3: #{global_pred_forward.2} parent=0 // pred_check_branch
    %9 = sbr.rel (0) target = $region5
  $region4: #{global_pred_forward.2} parent=0 // pred_region
    _
  $region5: #{global_pred_forward.2} parent=0 // pred_fallthru
    _
  // Predicated region
  $region6: #{global_pred_forward.2} parent=0 // pred_check
    _
  $region7: #{global_pred_forward.2} parent=0 // pred_check_branch
    %11 = sbr.rel (0) target = $region9
  $region8: #{global_pred_forward.2} parent=0 // pred_region
    _
  $region9: #{global_pred_forward.2} parent=0 // pred_fallthru
    _
  // Predicated region
  $region10: #{global_pred_forward.2} parent=0 // pred_check
    _
  $region11: #{global_pred_forward.2} parent=0 // pred_check_branch
    %13 = sbr.rel (0) target = $region13
  $region12: #{global_pred_forward.2} parent=0 // pred_region
    _
  $region13: #{global_pred_forward.2} parent=0 // pred_fallthru
    _
  %v15 = vld [vmem:[%s0] sm:$0xf]
  %v16 = vld [vmem:[%s0 + $0x4] sm:$0xf]
  %v17 = vld [vmem:[%s0 + $0x8] sm:$0xf]
  %v18 = vld [vmem:[%s0 + $0xc] sm:$0xf]
  %v19 = vld [vmem:[%s0 + $0x10] sm:$0xf]
  %v20 = vld [vmem:[%s0 + $0x14] sm:$0xf]
  %v21 = vld [vmem:[%s0 + $0x18] sm:$0xf]
  %v22 = vld [vmem:[%s0 + $0x1c] sm:$0xf]
  %v23 = vld [vmem:[%s0 + $0x20] sm:$0xf]
  %v24 = vld [vmem:[%s0 + $0x24] sm:$0xf]
  %v25 = vld [vmem:[%s0 + $0x28] sm:$0xf]
  %v26 = vld [vmem:[%s0 + $0x2c] sm:$0xf]
  %v27 = vld [vmem:[%s0 + $0x30] sm:$0xf]
  %v28 = vld [vmem:[%s0 + $0x34] sm:$0xf]
  %v29 = vld [vmem:[%s0 + $0x38] sm:$0xf]
  %v30 = vld [vmem:[%s0 + $0x3c] sm:$0xf]
  %v31 = vld [vmem:[%s1] sm:$0xf]
  %v32 = vld [vmem:[%s1 + $0x4] sm:$0xf]
  %v33 = vld [vmem:[%s1 + $0x8] sm:$0xf]
  %v34 = vld [vmem:[%s1 + $0xc] sm:$0x3]
  %v35 = vld [vmem:[%s2] sm:$0x1]
  %v37 = vlaneseq
  %v38 = vshrl.u32 %v37, 7
  %v39 = vsub.s32 0, %v38
  %v40 = vrot.slane %v35, %v39
  %v58 = vunpack.c.l.b16 %v15
  %v59 = vunpack.c.l.b16 %v16
  %v60 = vunpack.c.l.b16 %v17
  %v61 = vunpack.c.l.b16 %v18
  %v62 = vunpack.c.l.b16 %v19
  %v63 = vunpack.c.l.b16 %v20
  %v64 = vunpack.c.l.b16 %v21
  %v65 = vunpack.c.l.b16 %v22
  %v66 = vunpack.c.l.b16 %v23
  %v67 = vunpack.c.l.b16 %v24
  %v68 = vunpack.c.l.b16 %v25
  %v69 = vunpack.c.l.b16 %v26
  %v70 = vunpack.c.l.b16 %v27
  %v71 = vunpack.c.l.b16 %v28
  %v72 = vunpack.c.l.b16 %v29
  %v73 = vunpack.c.l.b16 %v30
  %v74 = vpack.c.b16 %v59, %v58
  %v75 = vpack.c.b16 %v61, %v60
  %v76 = vpack.c.b16 %v63, %v62
  %v77 = vpack.c.b16 %v65, %v64
  %v78 = vpack.c.b16 %v67, %v66
  %v79 = vpack.c.b16 %v69, %v68
  %v80 = vpack.c.b16 %v71, %v70
  %v81 = vpack.c.b16 %v73, %v72
  %v86 = vunpack.c.l.b16 %v31
  %v87 = vunpack.c.l.b16 %v32
  %v88 = vunpack.c.l.b16 %v33
  %v89 = vunpack.c.l.b16 %v34
  %v90 = vpack.c.b16 %v87, %v86
  %v91 = vpack.c.b16 %v89, %v88
  %vm93 = vcmask 220160
  %v95 = vsel %vm93, %v74, 0
  %v98 = vsel %vm93, %v75, 0
  %v101 = vsel %vm93, %v76, 0
  %v104 = vsel %vm93, %v77, 0
  %v107 = vsel %vm93, %v78, 0
  %v110 = vsel %vm93, %v79, 0
  %v113 = vsel %vm93, %v80, 0
  %v116 = vsel %vm93, %v81, 0
  %vm118 = vcmask 1044480
  %vm119 = vcmask 1045504
  %v120 = vsel %vm118, 4294967295, 65535
  %v121 = vsel %vm119, %v120, 0
  %v123 = vand.u32 %v91, %v121
  %125 = vmatprep.subr.bf16.mxu0 0
  %126 = vmatpush1.bf16.msra.mxu0 %v90
  %127 = vmatprep.subr.bf16.mxu0 0
  %128 = vmatpush1.bf16.msra.mxu0 %v123
  %129 = vmatprep.subr.bf16.mxu0 0
  %130 = vmatpush1.bf16.msra.mxu0 0
  %131 = vmatprep.subr.bf16.mxu0 0
  %132 = vmatpush1.bf16.msra.mxu0 0
  %133 = vmatprep.subr.bf16.mxu0 0
  %134 = vmatpush1.bf16.msra.mxu0 0
  %135 = vmatprep.subr.bf16.mxu0 0
  %136 = vmatpush1.bf16.msra.mxu0 0
  %137 = vmatprep.subr.bf16.mxu0 0
  %138 = vmatpush1.bf16.msra.mxu0 0
  %139 = vmatprep.subr.bf16.mxu0 0
  %140 = vmatpush1.bf16.msra.mxu0 0
  %141 = vmatprep.subr.bf16.mxu0 0
  %142 = vmatpush1.bf16.msra.mxu0 0
  %143 = vmatprep.subr.bf16.mxu0 0
  %144 = vmatpush1.bf16.msra.mxu0 0
  %145 = vmatprep.subr.bf16.mxu0 0
  %146 = vmatpush1.bf16.msra.mxu0 0
  %147 = vmatprep.subr.bf16.mxu0 0
  %148 = vmatpush1.bf16.msra.mxu0 0
  %149 = vmatprep.subr.bf16.mxu0 0
  %150 = vmatpush1.bf16.msra.mxu0 0
  %151 = vmatprep.subr.bf16.mxu0 0
  %152 = vmatpush1.bf16.msra.mxu0 0
  %153 = vmatprep.subr.bf16.mxu0 0
  %154 = vmatpush1.bf16.msra.mxu0 0
  %155 = vmatprep.subr.bf16.mxu0 0
  %156 = vmatpush1.bf16.msra.mxu0 0
  %157 = vmatprep.mubr.bf16.mxu0 0
  %158 = vmatmul.mubr.bf16.gmra.mrb[0].mxu0 %v95
  %v159 = vpop.f32.mrb[0].mxu0
  %v160 = vadd.f32 %v40, %v159
  %v161 = vpop.f32.mrb[0].mxu0
  %v162 = vpop.f32.mrb[0].mxu0
  %v163 = vadd.f32 %v40, %v162
  %v164 = vpop.f32.mrb[0].mxu0
  %165 = vmatprep.mubr.bf16.mxu0 0
  %166 = vmatmul.mubr.bf16.gmra.mrb[0].mxu0 %v98
  %v167 = vpop.f32.mrb[0].mxu0
  %v168 = vadd.f32 %v40, %v167
  %v169 = vpop.f32.mrb[0].mxu0
  %v170 = vpop.f32.mrb[0].mxu0
  %v171 = vadd.f32 %v40, %v170
  %v172 = vpop.f32.mrb[0].mxu0
  %173 = vmatprep.mubr.bf16.mxu0 0
  %174 = vmatmul.mubr.bf16.gmra.mrb[0].mxu0 %v101
  %v175 = vpop.f32.mrb[0].mxu0
  %v176 = vadd.f32 %v40, %v175
  %v177 = vpop.f32.mrb[0].mxu0
  %v178 = vpop.f32.mrb[0].mxu0
  %v179 = vadd.f32 %v40, %v178
  %v180 = vpop.f32.mrb[0].mxu0
  %181 = vmatprep.mubr.bf16.mxu0 0
  %182 = vmatmul.mubr.bf16.gmra.mrb[0].mxu0 %v104
  %v183 = vpop.f32.mrb[0].mxu0
  %v184 = vadd.f32 %v40, %v183
  %v185 = vpop.f32.mrb[0].mxu0
  %v186 = vpop.f32.mrb[0].mxu0
  %v187 = vadd.f32 %v40, %v186
  %v188 = vpop.f32.mrb[0].mxu0
  %189 = vmatprep.mubr.bf16.mxu0 0
  %190 = vmatmul.mubr.bf16.gmra.mrb[0].mxu0 %v107
  %v191 = vpop.f32.mrb[0].mxu0
  %v192 = vadd.f32 %v40, %v191
  %v193 = vpop.f32.mrb[0].mxu0
  %v194 = vpop.f32.mrb[0].mxu0
  %v195 = vadd.f32 %v40, %v194
  %v196 = vpop.f32.mrb[0].mxu0
  %197 = vmatprep.mubr.bf16.mxu0 0
  %198 = vmatmul.mubr.bf16.gmra.mrb[0].mxu0 %v110
  %v199 = vpop.f32.mrb[0].mxu0
  %v200 = vadd.f32 %v40, %v199
  %v201 = vpop.f32.mrb[0].mxu0
  %v202 = vpop.f32.mrb[0].mxu0
  %v203 = vadd.f32 %v40, %v202
  %v204 = vpop.f32.mrb[0].mxu0
  %205 = vmatprep.mubr.bf16.mxu0 0
  %206 = vmatmul.mubr.bf16.gmra.mrb[0].mxu0 %v113
  %v207 = vpop.f32.mrb[0].mxu0
  %v208 = vadd.f32 %v40, %v207
  %v209 = vpop.f32.mrb[0].mxu0
  %v210 = vpop.f32.mrb[0].mxu0
  %v211 = vadd.f32 %v40, %v210
  %v212 = vpop.f32.mrb[0].mxu0
  %213 = vmatprep.mubr.bf16.mxu0 0
  %214 = vmatmul.mubr.bf16.gmra.mrb[0].mxu0 %v116
  %v215 = vpop.f32.mrb[0].mxu0
  %v216 = vadd.f32 %v40, %v215
  %v217 = vpop.f32.mrb[0].mxu0
  %v218 = vpop.f32.mrb[0].mxu0
  %v219 = vadd.f32 %v40, %v218
  %v220 = vpop.f32.mrb[0].mxu0
  %221 = vdwg.mxu0
  %v222 = vmul.f32 %v160, 0.5
  %v223 = vmul.f32 %v163, 0.5
  %v224 = vmul.f32 %v168, 0.5
  %v225 = vmul.f32 %v171, 0.5
  %v226 = vmul.f32 %v176, 0.5
  %v227 = vmul.f32 %v179, 0.5
  %v228 = vmul.f32 %v184, 0.5
  %v229 = vmul.f32 %v187, 0.5
  %v230 = vmul.f32 %v192, 0.5
  %v231 = vmul.f32 %v195, 0.5
  %v232 = vmul.f32 %v200, 0.5
  %v233 = vmul.f32 %v203, 0.5
  %v234 = vmul.f32 %v208, 0.5
  %v235 = vmul.f32 %v211, 0.5
  %v236 = vmul.f32 %v216, 0.5
  %v237 = vmul.f32 %v219, 0.5
  %v238 = vmul.f32 %v160, 0.70710677
  %v239 = vmul.f32 %v163, 0.70710677
  %v240 = vmul.f32 %v168, 0.70710677
  %v241 = vmul.f32 %v171, 0.70710677
  %v242 = vmul.f32 %v176, 0.70710677
  %v243 = vmul.f32 %v179, 0.70710677
  %v244 = vmul.f32 %v184, 0.70710677
  %v245 = vmul.f32 %v187, 0.70710677
  %v246 = vmul.f32 %v192, 0.70710677
  %v247 = vmul.f32 %v195, 0.70710677
  %v248 = vmul.f32 %v200, 0.70710677
  %v249 = vmul.f32 %v203, 0.70710677
  %v250 = vmul.f32 %v208, 0.70710677
  %v251 = vmul.f32 %v211, 0.70710677
  %v252 = vmul.f32 %v216, 0.70710677
  %v253 = vmul.f32 %v219, 0.70710677
  %vm254 = vcmp.ge.f32.partialorder %v238, 0.0
  %vm255 = vcmp.ge.f32.partialorder %v239, 0.0
  %vm256 = vcmp.ge.f32.partialorder %v240, 0.0
  %vm257 = vcmp.ge.f32.partialorder %v241, 0.0
  %vm258 = vcmp.ge.f32.partialorder %v242, 0.0
  %vm259 = vcmp.ge.f32.partialorder %v243, 0.0
  %vm260 = vcmp.ge.f32.partialorder %v244, 0.0
  %vm261 = vcmp.ge.f32.partialorder %v245, 0.0
  %vm262 = vcmp.ge.f32.partialorder %v246, 0.0
  %vm263 = vcmp.ge.f32.partialorder %v247, 0.0
  %vm264 = vcmp.ge.f32.partialorder %v248, 0.0
  %vm265 = vcmp.ge.f32.partialorder %v249, 0.0
  %vm266 = vcmp.ge.f32.partialorder %v250, 0.0
  %vm267 = vcmp.ge.f32.partialorder %v251, 0.0
  %vm268 = vcmp.ge.f32.partialorder %v252, 0.0
  %vm269 = vcmp.ge.f32.partialorder %v253, 0.0
  %v270 = vsel %vm254, 1.0, -1.0
  %v271 = vsel %vm255, 1.0, -1.0
  %v272 = vsel %vm256, 1.0, -1.0
  %v273 = vsel %vm257, 1.0, -1.0
  %v274 = vsel %vm258, 1.0, -1.0
  %v275 = vsel %vm259, 1.0, -1.0
  %v276 = vsel %vm260, 1.0, -1.0
  %v277 = vsel %vm261, 1.0, -1.0
  %v278 = vsel %vm262, 1.0, -1.0
  %v279 = vsel %vm263, 1.0, -1.0
  %v280 = vsel %vm264, 1.0, -1.0
  %v281 = vsel %vm265, 1.0, -1.0
  %v282 = vsel %vm266, 1.0, -1.0
  %v283 = vsel %vm267, 1.0, -1.0
  %v284 = vsel %vm268, 1.0, -1.0
  %v285 = vsel %vm269, 1.0, -1.0
  %v286 = vand.u32 2147483647, %v238
  %v287 = vand.u32 2147483647, %v239
  %v288 = vand.u32 2147483647, %v240
  %v289 = vand.u32 2147483647, %v241
  %v290 = vand.u32 2147483647, %v242
  %v291 = vand.u32 2147483647, %v243
  %v292 = vand.u32 2147483647, %v244
  %v293 = vand.u32 2147483647, %v245
  %v294 = vand.u32 2147483647, %v246
  %v295 = vand.u32 2147483647, %v247
  %v296 = vand.u32 2147483647, %v248
  %v297 = vand.u32 2147483647, %v249
  %v298 = vand.u32 2147483647, %v250
  %v299 = vand.u32 2147483647, %v251
  %v300 = vand.u32 2147483647, %v252
  %v301 = vand.u32 2147483647, %v253
  %v302 = vmul.f32 %v286, 0.3275911
  %v303 = vmul.f32 %v287, 0.3275911
  %v304 = vmul.f32 %v288, 0.3275911
  %v305 = vmul.f32 %v289, 0.3275911
  %v306 = vmul.f32 %v290, 0.3275911
  %v307 = vmul.f32 %v291, 0.3275911
  %v308 = vmul.f32 %v292, 0.3275911
  %v309 = vmul.f32 %v293, 0.3275911
  %v310 = vmul.f32 %v294, 0.3275911
  %v311 = vmul.f32 %v295, 0.3275911
  %v312 = vmul.f32 %v296, 0.3275911
  %v313 = vmul.f32 %v297, 0.3275911
  %v314 = vmul.f32 %v298, 0.3275911
  %v315 = vmul.f32 %v299, 0.3275911
  %v316 = vmul.f32 %v300, 0.3275911
  %v317 = vmul.f32 %v301, 0.3275911
  %v318 = vadd.f32 %v302, 1.0
  %v319 = vadd.f32 %v303, 1.0
  %v320 = vadd.f32 %v304, 1.0
  %v321 = vadd.f32 %v305, 1.0
  %v322 = vadd.f32 %v306, 1.0
  %v323 = vadd.f32 %v307, 1.0
  %v324 = vadd.f32 %v308, 1.0
  %v325 = vadd.f32 %v309, 1.0
  %v326 = vadd.f32 %v310, 1.0
  %v327 = vadd.f32 %v311, 1.0
  %v328 = vadd.f32 %v312, 1.0
  %v329 = vadd.f32 %v313, 1.0
  %v330 = vadd.f32 %v314, 1.0
  %v331 = vadd.f32 %v315, 1.0
  %v332 = vadd.f32 %v316, 1.0
  %v333 = vadd.f32 %v317, 1.0
  %v334 = vrcp.pop %v318
  %v335 = vmul.f32 1.0, %v334
  %v336 = vrcp.pop %v319
  %v337 = vmul.f32 1.0, %v336
  %v338 = vrcp.pop %v320
  %v339 = vmul.f32 1.0, %v338
  %v340 = vrcp.pop %v321
  %v341 = vmul.f32 1.0, %v340
  %v342 = vrcp.pop %v322
  %v343 = vmul.f32 1.0, %v342
  %v344 = vrcp.pop %v323
  %v345 = vmul.f32 1.0, %v344
  %v346 = vrcp.pop %v324
  %v347 = vmul.f32 1.0, %v346
  %v348 = vrcp.pop %v325
  %v349 = vmul.f32 1.0, %v348
  %v350 = vrcp.pop %v326
  %v351 = vmul.f32 1.0, %v350
  %v352 = vrcp.pop %v327
  %v353 = vmul.f32 1.0, %v352
  %v354 = vrcp.pop %v328
  %v355 = vmul.f32 1.0, %v354
  %v356 = vrcp.pop %v329
  %v357 = vmul.f32 1.0, %v356
  %v358 = vrcp.pop %v330
  %v359 = vmul.f32 1.0, %v358
  %v360 = vrcp.pop %v331
  %v361 = vmul.f32 1.0, %v360
  %v362 = vrcp.pop %v332
  %v363 = vmul.f32 1.0, %v362
  %v364 = vrcp.pop %v333
  %v365 = vmul.f32 1.0, %v364
  %v366 = vmul.f32 %v335, 1.0614054
  %v367 = vmul.f32 %v337, 1.0614054
  %v368 = vmul.f32 %v339, 1.0614054
  %v369 = vmul.f32 %v341, 1.0614054
  %v370 = vmul.f32 %v343, 1.0614054
  %v371 = vmul.f32 %v345, 1.0614054
  %v372 = vmul.f32 %v347, 1.0614054
  %v373 = vmul.f32 %v349, 1.0614054
  %v374 = vmul.f32 %v351, 1.0614054
  %v375 = vmul.f32 %v353, 1.0614054
  %v376 = vmul.f32 %v355, 1.0614054
  %v377 = vmul.f32 %v357, 1.0614054
  %v378 = vmul.f32 %v359, 1.0614054
  %v379 = vmul.f32 %v361, 1.0614054
  %v380 = vmul.f32 %v363, 1.0614054
  %v381 = vmul.f32 %v365, 1.0614054
  %v382 = vadd.f32 %v366, -1.4531521
  %v383 = vadd.f32 %v367, -1.4531521
  %v384 = vadd.f32 %v368, -1.4531521
  %v385 = vadd.f32 %v369, -1.4531521
  %v386 = vadd.f32 %v370, -1.4531521
  %v387 = vadd.f32 %v371, -1.4531521
  %v388 = vadd.f32 %v372, -1.4531521
  %v389 = vadd.f32 %v373, -1.4531521
  %v390 = vadd.f32 %v374, -1.4531521
  %v391 = vadd.f32 %v375, -1.4531521
  %v392 = vadd.f32 %v376, -1.4531521
  %v393 = vadd.f32 %v377, -1.4531521
  %v394 = vadd.f32 %v378, -1.4531521
  %v395 = vadd.f32 %v379, -1.4531521
  %v396 = vadd.f32 %v380, -1.4531521
  %v397 = vadd.f32 %v381, -1.4531521
  %v398 = vmul.f32 %v382, %v335
  %v399 = vmul.f32 %v383, %v337
  %v400 = vmul.f32 %v384, %v339
  %v401 = vmul.f32 %v385, %v341
  %v402 = vmul.f32 %v386, %v343
  %v403 = vmul.f32 %v387, %v345
  %v404 = vmul.f32 %v388, %v347
  %v405 = vmul.f32 %v389, %v349
  %v406 = vmul.f32 %v390, %v351
  %v407 = vmul.f32 %v391, %v353
  %v408 = vmul.f32 %v392, %v355
  %v409 = vmul.f32 %v393, %v357
  %v410 = vmul.f32 %v394, %v359
  %v411 = vmul.f32 %v395, %v361
  %v412 = vmul.f32 %v396, %v363
  %v413 = vmul.f32 %v397, %v365
  %v414 = vadd.f32 %v398, 1.4214138
  %v415 = vadd.f32 %v399, 1.4214138
  %v416 = vadd.f32 %v400, 1.4214138
  %v417 = vadd.f32 %v401, 1.4214138
  %v418 = vadd.f32 %v402, 1.4214138
  %v419 = vadd.f32 %v403, 1.4214138
  %v420 = vadd.f32 %v404, 1.4214138
  %v421 = vadd.f32 %v405, 1.4214138
  %v422 = vadd.f32 %v406, 1.4214138
  %v423 = vadd.f32 %v407, 1.4214138
  %v424 = vadd.f32 %v408, 1.4214138
  %v425 = vadd.f32 %v409, 1.4214138
  %v426 = vadd.f32 %v410, 1.4214138
  %v427 = vadd.f32 %v411, 1.4214138
  %v428 = vadd.f32 %v412, 1.4214138
  %v429 = vadd.f32 %v413, 1.4214138
  %v430 = vmul.f32 %v414, %v335
  %v431 = vmul.f32 %v415, %v337
  %v432 = vmul.f32 %v416, %v339
  %v433 = vmul.f32 %v417, %v341
  %v434 = vmul.f32 %v418, %v343
  %v435 = vmul.f32 %v419, %v345
  %v436 = vmul.f32 %v420, %v347
  %v437 = vmul.f32 %v421, %v349
  %v438 = vmul.f32 %v422, %v351
  %v439 = vmul.f32 %v423, %v353
  %v440 = vmul.f32 %v424, %v355
  %v441 = vmul.f32 %v425, %v357
  %v442 = vmul.f32 %v426, %v359
  %v443 = vmul.f32 %v427, %v361
  %v444 = vmul.f32 %v428, %v363
  %v445 = vmul.f32 %v429, %v365
  %v446 = vadd.f32 %v430, -0.28449672
  %v447 = vadd.f32 %v431, -0.28449672
  %v448 = vadd.f32 %v432, -0.28449672
  %v449 = vadd.f32 %v433, -0.28449672
  %v450 = vadd.f32 %v434, -0.28449672
  %v451 = vadd.f32 %v435, -0.28449672
  %v452 = vadd.f32 %v436, -0.28449672
  %v453 = vadd.f32 %v437, -0.28449672
  %v454 = vadd.f32 %v438, -0.28449672
  %v455 = vadd.f32 %v439, -0.28449672
  %v456 = vadd.f32 %v440, -0.28449672
  %v457 = vadd.f32 %v441, -0.28449672
  %v458 = vadd.f32 %v442, -0.28449672
  %v459 = vadd.f32 %v443, -0.28449672
  %v460 = vadd.f32 %v444, -0.28449672
  %v461 = vadd.f32 %v445, -0.28449672
  %v462 = vmul.f32 %v446, %v335
  %v463 = vmul.f32 %v447, %v337
  %v464 = vmul.f32 %v448, %v339
  %v465 = vmul.f32 %v449, %v341
  %v466 = vmul.f32 %v450, %v343
  %v467 = vmul.f32 %v451, %v345
  %v468 = vmul.f32 %v452, %v347
  %v469 = vmul.f32 %v453, %v349
  %v470 = vmul.f32 %v454, %v351
  %v471 = vmul.f32 %v455, %v353
  %v472 = vmul.f32 %v456, %v355
  %v473 = vmul.f32 %v457, %v357
  %v474 = vmul.f32 %v458, %v359
  %v475 = vmul.f32 %v459, %v361
  %v476 = vmul.f32 %v460, %v363
  %v477 = vmul.f32 %v461, %v365
  %v478 = vadd.f32 %v462, 0.2548296
  %v479 = vadd.f32 %v463, 0.2548296
  %v480 = vadd.f32 %v464, 0.2548296
  %v481 = vadd.f32 %v465, 0.2548296
  %v482 = vadd.f32 %v466, 0.2548296
  %v483 = vadd.f32 %v467, 0.2548296
  %v484 = vadd.f32 %v468, 0.2548296
  %v485 = vadd.f32 %v469, 0.2548296
  %v486 = vadd.f32 %v470, 0.2548296
  %v487 = vadd.f32 %v471, 0.2548296
  %v488 = vadd.f32 %v472, 0.2548296
  %v489 = vadd.f32 %v473, 0.2548296
  %v490 = vadd.f32 %v474, 0.2548296
  %v491 = vadd.f32 %v475, 0.2548296
  %v492 = vadd.f32 %v476, 0.2548296
  %v493 = vadd.f32 %v477, 0.2548296
  %v494 = vmul.f32 %v478, %v335
  %v495 = vmul.f32 %v479, %v337
  %v496 = vmul.f32 %v480, %v339
  %v497 = vmul.f32 %v481, %v341
  %v498 = vmul.f32 %v482, %v343
  %v499 = vmul.f32 %v483, %v345
  %v500 = vmul.f32 %v484, %v347
  %v501 = vmul.f32 %v485, %v349
  %v502 = vmul.f32 %v486, %v351
  %v503 = vmul.f32 %v487, %v353
  %v504 = vmul.f32 %v488, %v355
  %v505 = vmul.f32 %v489, %v357
  %v506 = vmul.f32 %v490, %v359
  %v507 = vmul.f32 %v491, %v361
  %v508 = vmul.f32 %v492, %v363
  %v509 = vmul.f32 %v493, %v365
  %v510 = vsub.f32 0.0, %v286
  %v511 = vsub.f32 0.0, %v287
  %v512 = vsub.f32 0.0, %v288
  %v513 = vsub.f32 0.0, %v289
  %v514 = vsub.f32 0.0, %v290
  %v515 = vsub.f32 0.0, %v291
  %v516 = vsub.f32 0.0, %v292
  %v517 = vsub.f32 0.0, %v293
  %v518 = vsub.f32 0.0, %v294
  %v519 = vsub.f32 0.0, %v295
  %v520 = vsub.f32 0.0, %v296
  %v521 = vsub.f32 0.0, %v297
  %v522 = vsub.f32 0.0, %v298
  %v523 = vsub.f32 0.0, %v299
  %v524 = vsub.f32 0.0, %v300
  %v525 = vsub.f32 0.0, %v301
  %v526 = vmul.f32 %v510, %v286
  %v527 = vmul.f32 %v511, %v287
  %v528 = vmul.f32 %v512, %v288
  %v529 = vmul.f32 %v513, %v289
  %v530 = vmul.f32 %v514, %v290
  %v531 = vmul.f32 %v515, %v291
  %v532 = vmul.f32 %v516, %v292
  %v533 = vmul.f32 %v517, %v293
  %v534 = vmul.f32 %v518, %v294
  %v535 = vmul.f32 %v519, %v295
  %v536 = vmul.f32 %v520, %v296
  %v537 = vmul.f32 %v521, %v297
  %v538 = vmul.f32 %v522, %v298
  %v539 = vmul.f32 %v523, %v299
  %v540 = vmul.f32 %v524, %v300
  %v541 = vmul.f32 %v525, %v301
  %v542 = vmul.f32 %v526, 1.442695
  %v543 = vpow.pop %v542
  %v544 = vmul.f32 %v527, 1.442695
  %v545 = vpow.pop %v544
  %v546 = vmul.f32 %v528, 1.442695
  %v547 = vpow.pop %v546
  %v548 = vmul.f32 %v529, 1.442695
  %v549 = vpow.pop %v548
  %v550 = vmul.f32 %v530, 1.442695
  %v551 = vpow.pop %v550
  %v552 = vmul.f32 %v531, 1.442695
  %v553 = vpow.pop %v552
  %v554 = vmul.f32 %v532, 1.442695
  %v555 = vpow.pop %v554
  %v556 = vmul.f32 %v533, 1.442695
  %v557 = vpow.pop %v556
  %v558 = vmul.f32 %v534, 1.442695
  %v559 = vpow.pop %v558
  %v560 = vmul.f32 %v535, 1.442695
  %v561 = vpow.pop %v560
  %v562 = vmul.f32 %v536, 1.442695
  %v563 = vpow.pop %v562
  %v564 = vmul.f32 %v537, 1.442695
  %v565 = vpow.pop %v564
  %v566 = vmul.f32 %v538, 1.442695
  %v567 = vpow.pop %v566
  %v568 = vmul.f32 %v539, 1.442695
  %v569 = vpow.pop %v568
  %v570 = vmul.f32 %v540, 1.442695
  %v571 = vpow.pop %v570
  %v572 = vmul.f32 %v541, 1.442695
  %v573 = vpow.pop %v572
  %v574 = vmul.f32 %v494, %v543
  %v575 = vmul.f32 %v495, %v545
  %v576 = vmul.f32 %v496, %v547
  %v577 = vmul.f32 %v497, %v549
  %v578 = vmul.f32 %v498, %v551
  %v579 = vmul.f32 %v499, %v553
  %v580 = vmul.f32 %v500, %v555
  %v581 = vmul.f32 %v501, %v557
  %v582 = vmul.f32 %v502, %v559
  %v583 = vmul.f32 %v503, %v561
  %v584 = vmul.f32 %v504, %v563
  %v585 = vmul.f32 %v505, %v565
  %v586 = vmul.f32 %v506, %v567
  %v587 = vmul.f32 %v507, %v569
  %v588 = vmul.f32 %v508, %v571
  %v589 = vmul.f32 %v509, %v573
  %v590 = vsub.f32 1.0, %v574
  %v591 = vsub.f32 1.0, %v575
  %v592 = vsub.f32 1.0, %v576
  %v593 = vsub.f32 1.0, %v577
  %v594 = vsub.f32 1.0, %v578
  %v595 = vsub.f32 1.0, %v579
  %v596 = vsub.f32 1.0, %v580
  %v597 = vsub.f32 1.0, %v581
  %v598 = vsub.f32 1.0, %v582
  %v599 = vsub.f32 1.0, %v583
  %v600 = vsub.f32 1.0, %v584
  %v601 = vsub.f32 1.0, %v585
  %v602 = vsub.f32 1.0, %v586
  %v603 = vsub.f32 1.0, %v587
  %v604 = vsub.f32 1.0, %v588
  %v605 = vsub.f32 1.0, %v589
  %v606 = vmul.f32 %v270, %v590
  %v607 = vmul.f32 %v271, %v591
  %v608 = vmul.f32 %v272, %v592
  %v609 = vmul.f32 %v273, %v593
  %v610 = vmul.f32 %v274, %v594
  %v611 = vmul.f32 %v275, %v595
  %v612 = vmul.f32 %v276, %v596
  %v613 = vmul.f32 %v277, %v597
  %v614 = vmul.f32 %v278, %v598
  %v615 = vmul.f32 %v279, %v599
  %v616 = vmul.f32 %v280, %v600
  %v617 = vmul.f32 %v281, %v601
  %v618 = vmul.f32 %v282, %v602
  %v619 = vmul.f32 %v283, %v603
  %v620 = vmul.f32 %v284, %v604
  %v621 = vmul.f32 %v285, %v605
  %v622 = vadd.f32 %v606, 1.0
  %v623 = vadd.f32 %v607, 1.0
  %v624 = vadd.f32 %v608, 1.0
  %v625 = vadd.f32 %v609, 1.0
  %v626 = vadd.f32 %v610, 1.0
  %v627 = vadd.f32 %v611, 1.0
  %v628 = vadd.f32 %v612, 1.0
  %v629 = vadd.f32 %v613, 1.0
  %v630 = vadd.f32 %v614, 1.0
  %v631 = vadd.f32 %v615, 1.0
  %v632 = vadd.f32 %v616, 1.0
  %v633 = vadd.f32 %v617, 1.0
  %v634 = vadd.f32 %v618, 1.0
  %v635 = vadd.f32 %v619, 1.0
  %v636 = vadd.f32 %v620, 1.0
  %v637 = vadd.f32 %v621, 1.0
  %v638 = vmul.f32 %v222, %v622
  %v639 = vmul.f32 %v223, %v623
  %v640 = vmul.f32 %v224, %v624
  %v641 = vmul.f32 %v225, %v625
  %v642 = vmul.f32 %v226, %v626
  %v643 = vmul.f32 %v227, %v627
  %v644 = vmul.f32 %v228, %v628
  %v645 = vmul.f32 %v229, %v629
  %v646 = vmul.f32 %v230, %v630
  %v647 = vmul.f32 %v231, %v631
  %v648 = vmul.f32 %v232, %v632
  %v649 = vmul.f32 %v233, %v633
  %v650 = vmul.f32 %v234, %v634
  %v651 = vmul.f32 %v235, %v635
  %v652 = vmul.f32 %v236, %v636
  %v653 = vmul.f32 %v237, %v637
  %v654 = vpack.c.bf16 %v639, %v638
  %v655 = vpack.c.bf16 %v641, %v640
  %v656 = vpack.c.bf16 %v643, %v642
  %v657 = vpack.c.bf16 %v645, %v644
  %v658 = vpack.c.bf16 %v647, %v646
  %v659 = vpack.c.bf16 %v649, %v648
  %v660 = vpack.c.bf16 %v651, %v650
  %v661 = vpack.c.bf16 %v653, %v652
  %v670 = vunpack.c.l.b16 %v654
  %v671 = vunpack.c.h.b16 %v654
  %v672 = vunpack.c.l.b16 %v655
  %v673 = vunpack.c.h.b16 %v655
  %v674 = vunpack.c.l.b16 %v656
  %v675 = vunpack.c.h.b16 %v656
  %v676 = vunpack.c.l.b16 %v657
  %v677 = vunpack.c.h.b16 %v657
  %v678 = vunpack.c.l.b16 %v658
  %v679 = vunpack.c.h.b16 %v658
  %v680 = vunpack.c.l.b16 %v659
  %v681 = vunpack.c.h.b16 %v659
  %v682 = vunpack.c.l.b16 %v660
  %v683 = vunpack.c.h.b16 %v660
  %v684 = vunpack.c.l.b16 %v661
  %v685 = vunpack.c.h.b16 %v661
  %v686 = vpack.c.b16 %v670, %v670
  %v687 = vpack.c.b16 %v671, %v671
  %v688 = vpack.c.b16 %v672, %v672
  %v689 = vpack.c.b16 %v673, %v673
  %v690 = vpack.c.b16 %v674, %v674
  %v691 = vpack.c.b16 %v675, %v675
  %v692 = vpack.c.b16 %v676, %v676
  %v693 = vpack.c.b16 %v677, %v677
  %v694 = vpack.c.b16 %v678, %v678
  %v695 = vpack.c.b16 %v679, %v679
  %v696 = vpack.c.b16 %v680, %v680
  %v697 = vpack.c.b16 %v681, %v681
  %v698 = vpack.c.b16 %v682, %v682
  %v699 = vpack.c.b16 %v683, %v683
  %v700 = vpack.c.b16 %v684, %v684
  %v701 = vpack.c.b16 %v685, %v685
  %vm718 = vcmask 257024
  %719 = vst.msk [vmem:[%s3] sm:$0xf] %vm718, %v686
  %720 = vst.msk [vmem:[%s3 + $0x4] sm:$0xf] %vm718, %v687
  %721 = vst.msk [vmem:[%s3 + $0x8] sm:$0xf] %vm718, %v688
  %722 = vst.msk [vmem:[%s3 + $0xc] sm:$0xf] %vm718, %v689
  %723 = vst.msk [vmem:[%s3 + $0x10] sm:$0xf] %vm718, %v690
  %724 = vst.msk [vmem:[%s3 + $0x14] sm:$0xf] %vm718, %v691
  %725 = vst.msk [vmem:[%s3 + $0x18] sm:$0xf] %vm718, %v692
  %726 = vst.msk [vmem:[%s3 + $0x1c] sm:$0xf] %vm718, %v693
  %727 = vst.msk [vmem:[%s3 + $0x20] sm:$0xf] %vm718, %v694
  %728 = vst.msk [vmem:[%s3 + $0x24] sm:$0xf] %vm718, %v695
  %729 = vst.msk [vmem:[%s3 + $0x28] sm:$0xf] %vm718, %v696
  %730 = vst.msk [vmem:[%s3 + $0x2c] sm:$0xf] %vm718, %v697
  %731 = vst.msk [vmem:[%s3 + $0x30] sm:$0xf] %vm718, %v698
  %732 = vst.msk [vmem:[%s3 + $0x34] sm:$0xf] %vm718, %v699
  %733 = vst.msk [vmem:[%s3 + $0x38] sm:$0xf] %vm718, %v700
  %734 = vst.msk [vmem:[%s3 + $0x3c] sm:$0xf] %vm718, %v701
  // Predicated region
  $region14: #{global_pred_forward.2} parent=0 // pred_check
    _
  $region15: #{global_pred_forward.2} parent=0 // pred_check_branch
    %736 = sbr.rel (0) target = $region17
  $region16: #{global_pred_forward.2} parent=0 // pred_region
    _
  $region17: #{global_pred_forward.2} parent=0 // pred_fallthru
    _
  // Predicated region
  $region18: #{global_pred_forward.2} parent=0 // pred_check
    _
  $region19: #{global_pred_forward.2} parent=0 // pred_check_branch
    %738 = sbr.rel (0) target = $region21
  $region20: #{global_pred_forward.2} parent=0 // pred_region
    _
  $region21: #{global_pred_forward.2} parent=0 // pred_fallthru
    _

// kernel: global_pred_forward.3
$region0: #{global_pred_forward.3}
  #allocation0 [shape = 'u32[]', space=smem, size = 0x4, offset = 0x4, fixed_abs, tag = 'smem constant byte address 0x4 - core index']
  #allocation1 [shape = 'u32[144,128]{1,0:T(1,128)}', space=vmem, size = 0x12000, scoped, tag = 'internal scratch']
  %s0 = inlined_call_operand.vmem [shape: bf16[2,16,288], index: 0, kind: input, shape index: {}]
  %s1 = inlined_call_operand.vmem [shape: f32[144,16], index: 1, kind: input, shape index: {}]
  %s2 = inlined_call_operand.vmem [shape: bf16[288,64], index: 2, kind: input, shape index: {}]
  %s3 = inlined_call_operand.vmem [shape: f32[1,64], index: 3, kind: input, shape index: {}]
  %s4 = inlined_call_operand.vmem [shape: f32[9,64], index: 4, kind: input, shape index: {}]
  %s5 = inlined_call_operand.vmem [shape: f32[1,64], index: 5, kind: input, shape index: {}]
  %s6 = inlined_call_operand.vmem [shape: f32[1,64], index: 6, kind: input, shape index: {}]
  %s7 = inlined_call_operand.vmem [shape: f32[1,64], index: 7, kind: input, shape index: {}]
  %s8 = inlined_call_operand.vmem [shape: f32[40,64], index: 8, kind: input, shape index: {}]
  %s9 = inlined_call_operand.vmem [shape: f32[4,64], index: 9, kind: input, shape index: {}]
  %s10 = inlined_call_operand.vmem [shape: bf16[64,64], index: 10, kind: input, shape index: {}]
  %s11 = inlined_call_operand.vmem [shape: bf16[64,64], index: 11, kind: input, shape index: {}]
  %s12 = inlined_call_operand.vmem [shape: bf16[64,64], index: 12, kind: input, shape index: {}]
  %s13 = inlined_call_operand.vmem [shape: f32[1,64], index: 13, kind: input, shape index: {}]
  %s14 = inlined_call_operand.vmem [shape: f32[1,64], index: 14, kind: input, shape index: {}]
  %s15 = inlined_call_operand.vmem [shape: f32[1,64], index: 15, kind: input, shape index: {}]
  %s16 = inlined_call_operand.vmem [shape: bf16[64,256], index: 16, kind: input, shape index: {}]
  %s17 = inlined_call_operand.vmem [shape: f32[1,256], index: 17, kind: input, shape index: {}]
  %s18 = inlined_call_operand.vmem [shape: bf16[256,64], index: 18, kind: input, shape index: {}]
  %s19 = inlined_call_operand.vmem [shape: f32[1,64], index: 19, kind: input, shape index: {}]
  %s20 = inlined_call_operand.vmem [shape: f32[2,64], index: 20, kind: input, shape index: {}]
  %s21 = inlined_call_operand.vmem [shape: f32[1,10], index: 21, kind: input, shape index: {}]
  %s22 = inlined_call_operand.vmem [shape: f32[2,1,10], index: 22, kind: output, shape index: {}]
  %s23 = sld [smem:[#allocation0]]
  $region121: #{global_pred_forward.3} parent=0
    _
  %s25 = ssub.s32 1, %s23
  %s26 = scalar_select 0, %s25, %s23
  loop: start=0, step=1, limit=4
  $region2: #{global_pred_forward.3} parent=0 // loop_pre_header
    _
  $region3: #{global_pred_forward.3} parent=0 // loop_header
    %s28 = sphi 0, %s32
    %p29 = scmp.ge.s32.totalorder %s28, 4
    %s38 = sphi 0, %s40
    %s41 = sphi 0, %s38
    %s42 = sphi 0, %s41
    %s58 = sphi 0, %s42
    %s62 = sphi 0, %s62
    %s64 = sphi 0, %s62
    %s65 = sphi 0, %s64
    %s79 = sphi 0, %s65
    %s83 = sphi 0, %s83
    %s85 = sphi 0, %s83
    %s86 = sphi 0, %s85
    %s100 = sphi 0, %s86
    %s104 = sphi 0, %s104
    %s106 = sphi 0, %s104
    %s107 = sphi 0, %s106
    %s121 = sphi 0, %s107
    %s125 = sphi 0, %s125
    %s127 = sphi 0, %s125
    %s128 = sphi 0, %s127
    %s142 = sphi 0, %s128
    %s146 = sphi 0, %s146
    %s148 = sphi 0, %s146
    %s149 = sphi 0, %s148
    %s163 = sphi 0, %s149
    %s167 = sphi 0, %s167
    %s169 = sphi 0, %s167
    %s170 = sphi 0, %s169
    %s184 = sphi 0, %s170
    %s188 = sphi 0, %s188
    %s190 = sphi 0, %s188
    %s191 = sphi 0, %s190
    %s205 = sphi 0, %s191
    %s209 = sphi 0, %s209
    %s211 = sphi 0, %s209
    %s212 = sphi 0, %s211
    %s226 = sphi 0, %s212
    %s230 = sphi 0, %s230
    %s232 = sphi 0, %s230
    %s233 = sphi 0, %s232
    %s247 = sphi 0, %s233
    %s251 = sphi 0, %s251
    %s253 = sphi 0, %s251
    %s254 = sphi 0, %s253
    %s268 = sphi 0, %s254
    %s272 = sphi 0, %s272
    %s274 = sphi 0, %s272
    %s275 = sphi 0, %s274
    %s289 = sphi 0, %s275
    %s293 = sphi 0, %s293
    %s295 = sphi 0, %s293
    %s296 = sphi 0, %s295
    %s310 = sphi 0, %s296
    %s314 = sphi 0, %s314
    %s316 = sphi 0, %s314
    %s317 = sphi 0, %s316
    %s331 = sphi 0, %s317
    %s335 = sphi 0, %s335
    %s337 = sphi 0, %s335
    %s338 = sphi 0, %s337
    %s352 = sphi 0, %s338
    %s356 = sphi 0, %s356
    %s358 = sphi 0, %s356
    %s359 = sphi 0, %s358
    %s373 = sphi 0, %s359
    %s377 = sphi 0, %s377
    %s379 = sphi 0, %s377
    %s380 = sphi 0, %s379
    %s394 = sphi 0, %s380
    %s398 = sphi 0, %s398
    %s400 = sphi 0, %s398
    %s401 = sphi 0, %s400
    %s415 = sphi 0, %s401
    %s419 = sphi 0, %s419
    %s421 = sphi 0, %s419
    %s422 = sphi 0, %s421
    %s436 = sphi 0, %s422
    %s440 = sphi 0, %s440
    %s442 = sphi 0, %s440
    %s443 = sphi 0, %s442
    %s457 = sphi 0, %s443
    %s461 = sphi 0, %s461
    %s463 = sphi 0, %s461
    %s464 = sphi 0, %s463
    %s478 = sphi 0, %s464
    %s482 = sphi 0, %s482
    %s484 = sphi 0, %s482
    %s485 = sphi 0, %s484
    %s499 = sphi 0, %s485
    %s505 = sphi 0, %s507
    %s508 = sphi 0, %s505
    %s509 = sphi 0, %s508
    %s525 = sphi 0, %s509
  $region4: #{global_pred_forward.3} parent=0 // loop_header_branch
    %31 = sbr.rel (%p29) target = $region8
  $region5: #{global_pred_forward.3} parent=0 // loop_body
    %s33 = ssub.s32 %s28, 1
    %s34 = ssub.s32 %s28, 2
    %s35 = sadd.s32 %s28, 1
    %s36 = ssub.s32 %s28, %s35
    %p37 = scmp.eq.s32.totalorder %s36, 0
    %s39 = sadd.s32 %s38, 1
    %s40 = scalar_select %p37, %s38, %s39
    %p43 = pneg %p37
    %p44 = scmp.eq.s32.totalorder %s28, 1
    %p45 = por %p43, %p44
    %p46 = scmp.ne.s32.totalorder %s38, %s41
    %p47 = scmp.eq.s32.totalorder %s28, 0
    %p48 = por %p46, %p47
    %p49 = scmp.ne.s32.totalorder %s38, %s41
    %p50 = scmp.eq.s32.totalorder %s33, 1
    %p51 = por %p49, %p50
    %p52 = scmp.ne.s32.totalorder %s41, %s42
    %p53 = scmp.eq.s32.totalorder %s33, 0
    %p54 = por %p52, %p53
    %p55 = scmp.ne.s32.totalorder %s41, %s42
    %p56 = scmp.eq.s32.totalorder %s34, 1
    %p57 = por %p55, %p56
    %p59 = scmp.ne.s32.totalorder %s42, %s58
    %p60 = scmp.eq.s32.totalorder %s34, 0
    %p61 = por %p59, %p60
    %s63 = sadd.s32 %s62, 1
    %p66 = scmp.eq.s32.totalorder %s28, 1
    %p67 = scmp.ne.s32.totalorder %s62, %s64
    %p68 = scmp.eq.s32.totalorder %s28, 0
    %p69 = por %p67, %p68
    %p70 = scmp.ne.s32.totalorder %s62, %s64
    %p71 = scmp.eq.s32.totalorder %s33, 1
    %p72 = por %p70, %p71
    %p73 = scmp.ne.s32.totalorder %s64, %s65
    %p74 = scmp.eq.s32.totalorder %s33, 0
    %p75 = por %p73, %p74
    %p76 = scmp.ne.s32.totalorder %s64, %s65
    %p77 = scmp.eq.s32.totalorder %s34, 1
    %p78 = por %p76, %p77
    %p80 = scmp.ne.s32.totalorder %s65, %s79
    %p81 = scmp.eq.s32.totalorder %s34, 0
    %p82 = por %p80, %p81
    %s84 = sadd.s32 %s83, 1
    %p87 = scmp.eq.s32.totalorder %s28, 1
    %p88 = scmp.ne.s32.totalorder %s83, %s85
    %p89 = scmp.eq.s32.totalorder %s28, 0
    %p90 = por %p88, %p89
    %p91 = scmp.ne.s32.totalorder %s83, %s85
    %p92 = scmp.eq.s32.totalorder %s33, 1
    %p93 = por %p91, %p92
    %p94 = scmp.ne.s32.totalorder %s85, %s86
    %p95 = scmp.eq.s32.totalorder %s33, 0
    %p96 = por %p94, %p95
    %p97 = scmp.ne.s32.totalorder %s85, %s86
    %p98 = scmp.eq.s32.totalorder %s34, 1
    %p99 = por %p97, %p98
    %p101 = scmp.ne.s32.totalorder %s86, %s100
    %p102 = scmp.eq.s32.totalorder %s34, 0
    %p103 = por %p101, %p102
    %s105 = sadd.s32 %s104, 1
    %p108 = scmp.eq.s32.totalorder %s28, 1
    %p109 = scmp.ne.s32.totalorder %s104, %s106
    %p110 = scmp.eq.s32.totalorder %s28, 0
    %p111 = por %p109, %p110
    %p112 = scmp.ne.s32.totalorder %s104, %s106
    %p113 = scmp.eq.s32.totalorder %s33, 1
    %p114 = por %p112, %p113
    %p115 = scmp.ne.s32.totalorder %s106, %s107
    %p116 = scmp.eq.s32.totalorder %s33, 0
    %p117 = por %p115, %p116
    %p118 = scmp.ne.s32.totalorder %s106, %s107
    %p119 = scmp.eq.s32.totalorder %s34, 1
    %p120 = por %p118, %p119
    %p122 = scmp.ne.s32.totalorder %s107, %s121
    %p123 = scmp.eq.s32.totalorder %s34, 0
    %p124 = por %p122, %p123
    %s126 = sadd.s32 %s125, 1
    %p129 = scmp.eq.s32.totalorder %s28, 1
    %p130 = scmp.ne.s32.totalorder %s125, %s127
    %p131 = scmp.eq.s32.totalorder %s28, 0
    %p132 = por %p130, %p131
    %p133 = scmp.ne.s32.totalorder %s125, %s127
    %p134 = scmp.eq.s32.totalorder %s33, 1
    %p135 = por %p133, %p134
    %p136 = scmp.ne.s32.totalorder %s127, %s128
    %p137 = scmp.eq.s32.totalorder %s33, 0
    %p138 = por %p136, %p137
    %p139 = scmp.ne.s32.totalorder %s127, %s128
    %p140 = scmp.eq.s32.totalorder %s34, 1
    %p141 = por %p139, %p140
    %p143 = scmp.ne.s32.totalorder %s128, %s142
    %p144 = scmp.eq.s32.totalorder %s34, 0
    %p145 = por %p143, %p144
    %s147 = sadd.s32 %s146, 1
    %p150 = scmp.eq.s32.totalorder %s28, 1
    %p151 = scmp.ne.s32.totalorder %s146, %s148
    %p152 = scmp.eq.s32.totalorder %s28, 0
    %p153 = por %p151, %p152
    %p154 = scmp.ne.s32.totalorder %s146, %s148
    %p155 = scmp.eq.s32.totalorder %s33, 1
    %p156 = por %p154, %p155
    %p157 = scmp.ne.s32.totalorder %s148, %s149
    %p158 = scmp.eq.s32.totalorder %s33, 0
    %p159 = por %p157, %p158
    %p160 = scmp.ne.s32.totalorder %s148, %s149
    %p161 = scmp.eq.s32.totalorder %s34, 1
    %p162 = por %p160, %p161
    %p164 = scmp.ne.s32.totalorder %s149, %s163
    %p165 = scmp.eq.s32.totalorder %s34, 0
    %p166 = por %p164, %p165
    %s168 = sadd.s32 %s167, 1
    %p171 = scmp.eq.s32.totalorder %s28, 1
    %p172 = scmp.ne.s32.totalorder %s167, %s169
    %p173 = scmp.eq.s32.totalorder %s28, 0
    %p174 = por %p172, %p173
    %p175 = scmp.ne.s32.totalorder %s167, %s169
    %p176 = scmp.eq.s32.totalorder %s33, 1
    %p177 = por %p175, %p176
    %p178 = scmp.ne.s32.totalorder %s169, %s170
    %p179 = scmp.eq.s32.totalorder %s33, 0
    %p180 = por %p178, %p179
    %p181 = scmp.ne.s32.totalorder %s169, %s170
    %p182 = scmp.eq.s32.totalorder %s34, 1
    %p183 = por %p181, %p182
    %p185 = scmp.ne.s32.totalorder %s170, %s184
    %p186 = scmp.eq.s32.totalorder %s34, 0
    %p187 = por %p185, %p186
    %s189 = sadd.s32 %s188, 1
    %p192 = scmp.eq.s32.totalorder %s28, 1
    %p193 = scmp.ne.s32.totalorder %s188, %s190
    %p194 = scmp.eq.s32.totalorder %s28, 0
    %p195 = por %p193, %p194
    %p196 = scmp.ne.s32.totalorder %s188, %s190
    %p197 = scmp.eq.s32.totalorder %s33, 1
    %p198 = por %p196, %p197
    %p199 = scmp.ne.s32.totalorder %s190, %s191
    %p200 = scmp.eq.s32.totalorder %s33, 0
    %p201 = por %p199, %p200
    %p202 = scmp.ne.s32.totalorder %s190, %s191
    %p203 = scmp.eq.s32.totalorder %s34, 1
    %p204 = por %p202, %p203
    %p206 = scmp.ne.s32.totalorder %s191, %s205
    %p207 = scmp.eq.s32.totalorder %s34, 0
    %p208 = por %p206, %p207
    %s210 = sadd.s32 %s209, 1
    %p213 = scmp.eq.s32.totalorder %s28, 1
    %p214 = scmp.ne.s32.totalorder %s209, %s211
    %p215 = scmp.eq.s32.totalorder %s28, 0
    %p216 = por %p214, %p215
    %p217 = scmp.ne.s32.totalorder %s209, %s211
    %p218 = scmp.eq.s32.totalorder %s33, 1
    %p219 = por %p217, %p218
    %p220 = scmp.ne.s32.totalorder %s211, %s212
    %p221 = scmp.eq.s32.totalorder %s33, 0
    %p222 = por %p220, %p221
    %p223 = scmp.ne.s32.totalorder %s211, %s212
    %p224 = scmp.eq.s32.totalorder %s34, 1
    %p225 = por %p223, %p224
    %p227 = scmp.ne.s32.totalorder %s212, %s226
    %p228 = scmp.eq.s32.totalorder %s34, 0
    %p229 = por %p227, %p228
    %s231 = sadd.s32 %s230, 1
    %p234 = scmp.eq.s32.totalorder %s28, 1
    %p235 = scmp.ne.s32.totalorder %s230, %s232
    %p236 = scmp.eq.s32.totalorder %s28, 0
    %p237 = por %p235, %p236
    %p238 = scmp.ne.s32.totalorder %s230, %s232
    %p239 = scmp.eq.s32.totalorder %s33, 1
    %p240 = por %p238, %p239
    %p241 = scmp.ne.s32.totalorder %s232, %s233
    %p242 = scmp.eq.s32.totalorder %s33, 0
    %p243 = por %p241, %p242
    %p244 = scmp.ne.s32.totalorder %s232, %s233
    %p245 = scmp.eq.s32.totalorder %s34, 1
    %p246 = por %p244, %p245
    %p248 = scmp.ne.s32.totalorder %s233, %s247
    %p249 = scmp.eq.s32.totalorder %s34, 0
    %p250 = por %p248, %p249
    %s252 = sadd.s32 %s251, 1
    %p255 = scmp.eq.s32.totalorder %s28, 1
    %p256 = scmp.ne.s32.totalorder %s251, %s253
    %p257 = scmp.eq.s32.totalorder %s28, 0
    %p258 = por %p256, %p257
    %p259 = scmp.ne.s32.totalorder %s251, %s253
    %p260 = scmp.eq.s32.totalorder %s33, 1
    %p261 = por %p259, %p260
    %p262 = scmp.ne.s32.totalorder %s253, %s254
    %p263 = scmp.eq.s32.totalorder %s33, 0
    %p264 = por %p262, %p263
    %p265 = scmp.ne.s32.totalorder %s253, %s254
    %p266 = scmp.eq.s32.totalorder %s34, 1
    %p267 = por %p265, %p266
    %p269 = scmp.ne.s32.totalorder %s254, %s268
    %p270 = scmp.eq.s32.totalorder %s34, 0
    %p271 = por %p269, %p270
    %s273 = sadd.s32 %s272, 1
    %p276 = scmp.eq.s32.totalorder %s28, 1
    %p277 = scmp.ne.s32.totalorder %s272, %s274
    %p278 = scmp.eq.s32.totalorder %s28, 0
    %p279 = por %p277, %p278
    %p280 = scmp.ne.s32.totalorder %s272, %s274
    %p281 = scmp.eq.s32.totalorder %s33, 1
    %p282 = por %p280, %p281
    %p283 = scmp.ne.s32.totalorder %s274, %s275
    %p284 = scmp.eq.s32.totalorder %s33, 0
    %p285 = por %p283, %p284
    %p286 = scmp.ne.s32.totalorder %s274, %s275
    %p287 = scmp.eq.s32.totalorder %s34, 1
    %p288 = por %p286, %p287
    %p290 = scmp.ne.s32.totalorder %s275, %s289
    %p291 = scmp.eq.s32.totalorder %s34, 0
    %p292 = por %p290, %p291
    %s294 = sadd.s32 %s293, 1
    %p297 = scmp.eq.s32.totalorder %s28, 1
    %p298 = scmp.ne.s32.totalorder %s293, %s295
    %p299 = scmp.eq.s32.totalorder %s28, 0
    %p300 = por %p298, %p299
    %p301 = scmp.ne.s32.totalorder %s293, %s295
    %p302 = scmp.eq.s32.totalorder %s33, 1
    %p303 = por %p301, %p302
    %p304 = scmp.ne.s32.totalorder %s295, %s296
    %p305 = scmp.eq.s32.totalorder %s33, 0
    %p306 = por %p304, %p305
    %p307 = scmp.ne.s32.totalorder %s295, %s296
    %p308 = scmp.eq.s32.totalorder %s34, 1
    %p309 = por %p307, %p308
    %p311 = scmp.ne.s32.totalorder %s296, %s310
    %p312 = scmp.eq.s32.totalorder %s34, 0
    %p313 = por %p311, %p312
    %s315 = sadd.s32 %s314, 1
    %p318 = scmp.eq.s32.totalorder %s28, 1
    %p319 = scmp.ne.s32.totalorder %s314, %s316
    %p320 = scmp.eq.s32.totalorder %s28, 0
    %p321 = por %p319, %p320
    %p322 = scmp.ne.s32.totalorder %s314, %s316
    %p323 = scmp.eq.s32.totalorder %s33, 1
    %p324 = por %p322, %p323
    %p325 = scmp.ne.s32.totalorder %s316, %s317
    %p326 = scmp.eq.s32.totalorder %s33, 0
    %p327 = por %p325, %p326
    %p328 = scmp.ne.s32.totalorder %s316, %s317
    %p329 = scmp.eq.s32.totalorder %s34, 1
    %p330 = por %p328, %p329
    %p332 = scmp.ne.s32.totalorder %s317, %s331
    %p333 = scmp.eq.s32.totalorder %s34, 0
    %p334 = por %p332, %p333
    %s336 = sadd.s32 %s335, 1
    %p339 = scmp.eq.s32.totalorder %s28, 1
    %p340 = scmp.ne.s32.totalorder %s335, %s337
    %p341 = scmp.eq.s32.totalorder %s28, 0
    %p342 = por %p340, %p341
    %p343 = scmp.ne.s32.totalorder %s335, %s337
    %p344 = scmp.eq.s32.totalorder %s33, 1
    %p345 = por %p343, %p344
    %p346 = scmp.ne.s32.totalorder %s337, %s338
    %p347 = scmp.eq.s32.totalorder %s33, 0
    %p348 = por %p346, %p347
    %p349 = scmp.ne.s32.totalorder %s337, %s338
    %p350 = scmp.eq.s32.totalorder %s34, 1
    %p351 = por %p349, %p350
    %p353 = scmp.ne.s32.totalorder %s338, %s352
    %p354 = scmp.eq.s32.totalorder %s34, 0
    %p355 = por %p353, %p354
    %s357 = sadd.s32 %s356, 1
    %p360 = scmp.eq.s32.totalorder %s28, 1
    %p361 = scmp.ne.s32.totalorder %s356, %s358
    %p362 = scmp.eq.s32.totalorder %s28, 0
    %p363 = por %p361, %p362
    %p364 = scmp.ne.s32.totalorder %s356, %s358
    %p365 = scmp.eq.s32.totalorder %s33, 1
    %p366 = por %p364, %p365
    %p367 = scmp.ne.s32.totalorder %s358, %s359
    %p368 = scmp.eq.s32.totalorder %s33, 0
    %p369 = por %p367, %p368
    %p370 = scmp.ne.s32.totalorder %s358, %s359
    %p371 = scmp.eq.s32.totalorder %s34, 1
    %p372 = por %p370, %p371
    %p374 = scmp.ne.s32.totalorder %s359, %s373
    %p375 = scmp.eq.s32.totalorder %s34, 0
    %p376 = por %p374, %p375
    %s378 = sadd.s32 %s377, 1
    %p381 = scmp.eq.s32.totalorder %s28, 1
    %p382 = scmp.ne.s32.totalorder %s377, %s379
    %p383 = scmp.eq.s32.totalorder %s28, 0
    %p384 = por %p382, %p383
    %p385 = scmp.ne.s32.totalorder %s377, %s379
    %p386 = scmp.eq.s32.totalorder %s33, 1
    %p387 = por %p385, %p386
    %p388 = scmp.ne.s32.totalorder %s379, %s380
    %p389 = scmp.eq.s32.totalorder %s33, 0
    %p390 = por %p388, %p389
    %p391 = scmp.ne.s32.totalorder %s379, %s380
    %p392 = scmp.eq.s32.totalorder %s34, 1
    %p393 = por %p391, %p392
    %p395 = scmp.ne.s32.totalorder %s380, %s394
    %p396 = scmp.eq.s32.totalorder %s34, 0
    %p397 = por %p395, %p396
    %s399 = sadd.s32 %s398, 1
    %p402 = scmp.eq.s32.totalorder %s28, 1
    %p403 = scmp.ne.s32.totalorder %s398, %s400
    %p404 = scmp.eq.s32.totalorder %s28, 0
    %p405 = por %p403, %p404
    %p406 = scmp.ne.s32.totalorder %s398, %s400
    %p407 = scmp.eq.s32.totalorder %s33, 1
    %p408 = por %p406, %p407
    %p409 = scmp.ne.s32.totalorder %s400, %s401
    %p410 = scmp.eq.s32.totalorder %s33, 0
    %p411 = por %p409, %p410
    %p412 = scmp.ne.s32.totalorder %s400, %s401
    %p413 = scmp.eq.s32.totalorder %s34, 1
    %p414 = por %p412, %p413
    %p416 = scmp.ne.s32.totalorder %s401, %s415
    %p417 = scmp.eq.s32.totalorder %s34, 0
    %p418 = por %p416, %p417
    %s420 = sadd.s32 %s419, 1
    %p423 = scmp.eq.s32.totalorder %s28, 1
    %p424 = scmp.ne.s32.totalorder %s419, %s421
    %p425 = scmp.eq.s32.totalorder %s28, 0
    %p426 = por %p424, %p425
    %p427 = scmp.ne.s32.totalorder %s419, %s421
    %p428 = scmp.eq.s32.totalorder %s33, 1
    %p429 = por %p427, %p428
    %p430 = scmp.ne.s32.totalorder %s421, %s422
    %p431 = scmp.eq.s32.totalorder %s33, 0
    %p432 = por %p430, %p431
    %p433 = scmp.ne.s32.totalorder %s421, %s422
    %p434 = scmp.eq.s32.totalorder %s34, 1
    %p435 = por %p433, %p434
    %p437 = scmp.ne.s32.totalorder %s422, %s436
    %p438 = scmp.eq.s32.totalorder %s34, 0
    %p439 = por %p437, %p438
    %s441 = sadd.s32 %s440, 1
    %p444 = scmp.eq.s32.totalorder %s28, 1
    %p445 = scmp.ne.s32.totalorder %s440, %s442
    %p446 = scmp.eq.s32.totalorder %s28, 0
    %p447 = por %p445, %p446
    %p448 = scmp.ne.s32.totalorder %s440, %s442
    %p449 = scmp.eq.s32.totalorder %s33, 1
    %p450 = por %p448, %p449
    %p451 = scmp.ne.s32.totalorder %s442, %s443
    %p452 = scmp.eq.s32.totalorder %s33, 0
    %p453 = por %p451, %p452
    %p454 = scmp.ne.s32.totalorder %s442, %s443
    %p455 = scmp.eq.s32.totalorder %s34, 1
    %p456 = por %p454, %p455
    %p458 = scmp.ne.s32.totalorder %s443, %s457
    %p459 = scmp.eq.s32.totalorder %s34, 0
    %p460 = por %p458, %p459
    %s462 = sadd.s32 %s461, 1
    %p465 = scmp.eq.s32.totalorder %s28, 1
    %p466 = scmp.ne.s32.totalorder %s461, %s463
    %p467 = scmp.eq.s32.totalorder %s28, 0
    %p468 = por %p466, %p467
    %p469 = scmp.ne.s32.totalorder %s461, %s463
    %p470 = scmp.eq.s32.totalorder %s33, 1
    %p471 = por %p469, %p470
    %p472 = scmp.ne.s32.totalorder %s463, %s464
    %p473 = scmp.eq.s32.totalorder %s33, 0
    %p474 = por %p472, %p473
    %p475 = scmp.ne.s32.totalorder %s463, %s464
    %p476 = scmp.eq.s32.totalorder %s34, 1
    %p477 = por %p475, %p476
    %p479 = scmp.ne.s32.totalorder %s464, %s478
    %p480 = scmp.eq.s32.totalorder %s34, 0
    %p481 = por %p479, %p480
    %s483 = sadd.s32 %s482, 1
    %p486 = scmp.eq.s32.totalorder %s28, 1
    %p487 = scmp.ne.s32.totalorder %s482, %s484
    %p488 = scmp.eq.s32.totalorder %s28, 0
    %p489 = por %p487, %p488
    %p490 = scmp.ne.s32.totalorder %s482, %s484
    %p491 = scmp.eq.s32.totalorder %s33, 1
    %p492 = por %p490, %p491
    %p493 = scmp.ne.s32.totalorder %s484, %s485
    %p494 = scmp.eq.s32.totalorder %s33, 0
    %p495 = por %p493, %p494
    %p496 = scmp.ne.s32.totalorder %s484, %s485
    %p497 = scmp.eq.s32.totalorder %s34, 1
    %p498 = por %p496, %p497
    %p500 = scmp.ne.s32.totalorder %s485, %s499
    %p501 = scmp.eq.s32.totalorder %s34, 0
    %p502 = por %p500, %p501
    %s503 = ssub.s32 %s28, %s35
    %p504 = scmp.eq.s32.totalorder %s503, 0
    %s506 = sadd.s32 %s505, 1
    %s507 = scalar_select %p504, %s505, %s506
    %p510 = pneg %p504
    %p511 = scmp.eq.s32.totalorder %s28, 1
    %p512 = por %p510, %p511
    %p513 = scmp.ne.s32.totalorder %s505, %s508
    %p514 = scmp.eq.s32.totalorder %s28, 0
    %p515 = por %p513, %p514
    %p516 = scmp.ne.s32.totalorder %s505, %s508
    %p517 = scmp.eq.s32.totalorder %s33, 1
    %p518 = por %p516, %p517
    %p519 = scmp.ne.s32.totalorder %s508, %s509
    %p520 = scmp.eq.s32.totalorder %s33, 0
    %p521 = por %p519, %p520
    %p522 = scmp.ne.s32.totalorder %s508, %s509
    %p523 = scmp.eq.s32.totalorder %s34, 1
    %p524 = por %p522, %p523
    %p526 = scmp.ne.s32.totalorder %s509, %s525
    %p527 = scmp.eq.s32.totalorder %s34, 0
    %p528 = por %p526, %p527
    %p529 = scmp.le.s32.totalorder 1, %s28
    %p530 = scmp.lt.s32.totalorder %s28, 3
    %p531 = pnand %p529, %p530
    %p532 = pneg %p531
    // Predicated region
    $region9: #{global_pred_forward.3} parent=5 // pred_check
      _
    $region10: #{global_pred_forward.3} parent=5 // pred_check_branch
      %534 = sbr.rel (%p531) target = $region12
    $region11: #{global_pred_forward.3} parent=5 // pred_region
      %s535 = ssub.s32 %s28, 1
      // Predicated region
      $region13: #{global_pred_forward.3} parent=11 // pred_check
        %p536 = pneg %p75
      $region14: #{global_pred_forward.3} parent=11 // pred_check_branch
        %538 = sbr.rel (%p536) target = $region16
      $region15: #{global_pred_forward.3} parent=11 // pred_region
        _
      $region16: #{global_pred_forward.3} parent=11 // pred_fallthru
        _
      // Predicated region
      $region17: #{global_pred_forward.3} parent=11 // pred_check
        %p539 = pneg %p96
      $region18: #{global_pred_forward.3} parent=11 // pred_check_branch
        %541 = sbr.rel (%p539) target = $region20
      $region19: #{global_pred_forward.3} parent=11 // pred_region
        _
      $region20: #{global_pred_forward.3} parent=11 // pred_fallthru
        _
      // Predicated region
      $region21: #{global_pred_forward.3} parent=11 // pred_check
        %p542 = pneg %p117
      $region22: #{global_pred_forward.3} parent=11 // pred_check_branch
        %544 = sbr.rel (%p542) target = $region24
      $region23: #{global_pred_forward.3} parent=11 // pred_region
        _
      $region24: #{global_pred_forward.3} parent=11 // pred_fallthru
        _
      // Predicated region
      $region25: #{global_pred_forward.3} parent=11 // pred_check
        %p545 = pneg %p138
      $region26: #{global_pred_forward.3} parent=11 // pred_check_branch
        %547 = sbr.rel (%p545) target = $region28
      $region27: #{global_pred_forward.3} parent=11 // pred_region
        _
      $region28: #{global_pred_forward.3} parent=11 // pred_fallthru
        _
      // Predicated region
      $region29: #{global_pred_forward.3} parent=11 // pred_check
        %p548 = pneg %p159
      $region30: #{global_pred_forward.3} parent=11 // pred_check_branch
        %550 = sbr.rel (%p548) target = $region32
      $region31: #{global_pred_forward.3} parent=11 // pred_region
        _
      $region32: #{global_pred_forward.3} parent=11 // pred_fallthru
        _
      // Predicated region
      $region33: #{global_pred_forward.3} parent=11 // pred_check
        %p551 = pneg %p180
      $region34: #{global_pred_forward.3} parent=11 // pred_check_branch
        %553 = sbr.rel (%p551) target = $region36
      $region35: #{global_pred_forward.3} parent=11 // pred_region
        _
      $region36: #{global_pred_forward.3} parent=11 // pred_fallthru
        _
      // Predicated region
      $region37: #{global_pred_forward.3} parent=11 // pred_check
        %p554 = pneg %p201
      $region38: #{global_pred_forward.3} parent=11 // pred_check_branch
        %556 = sbr.rel (%p554) target = $region40
      $region39: #{global_pred_forward.3} parent=11 // pred_region
        _
      $region40: #{global_pred_forward.3} parent=11 // pred_fallthru
        _
      // Predicated region
      $region41: #{global_pred_forward.3} parent=11 // pred_check
        %p557 = pneg %p222
      $region42: #{global_pred_forward.3} parent=11 // pred_check_branch
        %559 = sbr.rel (%p557) target = $region44
      $region43: #{global_pred_forward.3} parent=11 // pred_region
        _
      $region44: #{global_pred_forward.3} parent=11 // pred_fallthru
        _
      // Predicated region
      $region45: #{global_pred_forward.3} parent=11 // pred_check
        %p560 = pneg %p243
      $region46: #{global_pred_forward.3} parent=11 // pred_check_branch
        %562 = sbr.rel (%p560) target = $region48
      $region47: #{global_pred_forward.3} parent=11 // pred_region
        _
      $region48: #{global_pred_forward.3} parent=11 // pred_fallthru
        _
      // Predicated region
      $region49: #{global_pred_forward.3} parent=11 // pred_check
        %p563 = pneg %p264
      $region50: #{global_pred_forward.3} parent=11 // pred_check_branch
        %565 = sbr.rel (%p563) target = $region52
      $region51: #{global_pred_forward.3} parent=11 // pred_region
        _
      $region52: #{global_pred_forward.3} parent=11 // pred_fallthru
        _
      // Predicated region
      $region53: #{global_pred_forward.3} parent=11 // pred_check
        %p566 = pneg %p285
      $region54: #{global_pred_forward.3} parent=11 // pred_check_branch
        %568 = sbr.rel (%p566) target = $region56
      $region55: #{global_pred_forward.3} parent=11 // pred_region
        _
      $region56: #{global_pred_forward.3} parent=11 // pred_fallthru
        _
      // Predicated region
      $region57: #{global_pred_forward.3} parent=11 // pred_check
        %p569 = pneg %p306
      $region58: #{global_pred_forward.3} parent=11 // pred_check_branch
        %571 = sbr.rel (%p569) target = $region60
      $region59: #{global_pred_forward.3} parent=11 // pred_region
        _
      $region60: #{global_pred_forward.3} parent=11 // pred_fallthru
        _
      // Predicated region
      $region61: #{global_pred_forward.3} parent=11 // pred_check
        %p572 = pneg %p327
      $region62: #{global_pred_forward.3} parent=11 // pred_check_branch
        %574 = sbr.rel (%p572) target = $region64
      $region63: #{global_pred_forward.3} parent=11 // pred_region
        _
      $region64: #{global_pred_forward.3} parent=11 // pred_fallthru
        _
      // Predicated region
      $region65: #{global_pred_forward.3} parent=11 // pred_check
        %p575 = pneg %p348
      $region66: #{global_pred_forward.3} parent=11 // pred_check_branch
        %577 = sbr.rel (%p575) target = $region68
      $region67: #{global_pred_forward.3} parent=11 // pred_region
        _
      $region68: #{global_pred_forward.3} parent=11 // pred_fallthru
        _
      // Predicated region
      $region69: #{global_pred_forward.3} parent=11 // pred_check
        %p578 = pneg %p369
      $region70: #{global_pred_forward.3} parent=11 // pred_check_branch
        %580 = sbr.rel (%p578) target = $region72
      $region71: #{global_pred_forward.3} parent=11 // pred_region
        _
      $region72: #{global_pred_forward.3} parent=11 // pred_fallthru
        _
      // Predicated region
      $region73: #{global_pred_forward.3} parent=11 // pred_check
        %p581 = pneg %p390
      $region74: #{global_pred_forward.3} parent=11 // pred_check_branch
        %583 = sbr.rel (%p581) target = $region76
      $region75: #{global_pred_forward.3} parent=11 // pred_region
        _
      $region76: #{global_pred_forward.3} parent=11 // pred_fallthru
        _
      // Predicated region
      $region77: #{global_pred_forward.3} parent=11 // pred_check
        %p584 = pneg %p411
      $region78: #{global_pred_forward.3} parent=11 // pred_check_branch
        %586 = sbr.rel (%p584) target = $region80
      $region79: #{global_pred_forward.3} parent=11 // pred_region
        _
      $region80: #{global_pred_forward.3} parent=11 // pred_fallthru
        _
      // Predicated region
      $region81: #{global_pred_forward.3} parent=11 // pred_check
        %p587 = pneg %p432
      $region82: #{global_pred_forward.3} parent=11 // pred_check_branch
        %589 = sbr.rel (%p587) target = $region84
      $region83: #{global_pred_forward.3} parent=11 // pred_region
        _
      $region84: #{global_pred_forward.3} parent=11 // pred_fallthru
        _
      // Predicated region
      $region85: #{global_pred_forward.3} parent=11 // pred_check
        %p590 = pneg %p453
      $region86: #{global_pred_forward.3} parent=11 // pred_check_branch
        %592 = sbr.rel (%p590) target = $region88
      $region87: #{global_pred_forward.3} parent=11 // pred_region
        _
      $region88: #{global_pred_forward.3} parent=11 // pred_fallthru
        _
      // Predicated region
      $region89: #{global_pred_forward.3} parent=11 // pred_check
        %p593 = pneg %p474
      $region90: #{global_pred_forward.3} parent=11 // pred_check_branch
        %595 = sbr.rel (%p593) target = $region92
      $region91: #{global_pred_forward.3} parent=11 // pred_region
        _
      $region92: #{global_pred_forward.3} parent=11 // pred_fallthru
        _
      // Predicated region
      $region93: #{global_pred_forward.3} parent=11 // pred_check
        %p596 = pneg %p495
      $region94: #{global_pred_forward.3} parent=11 // pred_check_branch
        %598 = sbr.rel (%p596) target = $region96
      $region95: #{global_pred_forward.3} parent=11 // pred_region
        _
      $region96: #{global_pred_forward.3} parent=11 // pred_fallthru
        _
    $region12: #{global_pred_forward.3} parent=5 // pred_fallthru
      _
    %p599 = scmp.lt.s32.totalorder %s28, 2
    // Predicated region
    $region97: #{global_pred_forward.3} parent=5 // pred_check
      %p600 = pneg %p599
    $region98: #{global_pred_forward.3} parent=5 // pred_check_branch
      %602 = sbr.rel (%p600) target = $region100
    $region99: #{global_pred_forward.3} parent=5 // pred_region
      // Predicated region
      $region101: #{global_pred_forward.3} parent=99 // pred_check
        %p603 = pneg %p48
      $region102: #{global_pred_forward.3} parent=99 // pred_check_branch
        %605 = sbr.rel (%p603) target = $region104
      $region103: #{global_pred_forward.3} parent=99 // pred_region
        %p606 = scmp.lt.s32.totalorder %s28, 1
        %s607 = scalar_select %p606, %s28, 1
        %s608 = smul.addr %s607, 6
        %s609 = smul.addr %s608, 4
        %s610 = scalar_lea.vmem %s0, %s609
      $region104: #{global_pred_forward.3} parent=99 // pred_fallthru
        _
    $region100: #{global_pred_forward.3} parent=5 // pred_fallthru
      _
    %p611 = scmp.le.s32.totalorder 1, %s28
    %p612 = scmp.lt.s32.totalorder %s28, 3
    %p613 = pnand %p611, %p612
    %p614 = pneg %p613
    // Predicated region
    $region105: #{global_pred_forward.3} parent=5 // pred_check
      _
    $region106: #{global_pred_forward.3} parent=5 // pred_check_branch
      %616 = sbr.rel (%p613) target = $region108
    $region107: #{global_pred_forward.3} parent=5 // pred_region
      %s617 = ssub.s32 %s28, 1
      %p618 = scmp.lt.s32.totalorder %s33, 1
      %s619 = scalar_select %p618, %s33, 1
      %s620 = smul.addr %s619, 6
      %s621 = smul.addr %s620, 4
      %s622 = scalar_lea.vmem %s0, %s621
      %p623 = pneg %p54
      %p624 = pneg %p51
      %p625 = pneg %p75
      %p626 = pneg %p72
      %p627 = pneg %p96
      %p628 = pneg %p93
      %p629 = pneg %p117
      %p630 = pneg %p114
      %p631 = pneg %p138
      %p632 = pneg %p135
      %p633 = pneg %p159
      %p634 = pneg %p156
      %p635 = pneg %p180
      %p636 = pneg %p177
      %p637 = pneg %p201
      %p638 = pneg %p198
      %p639 = pneg %p222
      %p640 = pneg %p219
      %p641 = pneg %p243
      %p642 = pneg %p240
      %p643 = pneg %p264
      %p644 = pneg %p261
      %p645 = pneg %p285
      %p646 = pneg %p282
      %p647 = pneg %p306
      %p648 = pneg %p303
      %p649 = pneg %p327
      %p650 = pneg %p324
      %p651 = pneg %p348
      %p652 = pneg %p345
      %p653 = pneg %p369
      %p654 = pneg %p366
      %p655 = pneg %p390
      %p656 = pneg %p387
      %p657 = pneg %p411
      %p658 = pneg %p408
      %p659 = pneg %p432
      %p660 = pneg %p429
      %p661 = pneg %p453
      %p662 = pneg %p450
      %p663 = pneg %p474
      %p664 = pneg %p471
      %p665 = pneg %p495
      %p666 = pneg %p492
      %p667 = pneg %p521
      %p668 = pneg %p518
      %p669 = scmp.lt.s32.totalorder %s33, 1
      %s670 = scalar_select %p669, %s33, 1
      %s671 = scalar_lea.vmem %s22, %s670
      %p672 = scmp.lt.s32.totalorder %s33, 1
      %s673 = scalar_select %p672, %s33, 1
      %s674 = smul.addr %s673, 6
      %s675 = smul.addr %s674, 4
      %s676 = scalar_lea.vmem %s0, %s675
      %p677 = scmp.lt.s32.totalorder %s33, 1
      %s678 = scalar_select %p677, %s33, 1
      %s679 = scalar_lea.vmem %s22, %s678
      %v681 = vld [vmem:[%s676] sm:$0xff]
      %v682 = vld [vmem:[%s676 + $0x8] sm:$0xf]
      %v683 = vld [vmem:[%s676 + $0xc] sm:$0xff]
      %v684 = vld [vmem:[%s676 + $0x14] sm:$0xf]
      %v685 = vld [vmem:[%s2] sm:$0xf]
      %v686 = vld [vmem:[%s2 + $0x4] sm:$0xf]
      %v687 = vld [vmem:[%s2 + $0x8] sm:$0xf]
      %v688 = vld [vmem:[%s2 + $0xc] sm:$0xf]
      %v689 = vld [vmem:[%s2 + $0x10] sm:$0xf]
      %v690 = vld [vmem:[%s2 + $0x14] sm:$0xf]
      %v691 = vld [vmem:[%s2 + $0x18] sm:$0xf]
      %v692 = vld [vmem:[%s2 + $0x1c] sm:$0xf]
      %v693 = vld [vmem:[%s2 + $0x20] sm:$0xf]
      %v694 = vld [vmem:[%s2 + $0x24] sm:$0xf]
      %v695 = vld [vmem:[%s2 + $0x28] sm:$0xf]
      %v696 = vld [vmem:[%s2 + $0x2c] sm:$0xf]
      %v697 = vld [vmem:[%s2 + $0x30] sm:$0xf]
      %v698 = vld [vmem:[%s2 + $0x34] sm:$0xf]
      %v699 = vld [vmem:[%s2 + $0x38] sm:$0xf]
      %v700 = vld [vmem:[%s2 + $0x3c] sm:$0xf]
      %v701 = vld [vmem:[%s2 + $0x40] sm:$0xf]
      %v702 = vld [vmem:[%s2 + $0x44] sm:$0xf]
      %v703 = vld [vmem:[%s2 + $0x48] sm:$0xf]
      %v704 = vld [vmem:[%s2 + $0x4c] sm:$0xf]
      %v705 = vld [vmem:[%s2 + $0x50] sm:$0xf]
      %v706 = vld [vmem:[%s2 + $0x54] sm:$0xf]
      %v707 = vld [vmem:[%s2 + $0x58] sm:$0xf]
      %v708 = vld [vmem:[%s2 + $0x5c] sm:$0xf]
      %v709 = vld [vmem:[%s2 + $0x60] sm:$0xf]
      %v710 = vld [vmem:[%s2 + $0x64] sm:$0xf]
      %v711 = vld [vmem:[%s2 + $0x68] sm:$0xf]
      %v712 = vld [vmem:[%s2 + $0x6c] sm:$0xf]
      %v713 = vld [vmem:[%s2 + $0x70] sm:$0xf]
      %v714 = vld [vmem:[%s2 + $0x74] sm:$0xf]
      %v715 = vld [vmem:[%s2 + $0x78] sm:$0xf]
      %v716 = vld [vmem:[%s2 + $0x7c] sm:$0xf]
      %v717 = vld [vmem:[%s2 + $0x80] sm:$0xf]
      %v718 = vld [vmem:[%s2 + $0x84] sm:$0xf]
      %v719 = vld [vmem:[%s2 + $0x88] sm:$0xf]
      %v720 = vld [vmem:[%s2 + $0x8c] sm:$0xf]
      %v721 = vld [vmem:[%s3] sm:$0x1]
      %v723 = vlaneseq
      %v724 = vshrl.u32 %v723, 7
      %v725 = vsub.s32 0, %v724
      %v726 = vrot.slane %v721, %v725
      %v732 = vunpack.c.l.b16 %v681
      %v733 = vunpack.c.h.b16 %v681
      %v734 = vunpack.c.l.b16 %v682
      %v735 = vunpack.c.l.b16 %v683
      %v736 = vunpack.c.h.b16 %v683
      %v737 = vunpack.c.l.b16 %v684
      %v738 = vpack.c.b16 %v735, %v732
      %v739 = vpack.c.b16 %v736, %v733
      %v740 = vpack.c.b16 %v737, %v734
      %v779 = vunpack.c.l.b16 %v685
      %v780 = vunpack.c.l.b16 %v686
      %v781 = vunpack.c.l.b16 %v687
      %v782 = vunpack.c.l.b16 %v688
      %v783 = vunpack.c.l.b16 %v689
      %v784 = vunpack.c.l.b16 %v690
      %v785 = vunpack.c.l.b16 %v691
      %v786 = vunpack.c.l.b16 %v692
      %v787 = vunpack.c.l.b16 %v693
      %v788 = vunpack.c.l.b16 %v694
      %v789 = vunpack.c.l.b16 %v695
      %v790 = vunpack.c.l.b16 %v696
      %v791 = vunpack.c.l.b16 %v697
      %v792 = vunpack.c.l.b16 %v698
      %v793 = vunpack.c.l.b16 %v699
      %v794 = vunpack.c.l.b16 %v700
      %v795 = vunpack.c.l.b16 %v701
      %v796 = vunpack.c.l.b16 %v702
      %v797 = vunpack.c.l.b16 %v703
      %v798 = vunpack.c.l.b16 %v704
      %v799 = vunpack.c.l.b16 %v705
      %v800 = vunpack.c.l.b16 %v706
      %v801 = vunpack.c.l.b16 %v707
      %v802 = vunpack.c.l.b16 %v708
      %v803 = vunpack.c.l.b16 %v709
      %v804 = vunpack.c.l.b16 %v710
      %v805 = vunpack.c.l.b16 %v711
      %v806 = vunpack.c.l.b16 %v712
      %v807 = vunpack.c.l.b16 %v713
      %v808 = vunpack.c.l.b16 %v714
      %v809 = vunpack.c.l.b16 %v715
      %v810 = vunpack.c.l.b16 %v716
      %v811 = vunpack.c.l.b16 %v717
      %v812 = vunpack.c.l.b16 %v718
      %v813 = vunpack.c.l.b16 %v719
      %v814 = vunpack.c.l.b16 %v720
      %v815 = vpack.c.b16 %v780, %v779
      %v816 = vpack.c.b16 %v782, %v781
      %v817 = vpack.c.b16 %v784, %v783
      %v818 = vpack.c.b16 %v786, %v785
      %v819 = vpack.c.b16 %v788, %v787
      %v820 = vpack.c.b16 %v790, %v789
      %v821 = vpack.c.b16 %v792, %v791
      %v822 = vpack.c.b16 %v794, %v793
      %v823 = vpack.c.b16 %v796, %v795
      %v824 = vpack.c.b16 %v798, %v797
      %v825 = vpack.c.b16 %v800, %v799
      %v826 = vpack.c.b16 %v802, %v801
      %v827 = vpack.c.b16 %v804, %v803
      %v828 = vpack.c.b16 %v806, %v805
      %v829 = vpack.c.b16 %v808, %v807
      %v830 = vpack.c.b16 %v810, %v809
      %v831 = vpack.c.b16 %v812, %v811
      %v832 = vpack.c.b16 %v814, %v813
      %vm851 = vcmask 261120
      %v853 = vsel %vm851, %v740, 0
      %855 = vmatprep.subr.bf16.mxu0 0
      %856 = vmatpush1.bf16.msra.mxu0 %v815
      %857 = vmatprep.subr.bf16.mxu0 0
      %858 = vmatpush1.bf16.msra.mxu0 %v816
      %859 = vmatprep.subr.bf16.mxu0 0
      %860 = vmatpush1.bf16.msra.mxu0 %v817
      %861 = vmatprep.subr.bf16.mxu0 0
      %862 = vmatpush1.bf16.msra.mxu0 %v818
      %863 = vmatprep.subr.bf16.mxu0 0
      %864 = vmatpush1.bf16.msra.mxu0 %v819
      %865 = vmatprep.subr.bf16.mxu0 0
      %866 = vmatpush1.bf16.msra.mxu0 %v820
      %867 = vmatprep.subr.bf16.mxu0 0
      %868 = vmatpush1.bf16.msra.mxu0 %v821
      %869 = vmatprep.subr.bf16.mxu0 0
      %870 = vmatpush1.bf16.msra.mxu0 %v822
      %871 = vmatprep.subr.bf16.mxu0 0
      %872 = vmatpush1.bf16.msra.mxu0 %v823
      %873 = vmatprep.subr.bf16.mxu0 0
      %874 = vmatpush1.bf16.msra.mxu0 %v824
      %875 = vmatprep.subr.bf16.mxu0 0
      %876 = vmatpush1.bf16.msra.mxu0 %v825
      %877 = vmatprep.subr.bf16.mxu0 0
      %878 = vmatpush1.bf16.msra.mxu0 %v826
      %879 = vmatprep.subr.bf16.mxu0 0
      %880 = vmatpush1.bf16.msra.mxu0 %v827
      %881 = vmatprep.subr.bf16.mxu0 0
      %882 = vmatpush1.bf16.msra.mxu0 %v828
      %883 = vmatprep.subr.bf16.mxu0 0
      %884 = vmatpush1.bf16.msra.mxu0 %v829
      %885 = vmatprep.subr.bf16.mxu0 0
      %886 = vmatpush1.bf16.msra.mxu0 %v830
      %887 = vmatprep.mubr.bf16.mxu0 %v739
      %888 = vmatmul.mubr.bf16.gmra.mrb[0].mxu0 %v738
      %v889 = vpop.f32.mrb[0].mxu0
      %v890 = vadd.f32 %v726, %v889
      %v891 = vpop.f32.mrb[0].mxu0
      %v892 = vpop.f32.mrb[0].mxu0
      %v893 = vadd.f32 %v726, %v892
      %v894 = vpop.f32.mrb[0].mxu0
      %895 = vdwg.mxu0
      %896 = vmatprep.subr.bf16.mxu0 0
      %897 = vmatpush1.bf16.msra.mxu0 %v831
      %898 = vmatprep.subr.bf16.mxu0 0
      %899 = vmatpush1.bf16.msra.mxu0 %v832
      %900 = vmatprep.subr.bf16.mxu0 0
      %901 = vmatpush1.bf16.msra.mxu0 0
      %902 = vmatprep.subr.bf16.mxu0 0
      %903 = vmatpush1.bf16.msra.mxu0 0
      %904 = vmatprep.subr.bf16.mxu0 0
      %905 = vmatpush1.bf16.msra.mxu0 0
      %906 = vmatprep.subr.bf16.mxu0 0
      %907 = vmatpush1.bf16.msra.mxu0 0
      %908 = vmatprep.subr.bf16.mxu0 0
      %909 = vmatpush1.bf16.msra.mxu0 0
      %910 = vmatprep.subr.bf16.mxu0 0
      %911 = vmatpush1.bf16.msra.mxu0 0
      %912 = vmatprep.subr.bf16.mxu0 0
      %913 = vmatpush1.bf16.msra.mxu0 0
      %914 = vmatprep.subr.bf16.mxu0 0
      %915 = vmatpush1.bf16.msra.mxu0 0
      %916 = vmatprep.subr.bf16.mxu0 0
      %917 = vmatpush1.bf16.msra.mxu0 0
      %918 = vmatprep.subr.bf16.mxu0 0
      %919 = vmatpush1.bf16.msra.mxu0 0
      %920 = vmatprep.subr.bf16.mxu0 0
      %921 = vmatpush1.bf16.msra.mxu0 0
      %922 = vmatprep.subr.bf16.mxu0 0
      %923 = vmatpush1.bf16.msra.mxu0 0
      %924 = vmatprep.subr.bf16.mxu0 0
      %925 = vmatpush1.bf16.msra.mxu0 0
      %926 = vmatprep.subr.bf16.mxu0 0
      %927 = vmatpush1.bf16.msra.mxu0 0
      %928 = vmatprep.mubr.bf16.mxu0 0
      %929 = vmatmul.mubr.bf16.gmra.mrb[0].mxu0 %v853
      %v930 = vpop.f32.mrb[0].mxu0
      %v931 = vadd.f32 %v890, %v930
      %v932 = vpop.f32.mrb[0].mxu0
      %v933 = vpop.f32.mrb[0].mxu0
      %v934 = vadd.f32 %v893, %v933
      %v935 = vpop.f32.mrb[0].mxu0
      %936 = vdwg.mxu0
      %v937 = vld [vmem:[%s1] sm:$0xff]
      %v938 = vld [vmem:[%s1 + $0x8] sm:$0xff]
      %v939 = vld [vmem:[%s1 + $0x10] sm:$0xff]
      %v940 = vld [vmem:[%s1 + $0x18] sm:$0xff]
      %v941 = vld [vmem:[%s1 + $0x20] sm:$0xff]
      %v942 = vld [vmem:[%s1 + $0x28] sm:$0xff]
      %v943 = vld [vmem:[%s1 + $0x30] sm:$0xff]
      %v944 = vld [vmem:[%s1 + $0x38] sm:$0xff]
      %v945 = vld [vmem:[%s1 + $0x40] sm:$0xff]
      %v946 = vld [vmem:[%s1 + $0x48] sm:$0xff]
      %v947 = vld [vmem:[%s1 + $0x50] sm:$0xff]
      %v948 = vld [vmem:[%s1 + $0x58] sm:$0xff]
      %v949 = vld [vmem:[%s1 + $0x60] sm:$0xff]
      %v950 = vld [vmem:[%s1 + $0x68] sm:$0xff]
      %v951 = vld [vmem:[%s1 + $0x70] sm:$0xff]
      %v952 = vld [vmem:[%s1 + $0x78] sm:$0xff]
      %v953 = vld [vmem:[%s1 + $0x80] sm:$0xff]
      %v954 = vld [vmem:[%s1 + $0x88] sm:$0xff]
      %vm955 = vcmask 130048
      %v957 = vsel %vm955, %v937, 0
      %v960 = vsel %vm955, %v938, 0
      %v963 = vsel %vm955, %v939, 0
      %v966 = vsel %vm955, %v940, 0
      %v969 = vsel %vm955, %v941, 0
      %v972 = vsel %vm955, %v942, 0
      %v975 = vsel %vm955, %v943, 0
      %v978 = vsel %vm955, %v944, 0
      %v981 = vsel %vm955, %v945, 0
      %v984 = vsel %vm955, %v946, 0
      %v987 = vsel %vm955, %v947, 0
      %v990 = vsel %vm955, %v948, 0
      %v993 = vsel %vm955, %v949, 0
      %v996 = vsel %vm955, %v950, 0
      %v999 = vsel %vm955, %v951, 0
      %v1002 = vsel %vm955, %v952, 0
      %v1005 = vsel %vm955, %v953, 0
      %v1008 = vsel %vm955, %v954, 0
      %1010 = vmatprep.subr.mxu0 0.0
      %1011 = vmatpush1.msra.mxu0 %v931
      %1012 = vmatprep.subr.mxu0 0.0
      %1013 = vmatpush1.msra.mxu0 %v934
      %1014 = vmatprep.subr.mxu0 0.0
      %1015 = vmatpush1.msra.mxu0 0.0
      %1016 = vmatprep.subr.mxu0 0.0
      %1017 = vmatpush1.msra.mxu0 0.0
      %1018 = vmatprep.subr.mxu0 0.0
      %1019 = vmatpush1.msra.mxu0 0.0
      %1020 = vmatprep.subr.mxu0 0.0
      %1021 = vmatpush1.msra.mxu0 0.0
      %1022 = vmatprep.subr.mxu0 0.0
      %1023 = vmatpush1.msra.mxu0 0.0
      %1024 = vmatprep.subr.mxu0 0.0
      %1025 = vmatpush1.msra.mxu0 0.0
      %1026 = vmatprep.subr.mxu0 0.0
      %1027 = vmatpush1.msra.mxu0 0.0
      %1028 = vmatprep.subr.mxu0 0.0
      %1029 = vmatpush1.msra.mxu0 0.0
      %1030 = vmatprep.subr.mxu0 0.0
      %1031 = vmatpush1.msra.mxu0 0.0
      %1032 = vmatprep.subr.mxu0 0.0
      %1033 = vmatpush1.msra.mxu0 0.0
      %1034 = vmatprep.subr.mxu0 0.0
      %1035 = vmatpush1.msra.mxu0 0.0
      %1036 = vmatprep.subr.mxu0 0.0
      %1037 = vmatpush1.msra.mxu0 0.0
      %1038 = vmatprep.subr.mxu0 0.0
      %1039 = vmatpush1.msra.mxu0 0.0
      %1040 = vmatprep.subr.mxu0 0.0
      %1041 = vmatpush1.msra.mxu0 0.0
      %1042 = vmatprep.subr.mxu0 0.0
      %1043 = vmatpush1.msra.mxu0 0.0
      %1044 = vmatprep.subr.mxu0 0.0
      %1045 = vmatpush1.msra.mxu0 0.0
      %1046 = vmatprep.subr.mxu0 0.0
      %1047 = vmatpush1.msra.mxu0 0.0
      %1048 = vmatprep.subr.mxu0 0.0
      %1049 = vmatpush1.msra.mxu0 0.0
      %1050 = vmatprep.subr.mxu0 0.0
      %1051 = vmatpush1.msra.mxu0 0.0
      %1052 = vmatprep.subr.mxu0 0.0
      %1053 = vmatpush1.msra.mxu0 0.0
      %1054 = vmatprep.subr.mxu0 0.0
      %1055 = vmatpush1.msra.mxu0 0.0
      %1056 = vmatprep.subr.mxu0 0.0
      %1057 = vmatpush1.msra.mxu0 0.0
      %1058 = vmatprep.subr.mxu0 0.0
      %1059 = vmatpush1.msra.mxu0 0.0
      %1060 = vmatprep.subr.mxu0 0.0
      %1061 = vmatpush1.msra.mxu0 0.0
      %1062 = vmatprep.subr.mxu0 0.0
      %1063 = vmatpush1.msra.mxu0 0.0
      %1064 = vmatprep.subr.mxu0 0.0
      %1065 = vmatpush1.msra.mxu0 0.0
      %1066 = vmatprep.subr.mxu0 0.0
      %1067 = vmatpush1.msra.mxu0 0.0
      %1068 = vmatprep.subr.mxu0 0.0
      %1069 = vmatpush1.msra.mxu0 0.0
      %1070 = vmatprep.subr.mxu0 0.0
      %1071 = vmatpush1.msra.mxu0 0.0
      %1072 = vmatprep.subr.mxu0 0.0
      %1073 = vmatpush1.msra.mxu0 0.0
      %1074 = vmatprep.mubr.f32.mxu0 0.0
      %1075 = vmatmul.mubr.f32.gmra.mrb[0].mxu0 %v957
      %v1076 = vpop.f32.mrb[0].mxu0
      %v1077 = vadd.f32 0.0, %v1076
      %v1078 = vpop.f32.mrb[0].mxu0
      %1079 = vmatprep.mubr.f32.mxu0 0.0
      %1080 = vmatmul.mubr.f32.gmra.mrb[0].mxu0 %v960
      %v1081 = vpop.f32.mrb[0].mxu0
      %v1082 = vadd.f32 0.0, %v1081
      %v1083 = vpop.f32.mrb[0].mxu0
      %1084 = vmatprep.mubr.f32.mxu0 0.0
      %1085 = vmatmul.mubr.f32.gmra.mrb[0].mxu0 %v963
      %v1086 = vpop.f32.mrb[0].mxu0
      %v1087 = vadd.f32 0.0, %v1086
      %v1088 = vpop.f32.mrb[0].mxu0
      %1089 = vmatprep.mubr.f32.mxu0 0.0
      %1090 = vmatmul.mubr.f32.gmra.mrb[0].mxu0 %v966
      %v1091 = vpop.f32.mrb[0].mxu0
      %v1092 = vadd.f32 0.0, %v1091
      %v1093 = vpop.f32.mrb[0].mxu0
      %1094 = vmatprep.mubr.f32.mxu0 0.0
      %1095 = vmatmul.mubr.f32.gmra.mrb[0].mxu0 %v969
      %v1096 = vpop.f32.mrb[0].mxu0
      %v1097 = vadd.f32 0.0, %v1096
      %v1098 = vpop.f32.mrb[0].mxu0
      %1099 = vmatprep.mubr.f32.mxu0 0.0
      %1100 = vmatmul.mubr.f32.gmra.mrb[0].mxu0 %v972
      %v1101 = vpop.f32.mrb[0].mxu0
      %v1102 = vadd.f32 0.0, %v1101
      %v1103 = vpop.f32.mrb[0].mxu0
      %1104 = vmatprep.mubr.f32.mxu0 0.0
      %1105 = vmatmul.mubr.f32.gmra.mrb[0].mxu0 %v975
      %v1106 = vpop.f32.mrb[0].mxu0
      %v1107 = vadd.f32 0.0, %v1106
      %v1108 = vpop.f32.mrb[0].mxu0
      %1109 = vmatprep.mubr.f32.mxu0 0.0
      %1110 = vmatmul.mubr.f32.gmra.mrb[0].mxu0 %v978
      %v1111 = vpop.f32.mrb[0].mxu0
      %v1112 = vadd.f32 0.0, %v1111
      %v1113 = vpop.f32.mrb[0].mxu0
      %1114 = vmatprep.mubr.f32.mxu0 0.0
      %1115 = vmatmul.mubr.f32.gmra.mrb[0].mxu0 %v981
      %v1116 = vpop.f32.mrb[0].mxu0
      %v1117 = vadd.f32 0.0, %v1116
      %v1118 = vpop.f32.mrb[0].mxu0
      %1119 = vmatprep.mubr.f32.mxu0 0.0
      %1120 = vmatmul.mubr.f32.gmra.mrb[0].mxu0 %v984
      %v1121 = vpop.f32.mrb[0].mxu0
      %v1122 = vadd.f32 0.0, %v1121
      %v1123 = vpop.f32.mrb[0].mxu0
      %1124 = vmatprep.mubr.f32.mxu0 0.0
      %1125 = vmatmul.mubr.f32.gmra.mrb[0].mxu0 %v987
      %v1126 = vpop.f32.mrb[0].mxu0
      %v1127 = vadd.f32 0.0, %v1126
      %v1128 = vpop.f32.mrb[0].mxu0
      %1129 = vmatprep.mubr.f32.mxu0 0.0
      %1130 = vmatmul.mubr.f32.gmra.mrb[0].mxu0 %v990
      %v1131 = vpop.f32.mrb[0].mxu0
      %v1132 = vadd.f32 0.0, %v1131
      %v1133 = vpop.f32.mrb[0].mxu0
      %1134 = vmatprep.mubr.f32.mxu0 0.0
      %1135 = vmatmul.mubr.f32.gmra.mrb[0].mxu0 %v993
      %v1136 = vpop.f32.mrb[0].mxu0
      %v1137 = vadd.f32 0.0, %v1136
      %v1138 = vpop.f32.mrb[0].mxu0
      %1139 = vmatprep.mubr.f32.mxu0 0.0
      %1140 = vmatmul.mubr.f32.gmra.mrb[0].mxu0 %v996
      %v1141 = vpop.f32.mrb[0].mxu0
      %v1142 = vadd.f32 0.0, %v1141
      %v1143 = vpop.f32.mrb[0].mxu0
      %1144 = vmatprep.mubr.f32.mxu0 0.0
      %1145 = vmatmul.mubr.f32.gmra.mrb[0].mxu0 %v999
      %v1146 = vpop.f32.mrb[0].mxu0
      %v1147 = vadd.f32 0.0, %v1146
      %v1148 = vpop.f32.mrb[0].mxu0
      %1149 = vmatprep.mubr.f32.mxu0 0.0
      %1150 = vmatmul.mubr.f32.gmra.mrb[0].mxu0 %v1002
      %v1151 = vpop.f32.mrb[0].mxu0
      %v1152 = vadd.f32 0.0, %v1151
      %v1153 = vpop.f32.mrb[0].mxu0
      %1154 = vmatprep.mubr.f32.mxu0 0.0
      %1155 = vmatmul.mubr.f32.gmra.mrb[0].mxu0 %v1005
      %v1156 = vpop.f32.mrb[0].mxu0
      %v1157 = vadd.f32 0.0, %v1156
      %v1158 = vpop.f32.mrb[0].mxu0
      %1159 = vmatprep.mubr.f32.mxu0 0.0
      %1160 = vmatmul.mubr.f32.gmra.mrb[0].mxu0 %v1008
      %v1161 = vpop.f32.mrb[0].mxu0
      %v1162 = vadd.f32 0.0, %v1161
      %v1163 = vpop.f32.mrb[0].mxu0
      %1164 = vdwg.mxu0
      %v1165 = vld [vmem:[%s4] sm:$0x1]
      %v1166 = vlaneseq
      %v1167 = vshrl.u32 %v1166, 7
      %v1168 = vsub.s32 0, %v1167
      %v1169 = vrot.slane %v1165, %v1168
      %v1170 = vmul.f32 %v1077, %v1169
      %v1171 = vmul.f32 %v1082, %v1169
      %v1172 = vld [vmem:[%s4 + $0x1] sm:$0x1]
      %v1173 = vlaneseq
      %v1174 = vshrl.u32 %v1173, 7
      %v1175 = vsub.s32 0, %v1174
      %v1176 = vrot.slane %v1172, %v1175
      %v1177 = vmul.f32 %v1087, %v1176
      %v1178 = vmul.f32 %v1092, %v1176
      %v1179 = vadd.f32 %v1170, %v1177
      %v1180 = vadd.f32 %v1171, %v1178
      %v1181 = vld [vmem:[%s4 + $0x2] sm:$0x1]
      %v1182 = vlaneseq
      %v1183 = vshrl.u32 %v1182, 7
      %v1184 = vsub.s32 0, %v1183
      %v1185 = vrot.slane %v1181, %v1184
      %v1186 = vmul.f32 %v1097, %v1185
      %v1187 = vmul.f32 %v1102, %v1185
      %v1188 = vadd.f32 %v1179, %v1186
      %v1189 = vadd.f32 %v1180, %v1187
      %v1190 = vld [vmem:[%s4 + $0x3] sm:$0x1]
      %v1191 = vlaneseq
      %v1192 = vshrl.u32 %v1191, 7
      %v1193 = vsub.s32 0, %v1192
      %v1194 = vrot.slane %v1190, %v1193
      %v1195 = vmul.f32 %v1107, %v1194
      %v1196 = vmul.f32 %v1112, %v1194
      %v1197 = vadd.f32 %v1188, %v1195
      %v1198 = vadd.f32 %v1189, %v1196
      %v1199 = vld [vmem:[%s4 + $0x4] sm:$0x1]
      %v1200 = vlaneseq
      %v1201 = vshrl.u32 %v1200, 7
      %v1202 = vsub.s32 0, %v1201
      %v1203 = vrot.slane %v1199, %v1202
      %v1204 = vmul.f32 %v1117, %v1203
      %v1205 = vmul.f32 %v1122, %v1203
      %v1206 = vadd.f32 %v1197, %v1204
      %v1207 = vadd.f32 %v1198, %v1205
      %v1208 = vld [vmem:[%s4 + $0x5] sm:$0x1]
      %v1209 = vlaneseq
      %v1210 = vshrl.u32 %v1209, 7
      %v1211 = vsub.s32 0, %v1210
      %v1212 = vrot.slane %v1208, %v1211
      %v1213 = vmul.f32 %v1127, %v1212
      %v1214 = vmul.f32 %v1132, %v1212
      %v1215 = vadd.f32 %v1206, %v1213
      %v1216 = vadd.f32 %v1207, %v1214
      %v1217 = vld [vmem:[%s4 + $0x6] sm:$0x1]
      %v1218 = vlaneseq
      %v1219 = vshrl.u32 %v1218, 7
      %v1220 = vsub.s32 0, %v1219
      %v1221 = vrot.slane %v1217, %v1220
      %v1222 = vmul.f32 %v1137, %v1221
      %v1223 = vmul.f32 %v1142, %v1221
      %v1224 = vadd.f32 %v1215, %v1222
      %v1225 = vadd.f32 %v1216, %v1223
      %v1226 = vld [vmem:[%s4 + $0x7] sm:$0x1]
      %v1227 = vlaneseq
      %v1228 = vshrl.u32 %v1227, 7
      %v1229 = vsub.s32 0, %v1228
      %v1230 = vrot.slane %v1226, %v1229
      %v1231 = vmul.f32 %v1147, %v1230
      %v1232 = vmul.f32 %v1152, %v1230
      %v1233 = vadd.f32 %v1224, %v1231
      %v1234 = vadd.f32 %v1225, %v1232
      %v1235 = vld [vmem:[%s4 + $0x8] sm:$0x1]
      %v1236 = vlaneseq
      %v1237 = vshrl.u32 %v1236, 7
      %v1238 = vsub.s32 0, %v1237
      %v1239 = vrot.slane %v1235, %v1238
      %v1240 = vmul.f32 %v1157, %v1239
      %v1241 = vmul.f32 %v1162, %v1239
      %v1242 = vadd.f32 %v1233, %v1240
      %v1243 = vadd.f32 %v1234, %v1241
      %v1244 = vadd.f32 %v931, %v1242
      %v1245 = vadd.f32 %v934, %v1243
      %v1246 = vld [vmem:[%s5] sm:$0x1]
      %v1248 = vlaneseq
      %v1249 = vshrl.u32 %v1248, 7
      %v1250 = vsub.s32 0, %v1249
      %v1251 = vrot.slane %v1246, %v1250
      %v1253 = vadd.f32 %v1244, %v1251
      %v1254 = vadd.f32 %v1245, %v1251
      %v1255 = vld [vmem:[%s6] sm:$0x1]
      %v1256 = vld [vmem:[%s7] sm:$0x1]
      %vm1257 = vcmask 523264
      %v1258 = vsel %vm1257, %v1253, 0.0
      %1259 = vadd.xlane.f32.xlu0 %v1258
      %v1260 = vpop.xlane.xlu0 %1259
      %v1261 = vsel %vm1257, %v1254, 0.0
      %1262 = vadd.xlane.f32.xlu0 %v1261
      %v1263 = vpop.xlane.xlu0 %1262
      %v1264 = vrcp.pop 64.0
      %v1265 = vmul.f32 %v1260, %v1264
      %v1266 = vmul.f32 %v1263, %v1264
      %v1267 = vsub.f32 %v1253, %v1265
      %v1268 = vsub.f32 %v1254, %v1266
      %v1269 = vmul.f32 %v1267, %v1267
      %v1270 = vmul.f32 %v1268, %v1268
      %v1271 = vsel %vm1257, %v1269, 0.0
      %1272 = vadd.xlane.f32.xlu0 %v1271
      %v1273 = vpop.xlane.xlu0 %1272
      %v1274 = vsel %vm1257, %v1270, 0.0
      %1275 = vadd.xlane.f32.xlu0 %v1274
      %v1276 = vpop.xlane.xlu0 %1275
      %v1277 = vmul.f32 %v1273, %v1264
      %v1278 = vmul.f32 %v1276, %v1264
      %v1279 = vadd.f32 %v1277, 1e-05
      %v1280 = vadd.f32 %v1278, 1e-05
      %v1281 = vrsqrt.pop %v1279
      %v1282 = vrsqrt.pop %v1280
      %v1283 = vmul.f32 %v1267, %v1281
      %v1284 = vmul.f32 %v1268, %v1282
      %v1286 = vlaneseq
      %v1287 = vshrl.u32 %v1286, 7
      %v1288 = vsub.s32 0, %v1287
      %v1289 = vrot.slane %v1255, %v1288
      %v1291 = vmul.f32 %v1283, %v1289
      %v1292 = vmul.f32 %v1284, %v1289
      %v1294 = vlaneseq
      %v1295 = vshrl.u32 %v1294, 7
      %v1296 = vsub.s32 0, %v1295
      %v1297 = vrot.slane %v1256, %v1296
      %v1299 = vadd.f32 %v1291, %v1297
      %v1300 = vadd.f32 %v1292, %v1297
      %v1301 = vpack.c.bf16 %v1300, %v1299
      %v1302 = vld [vmem:[%s10] sm:$0xf]
      %v1303 = vld [vmem:[%s10 + $0x4] sm:$0xf]
      %v1304 = vld [vmem:[%s10 + $0x8] sm:$0xf]
      %v1305 = vld [vmem:[%s10 + $0xc] sm:$0xf]
      %v1306 = vld [vmem:[%s10 + $0x10] sm:$0xf]
      %v1307 = vld [vmem:[%s10 + $0x14] sm:$0xf]
      %v1308 = vld [vmem:[%s10 + $0x18] sm:$0xf]
      %v1309 = vld [vmem:[%s10 + $0x1c] sm:$0xf]
      %v1318 = vunpack.c.l.b16 %v1302
      %v1319 = vunpack.c.l.b16 %v1303
      %v1320 = vunpack.c.l.b16 %v1304
      %v1321 = vunpack.c.l.b16 %v1305
      %v1322 = vunpack.c.l.b16 %v1306
      %v1323 = vunpack.c.l.b16 %v1307
      %v1324 = vunpack.c.l.b16 %v1308
      %v1325 = vunpack.c.l.b16 %v1309
      %v1326 = vpack.c.b16 %v1319, %v1318
      %v1327 = vpack.c.b16 %v1321, %v1320
      %v1328 = vpack.c.b16 %v1323, %v1322
      %v1329 = vpack.c.b16 %v1325, %v1324
      %v1335 = vsel %vm1257, %v1301, 0
      %1337 = vmatprep.subr.bf16.mxu0 0
      %1338 = vmatpush1.bf16.msra.mxu0 %v1326
      %1339 = vmatprep.subr.bf16.mxu0 0
      %1340 = vmatpush1.bf16.msra.mxu0 %v1327
      %1341 = vmatprep.subr.bf16.mxu0 0
      %1342 = vmatpush1.bf16.msra.mxu0 %v1328
      %1343 = vmatprep.subr.bf16.mxu0 0
      %1344 = vmatpush1.bf16.msra.mxu0 %v1329
      %1345 = vmatprep.subr.bf16.mxu0 0
      %1346 = vmatpush1.bf16.msra.mxu0 0
      %1347 = vmatprep.subr.bf16.mxu0 0
      %1348 = vmatpush1.bf16.msra.mxu0 0
      %1349 = vmatprep.subr.bf16.mxu0 0
      %1350 = vmatpush1.bf16.msra.mxu0 0
      %1351 = vmatprep.subr.bf16.mxu0 0
      %1352 = vmatpush1.bf16.msra.mxu0 0
      %1353 = vmatprep.subr.bf16.mxu0 0
      %1354 = vmatpush1.bf16.msra.mxu0 0
      %1355 = vmatprep.subr.bf16.mxu0 0
      %1356 = vmatpush1.bf16.msra.mxu0 0
      %1357 = vmatprep.subr.bf16.mxu0 0
      %1358 = vmatpush1.bf16.msra.mxu0 0
      %1359 = vmatprep.subr.bf16.mxu0 0
      %1360 = vmatpush1.bf16.msra.mxu0 0
      %1361 = vmatprep.subr.bf16.mxu0 0
      %1362 = vmatpush1.bf16.msra.mxu0 0
      %1363 = vmatprep.subr.bf16.mxu0 0
      %1364 = vmatpush1.bf16.msra.mxu0 0
      %1365 = vmatprep.subr.bf16.mxu0 0
      %1366 = vmatpush1.bf16.msra.mxu0 0
      %1367 = vmatprep.subr.bf16.mxu0 0
      %1368 = vmatpush1.bf16.msra.mxu0 0
      %1369 = vmatprep.mubr.bf16.mxu0 0
      %1370 = vmatmul.mubr.bf16.gmra.mrb[0].mxu0 %v1335
      %v1371 = vpop.f32.mrb[0].mxu0
      %v1372 = vadd.f32 0.0, %v1371
      %v1373 = vpop.f32.mrb[0].mxu0
      %v1374 = vpop.f32.mrb[0].mxu0
      %v1375 = vadd.f32 0.0, %v1374
      %v1376 = vpop.f32.mrb[0].mxu0
      %1377 = vdwg.mxu0
      %v1378 = vld [vmem:[%s11] sm:$0xf]
      %v1379 = vld [vmem:[%s11 + $0x4] sm:$0xf]
      %v1380 = vld [vmem:[%s11 + $0x8] sm:$0xf]
      %v1381 = vld [vmem:[%s11 + $0xc] sm:$0xf]
      %v1382 = vld [vmem:[%s11 + $0x10] sm:$0xf]
      %v1383 = vld [vmem:[%s11 + $0x14] sm:$0xf]
      %v1384 = vld [vmem:[%s11 + $0x18] sm:$0xf]
      %v1385 = vld [vmem:[%s11 + $0x1c] sm:$0xf]
      %v1394 = vunpack.c.l.b16 %v1378
      %v1395 = vunpack.c.l.b16 %v1379
      %v1396 = vunpack.c.l.b16 %v1380
      %v1397 = vunpack.c.l.b16 %v1381
      %v1398 = vunpack.c.l.b16 %v1382
      %v1399 = vunpack.c.l.b16 %v1383
      %v1400 = vunpack.c.l.b16 %v1384
      %v1401 = vunpack.c.l.b16 %v1385
      %v1402 = vpack.c.b16 %v1395, %v1394
      %v1403 = vpack.c.b16 %v1397, %v1396
      %v1404 = vpack.c.b16 %v1399, %v1398
      %v1405 = vpack.c.b16 %v1401, %v1400
      %1410 = vmatprep.subr.bf16.mxu0 0
      %1411 = vmatpush1.bf16.msra.mxu0 %v1402
      %1412 = vmatprep.subr.bf16.mxu0 0
      %1413 = vmatpush1.bf16.msra.mxu0 %v1403
      %1414 = vmatprep.subr.bf16.mxu0 0
      %1415 = vmatpush1.bf16.msra.mxu0 %v1404
      %1416 = vmatprep.subr.bf16.mxu0 0
      %1417 = vmatpush1.bf16.msra.mxu0 %v1405
      %1418 = vmatprep.subr.bf16.mxu0 0
      %1419 = vmatpush1.bf16.msra.mxu0 0
      %1420 = vmatprep.subr.bf16.mxu0 0
      %1421 = vmatpush1.bf16.msra.mxu0 0
      %1422 = vmatprep.subr.bf16.mxu0 0
      %1423 = vmatpush1.bf16.msra.mxu0 0
      %1424 = vmatprep.subr.bf16.mxu0 0
      %1425 = vmatpush1.bf16.msra.mxu0 0
      %1426 = vmatprep.subr.bf16.mxu0 0
      %1427 = vmatpush1.bf16.msra.mxu0 0
      %1428 = vmatprep.subr.bf16.mxu0 0
      %1429 = vmatpush1.bf16.msra.mxu0 0
      %1430 = vmatprep.subr.bf16.mxu0 0
      %1431 = vmatpush1.bf16.msra.mxu0 0
      %1432 = vmatprep.subr.bf16.mxu0 0
      %1433 = vmatpush1.bf16.msra.mxu0 0
      %1434 = vmatprep.subr.bf16.mxu0 0
      %1435 = vmatpush1.bf16.msra.mxu0 0
      %1436 = vmatprep.subr.bf16.mxu0 0
      %1437 = vmatpush1.bf16.msra.mxu0 0
      %1438 = vmatprep.subr.bf16.mxu0 0
      %1439 = vmatpush1.bf16.msra.mxu0 0
      %1440 = vmatprep.subr.bf16.mxu0 0
      %1441 = vmatpush1.bf16.msra.mxu0 0
      %1442 = vmatprep.mubr.bf16.mxu0 0
      %1443 = vmatmul.mubr.bf16.gmra.mrb[0].mxu0 %v1335
      %v1444 = vpop.f32.mrb[0].mxu0
      %v1445 = vadd.f32 0.0, %v1444
      %v1446 = vpop.f32.mrb[0].mxu0
      %v1447 = vpop.f32.mrb[0].mxu0
      %v1448 = vadd.f32 0.0, %v1447
      %v1449 = vpop.f32.mrb[0].mxu0
      %1450 = vdwg.mxu0
      %v1451 = vld [vmem:[%s8] sm:$0xff]
      %v1452 = vld [vmem:[%s8 + $0x8] sm:$0xff]
      %v1453 = vld [vmem:[%s8 + $0x10] sm:$0xff]
      %v1454 = vld [vmem:[%s8 + $0x18] sm:$0xff]
      %v1455 = vld [vmem:[%s8 + $0x20] sm:$0xff]
      %v1457 = vsel %vm1257, %v1451, 0
      %v1460 = vsel %vm1257, %v1452, 0
      %v1463 = vsel %vm1257, %v1453, 0
      %v1466 = vsel %vm1257, %v1454, 0
      %v1469 = vsel %vm1257, %v1455, 0
      %v1472 = vsel %vm1257, %v1372, 0
      %v1475 = vsel %vm1257, %v1375, 0
      %1477 = vmatprep.subr.mxu0 0.0
      %1478 = vmatpush1.xpose.msra.mxu0 %v1472
      %1479 = vmatprep.subr.mxu0 0.0
      %1480 = vmatpush1.xpose.msra.mxu0 %v1475
      %1481 = vmatprep.subr.mxu0 0.0
      %1482 = vmatpush1.xpose.msra.mxu0 0.0
      %1483 = vmatprep.subr.mxu0 0.0
      %1484 = vmatpush1.xpose.msra.mxu0 0.0
      %1485 = vmatprep.subr.mxu0 0.0
      %1486 = vmatpush1.xpose.msra.mxu0 0.0
      %1487 = vmatprep.subr.mxu0 0.0
      %1488 = vmatpush1.xpose.msra.mxu0 0.0
      %1489 = vmatprep.subr.mxu0 0.0
      %1490 = vmatpush1.xpose.msra.mxu0 0.0
      %1491 = vmatprep.subr.mxu0 0.0
      %1492 = vmatpush1.xpose.msra.mxu0 0.0
      %1493 = vmatprep.subr.mxu0 0.0
      %1494 = vmatpush1.xpose.msra.mxu0 0.0
      %1495 = vmatprep.subr.mxu0 0.0
      %1496 = vmatpush1.xpose.msra.mxu0 0.0
      %1497 = vmatprep.subr.mxu0 0.0
      %1498 = vmatpush1.xpose.msra.mxu0 0.0
      %1499 = vmatprep.subr.mxu0 0.0
      %1500 = vmatpush1.xpose.msra.mxu0 0.0
      %1501 = vmatprep.subr.mxu0 0.0
      %1502 = vmatpush1.xpose.msra.mxu0 0.0
      %1503 = vmatprep.subr.mxu0 0.0
      %1504 = vmatpush1.xpose.msra.mxu0 0.0
      %1505 = vmatprep.subr.mxu0 0.0
      %1506 = vmatpush1.xpose.msra.mxu0 0.0
      %1507 = vmatprep.subr.mxu0 0.0
      %1508 = vmatpush1.xpose.msra.mxu0 0.0
      %1509 = vmatprep.subr.mxu0 0.0
      %1510 = vmatpush1.xpose.msra.mxu0 0.0
      %1511 = vmatprep.subr.mxu0 0.0
      %1512 = vmatpush1.xpose.msra.mxu0 0.0
      %1513 = vmatprep.subr.mxu0 0.0
      %1514 = vmatpush1.xpose.msra.mxu0 0.0
      %1515 = vmatprep.subr.mxu0 0.0
      %1516 = vmatpush1.xpose.msra.mxu0 0.0
      %1517 = vmatprep.subr.mxu0 0.0
      %1518 = vmatpush1.xpose.msra.mxu0 0.0
      %1519 = vmatprep.subr.mxu0 0.0
      %1520 = vmatpush1.xpose.msra.mxu0 0.0
      %1521 = vmatprep.subr.mxu0 0.0
      %1522 = vmatpush1.xpose.msra.mxu0 0.0
      %1523 = vmatprep.subr.mxu0 0.0
      %1524 = vmatpush1.xpose.msra.mxu0 0.0
      %1525 = vmatprep.subr.mxu0 0.0
      %1526 = vmatpush1.xpose.msra.mxu0 0.0
      %1527 = vmatprep.subr.mxu0 0.0
      %1528 = vmatpush1.xpose.msra.mxu0 0.0
      %1529 = vmatprep.subr.mxu0 0.0
      %1530 = vmatpush1.xpose.msra.mxu0 0.0
      %1531 = vmatprep.subr.mxu0 0.0
      %1532 = vmatpush1.xpose.msra.mxu0 0.0
      %1533 = vmatprep.subr.mxu0 0.0
      %1534 = vmatpush1.xpose.msra.mxu0 0.0
      %1535 = vmatprep.subr.mxu0 0.0
      %1536 = vmatpush1.xpose.msra.mxu0 0.0
      %1537 = vmatprep.subr.mxu0 0.0
      %1538 = vmatpush1.xpose.msra.mxu0 0.0
      %1539 = vmatprep.subr.mxu0 0.0
      %1540 = vmatpush1.xpose.msra.mxu0 0.0
      %1541 = vmatprep.mubr.f32.mxu0 0.0
      %1542 = vmatmul.mubr.f32.gmra.mrb[0].mxu0 %v1457
      %v1543 = vpop.f32.mrb[0].mxu0
      %v1544 = vadd.f32 0.0, %v1543
      %v1545 = vpop.f32.mrb[0].mxu0
      %1546 = vmatprep.mubr.f32.mxu0 0.0
      %1547 = vmatmul.mubr.f32.gmra.mrb[0].mxu0 %v1460
      %v1548 = vpop.f32.mrb[0].mxu0
      %v1549 = vadd.f32 0.0, %v1548
      %v1550 = vpop.f32.mrb[0].mxu0
      %1551 = vmatprep.mubr.f32.mxu0 0.0
      %1552 = vmatmul.mubr.f32.gmra.mrb[0].mxu0 %v1463
      %v1553 = vpop.f32.mrb[0].mxu0
      %v1554 = vadd.f32 0.0, %v1553
      %v1555 = vpop.f32.mrb[0].mxu0
      %1556 = vmatprep.mubr.f32.mxu0 0.0
      %1557 = vmatmul.mubr.f32.gmra.mrb[0].mxu0 %v1466
      %v1558 = vpop.f32.mrb[0].mxu0
      %v1559 = vadd.f32 0.0, %v1558
      %v1560 = vpop.f32.mrb[0].mxu0
      %1561 = vmatprep.mubr.f32.mxu0 0.0
      %1562 = vmatmul.mubr.f32.gmra.mrb[0].mxu0 %v1469
      %v1563 = vpop.f32.mrb[0].mxu0
      %v1564 = vadd.f32 0.0, %v1563
      %v1565 = vpop.f32.mrb[0].mxu0
      %1566 = vdwg.mxu0
      %v1567 = vsel %vm955, %v1544, -inf
      %1568 = vmax.xlane.f32.xlu0 %v1567
      %v1569 = vpop.xlane.xlu0 %1568
      %v1570 = vsel %vm955, %v1549, -inf
      %1571 = vmax.xlane.f32.xlu0 %v1570
      %v1572 = vpop.xlane.xlu0 %1571
      %v1573 = vsel %vm955, %v1554, -inf
      %1574 = vmax.xlane.f32.xlu0 %v1573
      %v1575 = vpop.xlane.xlu0 %1574
      %v1576 = vsel %vm955, %v1559, -inf
      %1577 = vmax.xlane.f32.xlu0 %v1576
      %v1578 = vpop.xlane.xlu0 %1577
      %v1579 = vsel %vm955, %v1564, -inf
      %1580 = vmax.xlane.f32.xlu0 %v1579
      %v1581 = vpop.xlane.xlu0 %1580
      %v1582 = vsub.f32 %v1544, %v1569
      %v1583 = vsub.f32 %v1549, %v1572
      %v1584 = vsub.f32 %v1554, %v1575
      %v1585 = vsub.f32 %v1559, %v1578
      %v1586 = vsub.f32 %v1564, %v1581
      %v1587 = vmul.f32 %v1582, 1.442695
      %v1588 = vpow.pop %v1587
      %v1589 = vmul.f32 %v1583, 1.442695
      %v1590 = vpow.pop %v1589
      %v1591 = vmul.f32 %v1584, 1.442695
      %v1592 = vpow.pop %v1591
      %v1593 = vmul.f32 %v1585, 1.442695
      %v1594 = vpow.pop %v1593
      %v1595 = vmul.f32 %v1586, 1.442695
      %v1596 = vpow.pop %v1595
      %v1597 = vsel %vm955, %v1588, 0.0
      %1598 = vadd.xlane.f32.xlu0 %v1597
      %v1599 = vpop.xlane.xlu0 %1598
      %v1600 = vsel %vm955, %v1590, 0.0
      %1601 = vadd.xlane.f32.xlu0 %v1600
      %v1602 = vpop.xlane.xlu0 %1601
      %v1603 = vsel %vm955, %v1592, 0.0
      %1604 = vadd.xlane.f32.xlu0 %v1603
      %v1605 = vpop.xlane.xlu0 %1604
      %v1606 = vsel %vm955, %v1594, 0.0
      %1607 = vadd.xlane.f32.xlu0 %v1606
      %v1608 = vpop.xlane.xlu0 %1607
      %v1609 = vsel %vm955, %v1596, 0.0
      %1610 = vadd.xlane.f32.xlu0 %v1609
      %v1611 = vpop.xlane.xlu0 %1610
      %v1612 = vrcp.pop %v1599
      %v1613 = vrcp.pop %v1602
      %v1614 = vrcp.pop %v1605
      %v1615 = vrcp.pop %v1608
      %v1616 = vrcp.pop %v1611
      %v1617 = vmul.f32 %v1588, %v1612
      %v1618 = vmul.f32 %v1590, %v1613
      %v1619 = vmul.f32 %v1592, %v1614
      %v1620 = vmul.f32 %v1594, %v1615
      %v1621 = vmul.f32 %v1596, %v1616
      %v1623 = vsel %vm955, %v1617, 0
      %v1626 = vsel %vm955, %v1618, 0
      %v1629 = vsel %vm955, %v1619, 0
      %v1632 = vsel %vm955, %v1620, 0
      %v1635 = vsel %vm955, %v1621, 0
      %1637 = vmatprep.subr.mxu0 0.0
      %1638 = vmatpush1.msra.mxu0 %v1445
      %1639 = vmatprep.subr.mxu0 0.0
      %1640 = vmatpush1.msra.mxu0 %v1448
      %1641 = vmatprep.subr.mxu0 0.0
      %1642 = vmatpush1.msra.mxu0 0.0
      %1643 = vmatprep.subr.mxu0 0.0
      %1644 = vmatpush1.msra.mxu0 0.0
      %1645 = vmatprep.subr.mxu0 0.0
      %1646 = vmatpush1.msra.mxu0 0.0
      %1647 = vmatprep.subr.mxu0 0.0
      %1648 = vmatpush1.msra.mxu0 0.0
      %1649 = vmatprep.subr.mxu0 0.0
      %1650 = vmatpush1.msra.mxu0 0.0
      %1651 = vmatprep.subr.mxu0 0.0
      %1652 = vmatpush1.msra.mxu0 0.0
      %1653 = vmatprep.subr.mxu0 0.0
      %1654 = vmatpush1.msra.mxu0 0.0
      %1655 = vmatprep.subr.mxu0 0.0
      %1656 = vmatpush1.msra.mxu0 0.0
      %1657 = vmatprep.subr.mxu0 0.0
      %1658 = vmatpush1.msra.mxu0 0.0
      %1659 = vmatprep.subr.mxu0 0.0
      %1660 = vmatpush1.msra.mxu0 0.0
      %1661 = vmatprep.subr.mxu0 0.0
      %1662 = vmatpush1.msra.mxu0 0.0
      %1663 = vmatprep.subr.mxu0 0.0
      %1664 = vmatpush1.msra.mxu0 0.0
      %1665 = vmatprep.subr.mxu0 0.0
      %1666 = vmatpush1.msra.mxu0 0.0
      %1667 = vmatprep.subr.mxu0 0.0
      %1668 = vmatpush1.msra.mxu0 0.0
      %1669 = vmatprep.subr.mxu0 0.0
      %1670 = vmatpush1.msra.mxu0 0.0
      %1671 = vmatprep.subr.mxu0 0.0
      %1672 = vmatpush1.msra.mxu0 0.0
      %1673 = vmatprep.subr.mxu0 0.0
      %1674 = vmatpush1.msra.mxu0 0.0
      %1675 = vmatprep.subr.mxu0 0.0
      %1676 = vmatpush1.msra.mxu0 0.0
      %1677 = vmatprep.subr.mxu0 0.0
      %1678 = vmatpush1.msra.mxu0 0.0
      %1679 = vmatprep.subr.mxu0 0.0
      %1680 = vmatpush1.msra.mxu0 0.0
      %1681 = vmatprep.subr.mxu0 0.0
      %1682 = vmatpush1.msra.mxu0 0.0
      %1683 = vmatprep.subr.mxu0 0.0
      %1684 = vmatpush1.msra.mxu0 0.0
      %1685 = vmatprep.subr.mxu0 0.0
      %1686 = vmatpush1.msra.mxu0 0.0
      %1687 = vmatprep.subr.mxu0 0.0
      %1688 = vmatpush1.msra.mxu0 0.0
      %1689 = vmatprep.subr.mxu0 0.0
      %1690 = vmatpush1.msra.mxu0 0.0
      %1691 = vmatprep.subr.mxu0 0.0
      %1692 = vmatpush1.msra.mxu0 0.0
      %1693 = vmatprep.subr.mxu0 0.0
      %1694 = vmatpush1.msra.mxu0 0.0
      %1695 = vmatprep.subr.mxu0 0.0
      %1696 = vmatpush1.msra.mxu0 0.0
      %1697 = vmatprep.subr.mxu0 0.0
      %1698 = vmatpush1.msra.mxu0 0.0
      %1699 = vmatprep.subr.mxu0 0.0
      %1700 = vmatpush1.msra.mxu0 0.0
      %1701 = vmatprep.mubr.f32.mxu0 0.0
      %1702 = vmatmul.mubr.f32.gmra.mrb[0].mxu0 %v1623
      %v1703 = vpop.f32.mrb[0].mxu0
      %v1704 = vadd.f32 0.0, %v1703
      %v1705 = vpop.f32.mrb[0].mxu0
      %1706 = vmatprep.mubr.f32.mxu0 0.0
      %1707 = vmatmul.mubr.f32.gmra.mrb[0].mxu0 %v1626
      %v1708 = vpop.f32.mrb[0].mxu0
      %v1709 = vadd.f32 0.0, %v1708
      %v1710 = vpop.f32.mrb[0].mxu0
      %1711 = vmatprep.mubr.f32.mxu0 0.0
      %1712 = vmatmul.mubr.f32.gmra.mrb[0].mxu0 %v1629
      %v1713 = vpop.f32.mrb[0].mxu0
      %v1714 = vadd.f32 0.0, %v1713
      %v1715 = vpop.f32.mrb[0].mxu0
      %1716 = vmatprep.mubr.f32.mxu0 0.0
      %1717 = vmatmul.mubr.f32.gmra.mrb[0].mxu0 %v1632
      %v1718 = vpop.f32.mrb[0].mxu0
      %v1719 = vadd.f32 0.0, %v1718
      %v1720 = vpop.f32.mrb[0].mxu0
      %1721 = vmatprep.mubr.f32.mxu0 0.0
      %1722 = vmatmul.mubr.f32.gmra.mrb[0].mxu0 %v1635
      %v1723 = vpop.f32.mrb[0].mxu0
      %v1724 = vadd.f32 0.0, %v1723
      %v1725 = vpop.f32.mrb[0].mxu0
      %1726 = vdwg.mxu0
      %v1727 = vld [vmem:[%s9] sm:$0x1]
      %v1728 = vlaneseq
      %v1729 = vshrl.u32 %v1728, 7
      %v1730 = vsub.s32 0, %v1729
      %v1731 = vrot.slane %v1727, %v1730
      %v1732 = vmul.f32 %v1704, %v1731
      %v1733 = vmul.f32 %v1709, %v1731
      %v1734 = vld [vmem:[%s9 + $0x1] sm:$0x1]
      %v1735 = vlaneseq
      %v1736 = vshrl.u32 %v1735, 7
      %v1737 = vsub.s32 0, %v1736
      %v1738 = vrot.slane %v1734, %v1737
      %v1739 = vmul.f32 %v1709, %v1738
      %v1740 = vmul.f32 %v1714, %v1738
      %vm1743 = vcmask 1045504
      %v1744 = vrot.slane %v1739, 2
      %v1745 = vrot.slane %v1740, 2
      %v1746 = vsel %vm1743, %v1744, %v1745
      %v1749 = vadd.f32 %v1732, %v1746
      %v1750 = vadd.f32 %v1733, %v1745
      %v1751 = vld [vmem:[%s9 + $0x2] sm:$0x1]
      %v1752 = vlaneseq
      %v1753 = vshrl.u32 %v1752, 7
      %v1754 = vsub.s32 0, %v1753
      %v1755 = vrot.slane %v1751, %v1754
      %v1756 = vmul.f32 %v1714, %v1755
      %v1757 = vmul.f32 %v1719, %v1755
      %vm1760 = vcmask 1043456
      %v1761 = vrot.slane %v1756, 4
      %v1762 = vrot.slane %v1757, 4
      %v1763 = vsel %vm1760, %v1761, %v1762
      %v1766 = vadd.f32 %v1749, %v1763
      %v1767 = vadd.f32 %v1750, %v1762
      %v1768 = vld [vmem:[%s9 + $0x3] sm:$0x1]
      %v1769 = vlaneseq
      %v1770 = vshrl.u32 %v1769, 7
      %v1771 = vsub.s32 0, %v1770
      %v1772 = vrot.slane %v1768, %v1771
      %v1773 = vmul.f32 %v1719, %v1772
      %v1774 = vmul.f32 %v1724, %v1772
      %vm1777 = vcmask 1041408
      %v1778 = vrot.slane %v1773, 6
      %v1779 = vrot.slane %v1774, 6
      %v1780 = vsel %vm1777, %v1778, %v1779
      %v1783 = vadd.f32 %v1766, %v1780
      %v1784 = vadd.f32 %v1767, %v1779
      %v1785 = vpack.c.bf16 %v1784, %v1783
      %v1786 = vld [vmem:[%s12] sm:$0xf]
      %v1787 = vld [vmem:[%s12 + $0x4] sm:$0xf]
      %v1788 = vld [vmem:[%s12 + $0x8] sm:$0xf]
      %v1789 = vld [vmem:[%s12 + $0xc] sm:$0xf]
      %v1790 = vld [vmem:[%s12 + $0x10] sm:$0xf]
      %v1791 = vld [vmem:[%s12 + $0x14] sm:$0xf]
      %v1792 = vld [vmem:[%s12 + $0x18] sm:$0xf]
      %v1793 = vld [vmem:[%s12 + $0x1c] sm:$0xf]
      %v1794 = vld [vmem:[%s13] sm:$0x1]
      %v1796 = vlaneseq
      %v1797 = vshrl.u32 %v1796, 7
      %v1798 = vsub.s32 0, %v1797
      %v1799 = vrot.slane %v1794, %v1798
      %v1809 = vunpack.c.l.b16 %v1786
      %v1810 = vunpack.c.l.b16 %v1787
      %v1811 = vunpack.c.l.b16 %v1788
      %v1812 = vunpack.c.l.b16 %v1789
      %v1813 = vunpack.c.l.b16 %v1790
      %v1814 = vunpack.c.l.b16 %v1791
      %v1815 = vunpack.c.l.b16 %v1792
      %v1816 = vunpack.c.l.b16 %v1793
      %v1817 = vpack.c.b16 %v1810, %v1809
      %v1818 = vpack.c.b16 %v1812, %v1811
      %v1819 = vpack.c.b16 %v1814, %v1813
      %v1820 = vpack.c.b16 %v1816, %v1815
      %v1826 = vsel %vm1257, %v1785, 0
      %1828 = vmatprep.subr.bf16.mxu0 0
      %1829 = vmatpush1.bf16.msra.mxu0 %v1817
      %1830 = vmatprep.subr.bf16.mxu0 0
      %1831 = vmatpush1.bf16.msra.mxu0 %v1818
      %1832 = vmatprep.subr.bf16.mxu0 0
      %1833 = vmatpush1.bf16.msra.mxu0 %v1819
      %1834 = vmatprep.subr.bf16.mxu0 0
      %1835 = vmatpush1.bf16.msra.mxu0 %v1820
      %1836 = vmatprep.subr.bf16.mxu0 0
      %1837 = vmatpush1.bf16.msra.mxu0 0
      %1838 = vmatprep.subr.bf16.mxu0 0
      %1839 = vmatpush1.bf16.msra.mxu0 0
      %1840 = vmatprep.subr.bf16.mxu0 0
      %1841 = vmatpush1.bf16.msra.mxu0 0
      %1842 = vmatprep.subr.bf16.mxu0 0
      %1843 = vmatpush1.bf16.msra.mxu0 0
      %1844 = vmatprep.subr.bf16.mxu0 0
      %1845 = vmatpush1.bf16.msra.mxu0 0
      %1846 = vmatprep.subr.bf16.mxu0 0
      %1847 = vmatpush1.bf16.msra.mxu0 0
      %1848 = vmatprep.subr.bf16.mxu0 0
      %1849 = vmatpush1.bf16.msra.mxu0 0
      %1850 = vmatprep.subr.bf16.mxu0 0
      %1851 = vmatpush1.bf16.msra.mxu0 0
      %1852 = vmatprep.subr.bf16.mxu0 0
      %1853 = vmatpush1.bf16.msra.mxu0 0
      %1854 = vmatprep.subr.bf16.mxu0 0
      %1855 = vmatpush1.bf16.msra.mxu0 0
      %1856 = vmatprep.subr.bf16.mxu0 0
      %1857 = vmatpush1.bf16.msra.mxu0 0
      %1858 = vmatprep.subr.bf16.mxu0 0
      %1859 = vmatpush1.bf16.msra.mxu0 0
      %1860 = vmatprep.mubr.bf16.mxu0 0
      %1861 = vmatmul.mubr.bf16.gmra.mrb[0].mxu0 %v1826
      %v1862 = vpop.f32.mrb[0].mxu0
      %v1863 = vadd.f32 %v1799, %v1862
      %v1864 = vpop.f32.mrb[0].mxu0
      %v1865 = vpop.f32.mrb[0].mxu0
      %v1866 = vadd.f32 %v1799, %v1865
      %v1867 = vpop.f32.mrb[0].mxu0
      %1868 = vdwg.mxu0
      %v1869 = vld [vmem:[%s14] sm:$0x1]
      %v1870 = vld [vmem:[%s15] sm:$0x1]
      %v1871 = vsel %vm1257, %v1863, 0.0
      %1872 = vadd.xlane.f32.xlu0 %v1871
      %v1873 = vpop.xlane.xlu0 %1872
      %vm1874 = vcmask 517120
      %v1875 = vsel %vm1874, %v1866, 0.0
      %1876 = vadd.xlane.f32.xlu0 %v1875
      %v1877 = vpop.xlane.xlu0 %1876
      %v1878 = vmul.f32 %v1873, %v1264
      %v1879 = vmul.f32 %v1877, %v1264
      %v1880 = vsub.f32 %v1863, %v1878
      %v1881 = vsub.f32 %v1866, %v1879
      %v1882 = vmul.f32 %v1880, %v1880
      %v1883 = vmul.f32 %v1881, %v1881
      %v1884 = vsel %vm1257, %v1882, 0.0
      %1885 = vadd.xlane.f32.xlu0 %v1884
      %v1886 = vpop.xlane.xlu0 %1885
      %v1887 = vsel %vm1874, %v1883, 0.0
      %1888 = vadd.xlane.f32.xlu0 %v1887
      %v1889 = vpop.xlane.xlu0 %1888
      %v1890 = vmul.f32 %v1886, %v1264
      %v1891 = vmul.f32 %v1889, %v1264
      %v1892 = vadd.f32 %v1890, 1e-05
      %v1893 = vadd.f32 %v1891, 1e-05
      %v1894 = vrsqrt.pop %v1892
      %v1895 = vrsqrt.pop %v1893
      %v1896 = vmul.f32 %v1880, %v1894
      %v1897 = vmul.f32 %v1881, %v1895
      %v1899 = vlaneseq
      %v1900 = vshrl.u32 %v1899, 7
      %v1901 = vsub.s32 0, %v1900
      %v1902 = vrot.slane %v1869, %v1901
      %v1904 = vmul.f32 %v1896, %v1902
      %v1905 = vmul.f32 %v1897, %v1902
      %v1907 = vlaneseq
      %v1908 = vshrl.u32 %v1907, 7
      %v1909 = vsub.s32 0, %v1908
      %v1910 = vrot.slane %v1870, %v1909
      %v1912 = vadd.f32 %v1904, %v1910
      %v1913 = vadd.f32 %v1905, %v1910
      %v1914 = vpack.c.bf16 %v1913, %v1912
      %v1915 = vld [vmem:[%s16] sm:$0xff]
      %v1916 = vld [vmem:[%s16 + $0x8] sm:$0xff]
      %v1917 = vld [vmem:[%s16 + $0x10] sm:$0xff]
      %v1918 = vld [vmem:[%s16 + $0x18] sm:$0xff]
      %v1919 = vld [vmem:[%s16 + $0x20] sm:$0xff]
      %v1920 = vld [vmem:[%s16 + $0x28] sm:$0xff]
      %v1921 = vld [vmem:[%s16 + $0x30] sm:$0xff]
      %v1922 = vld [vmem:[%s16 + $0x38] sm:$0xff]
      %v1923 = vld [vmem:[%s17] sm:$0x3]
      %v1925 = vlaneseq
      %v1926 = vshrl.u32 %v1925, 7
      %v1927 = vsub.s32 0, %v1926
      %v1928 = vrot.slane %v1923, %v1927
      %v1929 = vlaneseq
      %v1930 = vshrl.u32 %v1929, 7
      %v1931 = vsub.s32 1, %v1930
      %v1932 = vrot.slane %v1923, %v1931
      %v1943 = vunpack.c.l.b16 %v1915
      %v1944 = vunpack.c.h.b16 %v1915
      %v1945 = vunpack.c.l.b16 %v1916
      %v1946 = vunpack.c.h.b16 %v1916
      %v1947 = vunpack.c.l.b16 %v1917
      %v1948 = vunpack.c.h.b16 %v1917
      %v1949 = vunpack.c.l.b16 %v1918
      %v1950 = vunpack.c.h.b16 %v1918
      %v1951 = vunpack.c.l.b16 %v1919
      %v1952 = vunpack.c.h.b16 %v1919
      %v1953 = vunpack.c.l.b16 %v1920
      %v1954 = vunpack.c.h.b16 %v1920
      %v1955 = vunpack.c.l.b16 %v1921
      %v1956 = vunpack.c.h.b16 %v1921
      %v1957 = vunpack.c.l.b16 %v1922
      %v1958 = vunpack.c.h.b16 %v1922
      %v1959 = vpack.c.b16 %v1945, %v1943
      %v1960 = vpack.c.b16 %v1946, %v1944
      %v1961 = vpack.c.b16 %v1949, %v1947
      %v1962 = vpack.c.b16 %v1950, %v1948
      %v1963 = vpack.c.b16 %v1953, %v1951
      %v1964 = vpack.c.b16 %v1954, %v1952
      %v1965 = vpack.c.b16 %v1957, %v1955
      %v1966 = vpack.c.b16 %v1958, %v1956
      %v1976 = vsel %vm1257, %v1914, 0
      %1978 = vmatprep.subr.bf16.mxu0 %v1960
      %1979 = vmatpush1.bf16.msra.mxu0 %v1959
      %1980 = vmatprep.subr.bf16.mxu0 %v1962
      %1981 = vmatpush1.bf16.msra.mxu0 %v1961
      %1982 = vmatprep.subr.bf16.mxu0 %v1964
      %1983 = vmatpush1.bf16.msra.mxu0 %v1963
      %1984 = vmatprep.subr.bf16.mxu0 %v1966
      %1985 = vmatpush1.bf16.msra.mxu0 %v1965
      %1986 = vmatprep.subr.bf16.mxu0 0
      %1987 = vmatpush1.bf16.msra.mxu0 0
      %1988 = vmatprep.subr.bf16.mxu0 0
      %1989 = vmatpush1.bf16.msra.mxu0 0
      %1990 = vmatprep.subr.bf16.mxu0 0
      %1991 = vmatpush1.bf16.msra.mxu0 0
      %1992 = vmatprep.subr.bf16.mxu0 0
      %1993 = vmatpush1.bf16.msra.mxu0 0
      %1994 = vmatprep.subr.bf16.mxu0 0
      %1995 = vmatpush1.bf16.msra.mxu0 0
      %1996 = vmatprep.subr.bf16.mxu0 0
      %1997 = vmatpush1.bf16.msra.mxu0 0
      %1998 = vmatprep.subr.bf16.mxu0 0
      %1999 = vmatpush1.bf16.msra.mxu0 0
      %2000 = vmatprep.subr.bf16.mxu0 0
      %2001 = vmatpush1.bf16.msra.mxu0 0
      %2002 = vmatprep.subr.bf16.mxu0 0
      %2003 = vmatpush1.bf16.msra.mxu0 0
      %2004 = vmatprep.subr.bf16.mxu0 0
      %2005 = vmatpush1.bf16.msra.mxu0 0
      %2006 = vmatprep.subr.bf16.mxu0 0
      %2007 = vmatpush1.bf16.msra.mxu0 0
      %2008 = vmatprep.subr.bf16.mxu0 0
      %2009 = vmatpush1.bf16.msra.mxu0 0
      %2010 = vmatprep.mubr.bf16.mxu0 0
      %2011 = vmatmul.mubr.bf16.gmra.mrb[0].mxu0 %v1976
      %v2012 = vpop.f32.mrb[0].mxu0
      %v2013 = vadd.f32 %v1928, %v2012
      %v2014 = vpop.f32.mrb[0].mxu0
      %v2015 = vadd.f32 %v1932, %v2014
      %v2016 = vpop.f32.mrb[0].mxu0
      %v2017 = vadd.f32 %v1928, %v2016
      %v2018 = vpop.f32.mrb[0].mxu0
      %v2019 = vadd.f32 %v1932, %v2018
      %2020 = vdwg.mxu0
      %v2021 = vmul.f32 %v2013, 0.5
      %v2022 = vmul.f32 %v2015, 0.5
      %v2023 = vmul.f32 %v2017, 0.5
      %v2024 = vmul.f32 %v2019, 0.5
      %v2025 = vmul.f32 %v2013, 0.70710677
      %v2026 = vmul.f32 %v2015, 0.70710677
      %v2027 = vmul.f32 %v2017, 0.70710677
      %v2028 = vmul.f32 %v2019, 0.70710677
      %vm2029 = vcmp.ge.f32.partialorder %v2025, 0.0
      %vm2030 = vcmp.ge.f32.partialorder %v2026, 0.0
      %vm2031 = vcmp.ge.f32.partialorder %v2027, 0.0
      %vm2032 = vcmp.ge.f32.partialorder %v2028, 0.0
      %v2033 = vsel %vm2029, 1.0, -1.0
      %v2034 = vsel %vm2030, 1.0, -1.0
      %v2035 = vsel %vm2031, 1.0, -1.0
      %v2036 = vsel %vm2032, 1.0, -1.0
      %v2037 = vand.u32 2147483647, %v2025
      %v2038 = vand.u32 2147483647, %v2026
      %v2039 = vand.u32 2147483647, %v2027
      %v2040 = vand.u32 2147483647, %v2028
      %v2041 = vmul.f32 %v2037, 0.3275911
      %v2042 = vmul.f32 %v2038, 0.3275911
      %v2043 = vmul.f32 %v2039, 0.3275911
      %v2044 = vmul.f32 %v2040, 0.3275911
      %v2045 = vadd.f32 %v2041, 1.0
      %v2046 = vadd.f32 %v2042, 1.0
      %v2047 = vadd.f32 %v2043, 1.0
      %v2048 = vadd.f32 %v2044, 1.0
      %v2049 = vrcp.pop %v2045
      %v2050 = vmul.f32 1.0, %v2049
      %v2051 = vrcp.pop %v2046
      %v2052 = vmul.f32 1.0, %v2051
      %v2053 = vrcp.pop %v2047
      %v2054 = vmul.f32 1.0, %v2053
      %v2055 = vrcp.pop %v2048
      %v2056 = vmul.f32 1.0, %v2055
      %v2057 = vmul.f32 %v2050, 1.0614054
      %v2058 = vmul.f32 %v2052, 1.0614054
      %v2059 = vmul.f32 %v2054, 1.0614054
      %v2060 = vmul.f32 %v2056, 1.0614054
      %v2061 = vadd.f32 %v2057, -1.4531521
      %v2062 = vadd.f32 %v2058, -1.4531521
      %v2063 = vadd.f32 %v2059, -1.4531521
      %v2064 = vadd.f32 %v2060, -1.4531521
      %v2065 = vmul.f32 %v2061, %v2050
      %v2066 = vmul.f32 %v2062, %v2052
      %v2067 = vmul.f32 %v2063, %v2054
      %v2068 = vmul.f32 %v2064, %v2056
      %v2069 = vadd.f32 %v2065, 1.4214138
      %v2070 = vadd.f32 %v2066, 1.4214138
      %v2071 = vadd.f32 %v2067, 1.4214138
      %v2072 = vadd.f32 %v2068, 1.4214138
      %v2073 = vmul.f32 %v2069, %v2050
      %v2074 = vmul.f32 %v2070, %v2052
      %v2075 = vmul.f32 %v2071, %v2054
      %v2076 = vmul.f32 %v2072, %v2056
      %v2077 = vadd.f32 %v2073, -0.28449672
      %v2078 = vadd.f32 %v2074, -0.28449672
      %v2079 = vadd.f32 %v2075, -0.28449672
      %v2080 = vadd.f32 %v2076, -0.28449672
      %v2081 = vmul.f32 %v2077, %v2050
      %v2082 = vmul.f32 %v2078, %v2052
      %v2083 = vmul.f32 %v2079, %v2054
      %v2084 = vmul.f32 %v2080, %v2056
      %v2085 = vadd.f32 %v2081, 0.2548296
      %v2086 = vadd.f32 %v2082, 0.2548296
      %v2087 = vadd.f32 %v2083, 0.2548296
      %v2088 = vadd.f32 %v2084, 0.2548296
      %v2089 = vmul.f32 %v2085, %v2050
      %v2090 = vmul.f32 %v2086, %v2052
      %v2091 = vmul.f32 %v2087, %v2054
      %v2092 = vmul.f32 %v2088, %v2056
      %v2093 = vsub.f32 0.0, %v2037
      %v2094 = vsub.f32 0.0, %v2038
      %v2095 = vsub.f32 0.0, %v2039
      %v2096 = vsub.f32 0.0, %v2040
      %v2097 = vmul.f32 %v2093, %v2037
      %v2098 = vmul.f32 %v2094, %v2038
      %v2099 = vmul.f32 %v2095, %v2039
      %v2100 = vmul.f32 %v2096, %v2040
      %v2101 = vmul.f32 %v2097, 1.442695
      %v2102 = vpow.pop %v2101
      %v2103 = vmul.f32 %v2098, 1.442695
      %v2104 = vpow.pop %v2103
      %v2105 = vmul.f32 %v2099, 1.442695
      %v2106 = vpow.pop %v2105
      %v2107 = vmul.f32 %v2100, 1.442695
      %v2108 = vpow.pop %v2107
      %v2109 = vmul.f32 %v2089, %v2102
      %v2110 = vmul.f32 %v2090, %v2104
      %v2111 = vmul.f32 %v2091, %v2106
      %v2112 = vmul.f32 %v2092, %v2108
      %v2113 = vsub.f32 1.0, %v2109
      %v2114 = vsub.f32 1.0, %v2110
      %v2115 = vsub.f32 1.0, %v2111
      %v2116 = vsub.f32 1.0, %v2112
      %v2117 = vmul.f32 %v2033, %v2113
      %v2118 = vmul.f32 %v2034, %v2114
      %v2119 = vmul.f32 %v2035, %v2115
      %v2120 = vmul.f32 %v2036, %v2116
      %v2121 = vadd.f32 %v2117, 1.0
      %v2122 = vadd.f32 %v2118, 1.0
      %v2123 = vadd.f32 %v2119, 1.0
      %v2124 = vadd.f32 %v2120, 1.0
      %v2125 = vmul.f32 %v2021, %v2121
      %v2126 = vmul.f32 %v2022, %v2122
      %v2127 = vmul.f32 %v2023, %v2123
      %v2128 = vmul.f32 %v2024, %v2124
      %v2129 = vpack.c.bf16 %v2127, %v2125
      %v2130 = vpack.c.bf16 %v2128, %v2126
      %v2131 = vld [vmem:[%s18] sm:$0xf]
      %v2132 = vld [vmem:[%s18 + $0x4] sm:$0xf]
      %v2133 = vld [vmem:[%s18 + $0x8] sm:$0xf]
      %v2134 = vld [vmem:[%s18 + $0xc] sm:$0xf]
      %v2135 = vld [vmem:[%s18 + $0x10] sm:$0xf]
      %v2136 = vld [vmem:[%s18 + $0x14] sm:$0xf]
      %v2137 = vld [vmem:[%s18 + $0x18] sm:$0xf]
      %v2138 = vld [vmem:[%s18 + $0x1c] sm:$0xf]
      %v2139 = vld [vmem:[%s18 + $0x20] sm:$0xf]
      %v2140 = vld [vmem:[%s18 + $0x24] sm:$0xf]
      %v2141 = vld [vmem:[%s18 + $0x28] sm:$0xf]
      %v2142 = vld [vmem:[%s18 + $0x2c] sm:$0xf]
      %v2143 = vld [vmem:[%s18 + $0x30] sm:$0xf]
      %v2144 = vld [vmem:[%s18 + $0x34] sm:$0xf]
      %v2145 = vld [vmem:[%s18 + $0x38] sm:$0xf]
      %v2146 = vld [vmem:[%s18 + $0x3c] sm:$0xf]
      %v2147 = vld [vmem:[%s18 + $0x40] sm:$0xf]
      %v2148 = vld [vmem:[%s18 + $0x44] sm:$0xf]
      %v2149 = vld [vmem:[%s18 + $0x48] sm:$0xf]
      %v2150 = vld [vmem:[%s18 + $0x4c] sm:$0xf]
      %v2151 = vld [vmem:[%s18 + $0x50] sm:$0xf]
      %v2152 = vld [vmem:[%s18 + $0x54] sm:$0xf]
      %v2153 = vld [vmem:[%s18 + $0x58] sm:$0xf]
      %v2154 = vld [vmem:[%s18 + $0x5c] sm:$0xf]
      %v2155 = vld [vmem:[%s18 + $0x60] sm:$0xf]
      %v2156 = vld [vmem:[%s18 + $0x64] sm:$0xf]
      %v2157 = vld [vmem:[%s18 + $0x68] sm:$0xf]
      %v2158 = vld [vmem:[%s18 + $0x6c] sm:$0xf]
      %v2159 = vld [vmem:[%s18 + $0x70] sm:$0xf]
      %v2160 = vld [vmem:[%s18 + $0x74] sm:$0xf]
      %v2161 = vld [vmem:[%s18 + $0x78] sm:$0xf]
      %v2162 = vld [vmem:[%s18 + $0x7c] sm:$0xf]
      %v2163 = vld [vmem:[%s19] sm:$0x1]
      %v2165 = vlaneseq
      %v2166 = vshrl.u32 %v2165, 7
      %v2167 = vsub.s32 0, %v2166
      %v2168 = vrot.slane %v2163, %v2167
      %v2202 = vunpack.c.l.b16 %v2131
      %v2203 = vunpack.c.l.b16 %v2132
      %v2204 = vunpack.c.l.b16 %v2133
      %v2205 = vunpack.c.l.b16 %v2134
      %v2206 = vunpack.c.l.b16 %v2135
      %v2207 = vunpack.c.l.b16 %v2136
      %v2208 = vunpack.c.l.b16 %v2137
      %v2209 = vunpack.c.l.b16 %v2138
      %v2210 = vunpack.c.l.b16 %v2139
      %v2211 = vunpack.c.l.b16 %v2140
      %v2212 = vunpack.c.l.b16 %v2141
      %v2213 = vunpack.c.l.b16 %v2142
      %v2214 = vunpack.c.l.b16 %v2143
      %v2215 = vunpack.c.l.b16 %v2144
      %v2216 = vunpack.c.l.b16 %v2145
      %v2217 = vunpack.c.l.b16 %v2146
      %v2218 = vunpack.c.l.b16 %v2147
      %v2219 = vunpack.c.l.b16 %v2148
      %v2220 = vunpack.c.l.b16 %v2149
      %v2221 = vunpack.c.l.b16 %v2150
      %v2222 = vunpack.c.l.b16 %v2151
      %v2223 = vunpack.c.l.b16 %v2152
      %v2224 = vunpack.c.l.b16 %v2153
      %v2225 = vunpack.c.l.b16 %v2154
      %v2226 = vunpack.c.l.b16 %v2155
      %v2227 = vunpack.c.l.b16 %v2156
      %v2228 = vunpack.c.l.b16 %v2157
      %v2229 = vunpack.c.l.b16 %v2158
      %v2230 = vunpack.c.l.b16 %v2159
      %v2231 = vunpack.c.l.b16 %v2160
      %v2232 = vunpack.c.l.b16 %v2161
      %v2233 = vunpack.c.l.b16 %v2162
      %v2234 = vpack.c.b16 %v2203, %v2202
      %v2235 = vpack.c.b16 %v2205, %v2204
      %v2236 = vpack.c.b16 %v2207, %v2206
      %v2237 = vpack.c.b16 %v2209, %v2208
      %v2238 = vpack.c.b16 %v2211, %v2210
      %v2239 = vpack.c.b16 %v2213, %v2212
      %v2240 = vpack.c.b16 %v2215, %v2214
      %v2241 = vpack.c.b16 %v2217, %v2216
      %v2242 = vpack.c.b16 %v2219, %v2218
      %v2243 = vpack.c.b16 %v2221, %v2220
      %v2244 = vpack.c.b16 %v2223, %v2222
      %v2245 = vpack.c.b16 %v2225, %v2224
      %v2246 = vpack.c.b16 %v2227, %v2226
      %v2247 = vpack.c.b16 %v2229, %v2228
      %v2248 = vpack.c.b16 %v2231, %v2230
      %v2249 = vpack.c.b16 %v2233, %v2232
      %2266 = vmatprep.subr.bf16.mxu0 0
      %2267 = vmatpush1.bf16.msra.mxu0 %v2234
      %2268 = vmatprep.subr.bf16.mxu0 0
      %2269 = vmatpush1.bf16.msra.mxu0 %v2235
      %2270 = vmatprep.subr.bf16.mxu0 0
      %2271 = vmatpush1.bf16.msra.mxu0 %v2236
      %2272 = vmatprep.subr.bf16.mxu0 0
      %2273 = vmatpush1.bf16.msra.mxu0 %v2237
      %2274 = vmatprep.subr.bf16.mxu0 0
      %2275 = vmatpush1.bf16.msra.mxu0 %v2238
      %2276 = vmatprep.subr.bf16.mxu0 0
      %2277 = vmatpush1.bf16.msra.mxu0 %v2239
      %2278 = vmatprep.subr.bf16.mxu0 0
      %2279 = vmatpush1.bf16.msra.mxu0 %v2240
      %2280 = vmatprep.subr.bf16.mxu0 0
      %2281 = vmatpush1.bf16.msra.mxu0 %v2241
      %2282 = vmatprep.subr.bf16.mxu0 0
      %2283 = vmatpush1.bf16.msra.mxu0 %v2242
      %2284 = vmatprep.subr.bf16.mxu0 0
      %2285 = vmatpush1.bf16.msra.mxu0 %v2243
      %2286 = vmatprep.subr.bf16.mxu0 0
      %2287 = vmatpush1.bf16.msra.mxu0 %v2244
      %2288 = vmatprep.subr.bf16.mxu0 0
      %2289 = vmatpush1.bf16.msra.mxu0 %v2245
      %2290 = vmatprep.subr.bf16.mxu0 0
      %2291 = vmatpush1.bf16.msra.mxu0 %v2246
      %2292 = vmatprep.subr.bf16.mxu0 0
      %2293 = vmatpush1.bf16.msra.mxu0 %v2247
      %2294 = vmatprep.subr.bf16.mxu0 0
      %2295 = vmatpush1.bf16.msra.mxu0 %v2248
      %2296 = vmatprep.subr.bf16.mxu0 0
      %2297 = vmatpush1.bf16.msra.mxu0 %v2249
      %2298 = vmatprep.mubr.bf16.mxu0 %v2130
      %2299 = vmatmul.mubr.bf16.gmra.mrb[0].mxu0 %v2129
      %v2300 = vpop.f32.mrb[0].mxu0
      %v2301 = vadd.f32 %v2168, %v2300
      %v2302 = vpop.f32.mrb[0].mxu0
      %v2303 = vpop.f32.mrb[0].mxu0
      %v2304 = vadd.f32 %v2168, %v2303
      %v2305 = vpop.f32.mrb[0].mxu0
      %2306 = vdwg.mxu0
      %v2307 = vadd.f32 %v1863, %v2301
      %v2308 = vadd.f32 %v1866, %v2304
      %v2309 = vld [vmem:[%s20] sm:$0x3]
      %v2311 = vsel %vm1257, %v2309, 0
      %v2314 = vsel %vm1257, %v2307, 0
      %v2317 = vsel %vm1257, %v2308, 0
      %2319 = vmatprep.subr.mxu0 0.0
      %2320 = vmatpush1.xpose.msra.mxu0 %v2314
      %2321 = vmatprep.subr.mxu0 0.0
      %2322 = vmatpush1.xpose.msra.mxu0 %v2317
      %2323 = vmatprep.subr.mxu0 0.0
      %2324 = vmatpush1.xpose.msra.mxu0 0.0
      %2325 = vmatprep.subr.mxu0 0.0
      %2326 = vmatpush1.xpose.msra.mxu0 0.0
      %2327 = vmatprep.subr.mxu0 0.0
      %2328 = vmatpush1.xpose.msra.mxu0 0.0
      %2329 = vmatprep.subr.mxu0 0.0
      %2330 = vmatpush1.xpose.msra.mxu0 0.0
      %2331 = vmatprep.subr.mxu0 0.0
      %2332 = vmatpush1.xpose.msra.mxu0 0.0
      %2333 = vmatprep.subr.mxu0 0.0
      %2334 = vmatpush1.xpose.msra.mxu0 0.0
      %2335 = vmatprep.subr.mxu0 0.0
      %2336 = vmatpush1.xpose.msra.mxu0 0.0
      %2337 = vmatprep.subr.mxu0 0.0
      %2338 = vmatpush1.xpose.msra.mxu0 0.0
      %2339 = vmatprep.subr.mxu0 0.0
      %2340 = vmatpush1.xpose.msra.mxu0 0.0
      %2341 = vmatprep.subr.mxu0 0.0
      %2342 = vmatpush1.xpose.msra.mxu0 0.0
      %2343 = vmatprep.subr.mxu0 0.0
      %2344 = vmatpush1.xpose.msra.mxu0 0.0
      %2345 = vmatprep.subr.mxu0 0.0
      %2346 = vmatpush1.xpose.msra.mxu0 0.0
      %2347 = vmatprep.subr.mxu0 0.0
      %2348 = vmatpush1.xpose.msra.mxu0 0.0
      %2349 = vmatprep.subr.mxu0 0.0
      %2350 = vmatpush1.xpose.msra.mxu0 0.0
      %2351 = vmatprep.subr.mxu0 0.0
      %2352 = vmatpush1.xpose.msra.mxu0 0.0
      %2353 = vmatprep.subr.mxu0 0.0
      %2354 = vmatpush1.xpose.msra.mxu0 0.0
      %2355 = vmatprep.subr.mxu0 0.0
      %2356 = vmatpush1.xpose.msra.mxu0 0.0
      %2357 = vmatprep.subr.mxu0 0.0
      %2358 = vmatpush1.xpose.msra.mxu0 0.0
      %2359 = vmatprep.subr.mxu0 0.0
      %2360 = vmatpush1.xpose.msra.mxu0 0.0
      %2361 = vmatprep.subr.mxu0 0.0
      %2362 = vmatpush1.xpose.msra.mxu0 0.0
      %2363 = vmatprep.subr.mxu0 0.0
      %2364 = vmatpush1.xpose.msra.mxu0 0.0
      %2365 = vmatprep.subr.mxu0 0.0
      %2366 = vmatpush1.xpose.msra.mxu0 0.0
      %2367 = vmatprep.subr.mxu0 0.0
      %2368 = vmatpush1.xpose.msra.mxu0 0.0
      %2369 = vmatprep.subr.mxu0 0.0
      %2370 = vmatpush1.xpose.msra.mxu0 0.0
      %2371 = vmatprep.subr.mxu0 0.0
      %2372 = vmatpush1.xpose.msra.mxu0 0.0
      %2373 = vmatprep.subr.mxu0 0.0
      %2374 = vmatpush1.xpose.msra.mxu0 0.0
      %2375 = vmatprep.subr.mxu0 0.0
      %2376 = vmatpush1.xpose.msra.mxu0 0.0
      %2377 = vmatprep.subr.mxu0 0.0
      %2378 = vmatpush1.xpose.msra.mxu0 0.0
      %2379 = vmatprep.subr.mxu0 0.0
      %2380 = vmatpush1.xpose.msra.mxu0 0.0
      %2381 = vmatprep.subr.mxu0 0.0
      %2382 = vmatpush1.xpose.msra.mxu0 0.0
      %2383 = vmatprep.mubr.f32.mxu0 0.0
      %2384 = vmatmul.mubr.f32.gmra.mrb[0].mxu0 %v2311
      %v2385 = vpop.f32.mrb[0].mxu0
      %v2386 = vadd.f32 0.0, %v2385
      %v2387 = vpop.f32.mrb[0].mxu0
      %2388 = vdwg.mxu0
      %v2389 = vlaneseq
      %v2390 = vand.u32 %v2389, 127
      %vm2391 = vcmp.eq.s32.totalorder %v2390, 0
      %v2393 = vrot.slane %v2386, 1
      %v2395 = vsel %vm2391, %v2386, %v2393
      %v2396 = vld [vmem:[%s21] sm:$0x1]
      %v2397 = vadd.f32 %v2395, %v2396
      %vm2398 = vcmask 73728
      %2399 = vst.msk [vmem:[%s679] sm:$0x1] %vm2398, %v2397
      %p2400 = scmp.lt.s32.totalorder %s33, 1
      %s2401 = scalar_select %p2400, %s33, 1
      %s2402 = scalar_lea.vmem %s22, %s2401
      // Predicated region
      $region109: #{global_pred_forward.3} parent=107 // pred_check
        %p2403 = pneg %p518
      $region110: #{global_pred_forward.3} parent=107 // pred_check_branch
        %2405 = sbr.rel (%p2403) target = $region112
      $region111: #{global_pred_forward.3} parent=107 // pred_region
        _
      $region112: #{global_pred_forward.3} parent=107 // pred_fallthru
        _
    $region108: #{global_pred_forward.3} parent=5 // pred_fallthru
      _
    %p2406 = scmp.le.s32.totalorder 2, %s28
    // Predicated region
    $region113: #{global_pred_forward.3} parent=5 // pred_check
      %p2407 = pneg %p2406
    $region114: #{global_pred_forward.3} parent=5 // pred_check_branch
      %2409 = sbr.rel (%p2407) target = $region116
    $region115: #{global_pred_forward.3} parent=5 // pred_region
      %s2410 = ssub.s32 %s28, 2
      // Predicated region
      $region117: #{global_pred_forward.3} parent=115 // pred_check
        %p2411 = pneg %p524
      $region118: #{global_pred_forward.3} parent=115 // pred_check_branch
        %2413 = sbr.rel (%p2411) target = $region120
      $region119: #{global_pred_forward.3} parent=115 // pred_region
        %p2414 = scmp.lt.s32.totalorder %s34, 1
        %s2415 = scalar_select %p2414, %s34, 1
        %s2416 = scalar_lea.vmem %s22, %s2415
      $region120: #{global_pred_forward.3} parent=115 // pred_fallthru
        _
    $region116: #{global_pred_forward.3} parent=5 // pred_fallthru
      _
  $region6: #{global_pred_forward.3} parent=0 // loop_footer
    %s32 = sadd.s32 1, %s28
  $region7: #{global_pred_forward.3} parent=0 // loop_footer_branch
    %27 = sbr.rel target = $region3
  $region8: #{global_pred_forward.3} parent=0 // loop_exit
    _

</llo_original>
